<compile_context>
chip_gen: v5e
topology: v5e:2x2
jax: 0.10.0
libtpu: 0.0.40
codegen_flags: <defaults>
</compile_context>

<pallas_src>
import functools

import jax
import jax.numpy as jnp
from jax.experimental import pallas as pl
from jax.experimental.pallas import tpu as pltpu

KSIZE = 7
PAD = (KSIZE - 1) // 2


def spatial_gate_kernel(w_ref, bn_ref, x_ref, out_ref, scale_ref, xpad_sc):
    # w_ref:    SMEM (C*K*K,)       flattened conv weight (out_ch = 1)
    # bn_ref:   SMEM (2,)           folded batchnorm [scale, bias]
    # x_ref:    VMEM (1, C, H, W)   unpadded input for this batch element
    # out_ref:  VMEM (1, C, H, W)
    # scale_ref:VMEM (1, 1, H, W)
    # xpad_sc:  VMEM (C, H+6, W+6)  f32 zero-padded scratch (built in-kernel)
    _, C, H, W = out_ref.shape
    _, Hp, Wp = xpad_sc.shape

    # ---- Build the zero-padded f32 image in VMEM (cast once, no HBM pad). ----
    # Border strips are re-zeroed every step: cheap, and stays correct when the
    # "parallel" grid axis is sharded across TensorCores (scratch is per-core).
    xpad_sc[:, :PAD, :] = jnp.zeros((C, PAD, Wp), jnp.float32)
    xpad_sc[:, PAD + H:, :] = jnp.zeros((C, PAD, Wp), jnp.float32)
    xpad_sc[:, :, :PAD] = jnp.zeros((C, Hp, PAD), jnp.float32)
    xpad_sc[:, :, PAD + W:] = jnp.zeros((C, Hp, PAD), jnp.float32)

    x_f32 = x_ref[0].astype(jnp.float32)               # (C, H, W), single cast
    xpad_sc[:, PAD:PAD + H, PAD:PAD + W] = x_f32

    # ---- 7x7 conv (C -> 1 channel), unrolled shift-multiply-accumulate. ----
    # Hoist the lane-shifted slice: one (Hp, W) slice per (c, kx) (21 total);
    # the inner ky loop only slices along the sublane axis.
    acc = jnp.zeros((H, W), jnp.float32)
    for c in range(C):
        for kx in range(KSIZE):
            xc = xpad_sc[c, :, kx:kx + W]               # (Hp, W), one lane shift
            for ky in range(KSIZE):
                w = w_ref[c * KSIZE * KSIZE + ky * KSIZE + kx]
                acc = acc + xc[ky:ky + H, :] * w        # sublane-only slice

    # ---- Folded eval-mode BatchNorm + sigmoid. ----
    scale = jax.nn.sigmoid(acc * bn_ref[0] + bn_ref[1])     # (H, W)

    # ---- Epilogue: x*scale + x == x*(scale+1); broadcast (H,W) over C. ----
    scale_ref[0, 0] = scale.astype(scale_ref.dtype)
    out_ref[0] = (x_f32 * (scale + 1.0)[None, :, :]).astype(out_ref.dtype)


@functools.partial(jax.jit, static_argnames=("eps",))
def spatial_gate(x, conv_w, bn_gamma, bn_beta, bn_mean, bn_var, eps=1e-5):
    N, C, H, W = x.shape
    Hp, Wp = H + 2 * PAD, W + 2 * PAD

    # Glue: flatten conv weight and fold eval-mode BN into (scale, bias).
    w_flat = conv_w.reshape(-1).astype(jnp.float32)                 # (C*7*7,)
    bn_scale = bn_gamma / jnp.sqrt(bn_var + eps)
    bn_bias = bn_beta - bn_mean * bn_scale
    bn = jnp.stack([bn_scale[0], bn_bias[0]]).astype(jnp.float32)   # (2,)

    out, scale = pl.pallas_call(
        spatial_gate_kernel,
        out_shape=(jax.ShapeDtypeStruct((N, C, H, W), x.dtype),
                   jax.ShapeDtypeStruct((N, 1, H, W), x.dtype)),
        grid=(N,),
        in_specs=[
            pl.BlockSpec(memory_space=pltpu.MemorySpace.SMEM),      # conv weights
            pl.BlockSpec(memory_space=pltpu.MemorySpace.SMEM),      # folded BN
            pl.BlockSpec((1, C, H, W), lambda b: (b, 0, 0, 0)),     # unpadded x
        ],
        out_specs=(
            pl.BlockSpec((1, C, H, W), lambda b: (b, 0, 0, 0)),
            pl.BlockSpec((1, 1, H, W), lambda b: (b, 0, 0, 0)),
        ),
        scratch_shapes=[pltpu.VMEM((C, Hp, Wp), jnp.float32)],      # padded image
        compiler_params=pltpu.CompilerParams(
            dimension_semantics=("parallel",)),
    )(w_flat, bn, x)
    return out, scale


def spatial_gate_ref(x, conv_w, bn_gamma, bn_beta, bn_mean, bn_var, eps=1e-5):
    """Pure-JAX reference (mirrors the PyTorch forward in eval mode)."""
    y = jax.lax.conv_general_dilated(
        x, conv_w, window_strides=(1, 1), padding=[(PAD, PAD), (PAD, PAD)],
        dimension_numbers=("NCHW", "OIHW", "NCHW"))
    y = (y - bn_mean[None, :, None, None]) * (
        bn_gamma / jnp.sqrt(bn_var + eps))[None, :, None, None] \
        + bn_beta[None, :, None, None]
    scale = jax.nn.sigmoid(y)
    return x * scale + x, scale


if __name__ == "__main__":
    key = jax.random.PRNGKey(0)
    k1, k2, k3, k4, k5, k6 = jax.random.split(key, 6)

    # SpatialGate's conv is Conv2d(3, 1, 7) -> input must have 3 channels.
    N, C, H, W = 2, 3, 16, 16
    x = jax.random.normal(k1, (N, C, H, W), jnp.float32)

    # Deterministic synthetic parameters (BasicConv(3,1,7,bn=True,bias=False)).
    conv_w   = jax.random.normal(k2, (1, C, KSIZE, KSIZE), jnp.float32) * 0.1
    bn_gamma = 1.0 + 0.1 * jax.random.normal(k3, (1,), jnp.float32)
    bn_beta  = 0.1 * jax.random.normal(k4, (1,), jnp.float32)
    bn_mean  = 0.1 * jax.random.normal(k5, (1,), jnp.float32)
    bn_var   = jnp.abs(jax.random.normal(k6, (1,), jnp.float32)) + 0.5

    out, scale = spatial_gate(x, conv_w, bn_gamma, bn_beta, bn_mean, bn_var)
    jax.block_until_ready((out, scale))

    out_r, scale_r = spatial_gate_ref(x, conv_w, bn_gamma, bn_beta, bn_mean, bn_var)
    assert out.shape == (N, C, H, W) and scale.shape == (N, 1, H, W)
    assert jnp.allclose(out, out_r, atol=1e-4, rtol=1e-4)
    assert jnp.allclose(scale, scale_r, atol=1e-5, rtol=1e-4)

    print("KERNEL_OK")
</pallas_src>

<mosaic_0001>
module attributes {stable_mosaic.version = 11 : i64} {
  func.func @spatial_gate_kernel(%arg0: i32, %arg1: memref<147xf32, #tpu.memory_space<smem>>, %arg2: memref<2xf32, #tpu.memory_space<smem>>, %arg3: memref<1x3x16x16xf32, #tpu.memory_space<vmem>>, %arg4: memref<1x3x16x16xf32, #tpu.memory_space<vmem>>, %arg5: memref<1x1x16x16xf32, #tpu.memory_space<vmem>>, %arg6: memref<3x22x22xf32, #tpu.memory_space<vmem>>) attributes {dimension_semantics = [#tpu.dimension_semantics<parallel>], iteration_bounds = array<i64: 2>, scalar_prefetch = 0 : i64, scratch_operands = 1 : i64, tpu.core_type = #tpu.core_type<tc>, window_params = [{transform_indices = @transform_0, window_bounds = array<i64: 147>}, {transform_indices = @transform_1, window_bounds = array<i64: 2>}, {transform_indices = @transform_2, window_bounds = array<i64: 1, 3, 16, 16>}, {transform_indices = @transform_3, window_bounds = array<i64: 1, 3, 16, 16>}, {transform_indices = @transform_4, window_bounds = array<i64: 1, 1, 16, 16>}]} {
    %cst = arith.constant 0.000000e+00 : f32
    %0 = vector.broadcast %cst : f32 to vector<3x3x22xf32>
    %c0 = arith.constant 0 : index
    %c0_0 = arith.constant 0 : index
    %c0_1 = arith.constant 0 : index
    %1 = vector.load %arg6[%c0, %c0_0, %c0_1] : memref<3x22x22xf32, #tpu.memory_space<vmem>>, vector<3x3x22xf32>
    tpu.vector_store %arg6[%c0, %c0_0, %c0_1], %0 {strides = array<i32>} : memref<3x22x22xf32, #tpu.memory_space<vmem>>, vector<3x3x22xf32>,
    %cst_2 = arith.constant 0.000000e+00 : f32
    %2 = vector.broadcast %cst_2 : f32 to vector<3x3x22xf32>
    %c0_3 = arith.constant 0 : index
    %c19 = arith.constant 19 : index
    %c0_4 = arith.constant 0 : index
    %3 = vector.load %arg6[%c0_3, %c19, %c0_4] : memref<3x22x22xf32, #tpu.memory_space<vmem>>, vector<3x3x22xf32>
    tpu.vector_store %arg6[%c0_3, %c19, %c0_4], %2 {strides = array<i32>} : memref<3x22x22xf32, #tpu.memory_space<vmem>>, vector<3x3x22xf32>,
    %cst_5 = arith.constant 0.000000e+00 : f32
    %4 = vector.broadcast %cst_5 : f32 to vector<3x22x3xf32>
    %c0_6 = arith.constant 0 : index
    %c0_7 = arith.constant 0 : index
    %c0_8 = arith.constant 0 : index
    %5 = vector.load %arg6[%c0_6, %c0_7, %c0_8] : memref<3x22x22xf32, #tpu.memory_space<vmem>>, vector<3x22x3xf32>
    tpu.vector_store %arg6[%c0_6, %c0_7, %c0_8], %4 {strides = array<i32>} : memref<3x22x22xf32, #tpu.memory_space<vmem>>, vector<3x22x3xf32>,
    %cst_9 = arith.constant 0.000000e+00 : f32
    %6 = vector.broadcast %cst_9 : f32 to vector<3x22x3xf32>
    %c0_10 = arith.constant 0 : index
    %c0_11 = arith.constant 0 : index
    %c19_12 = arith.constant 19 : index
    %7 = vector.load %arg6[%c0_10, %c0_11, %c19_12] : memref<3x22x22xf32, #tpu.memory_space<vmem>>, vector<3x22x3xf32>
    tpu.vector_store %arg6[%c0_10, %c0_11, %c19_12], %6 {strides = array<i32>} : memref<3x22x22xf32, #tpu.memory_space<vmem>>, vector<3x22x3xf32>,
    %c0_13 = arith.constant 0 : index
    %c0_14 = arith.constant 0 : index
    %c0_15 = arith.constant 0 : index
    %c0_16 = arith.constant 0 : index
    %8 = vector.load %arg3[%c0_13, %c0_14, %c0_15, %c0_16] : memref<1x3x16x16xf32, #tpu.memory_space<vmem>>, vector<1x3x16x16xf32>
    %9 = vector.shape_cast %8 : vector<1x3x16x16xf32> to vector<3x16x16xf32>
    %c0_17 = arith.constant 0 : index
    %c3 = arith.constant 3 : index
    %c3_18 = arith.constant 3 : index
    %10 = vector.load %arg6[%c0_17, %c3, %c3_18] : memref<3x22x22xf32, #tpu.memory_space<vmem>>, vector<3x16x16xf32>
    tpu.vector_store %arg6[%c0_17, %c3, %c3_18], %9 {strides = array<i32>} : memref<3x22x22xf32, #tpu.memory_space<vmem>>, vector<3x16x16xf32>,
    %cst_19 = arith.constant 0.000000e+00 : f32
    %11 = vector.broadcast %cst_19 : f32 to vector<16x16xf32>
    %c0_20 = arith.constant 0 : index
    %c0_21 = arith.constant 0 : index
    %c0_22 = arith.constant 0 : index
    %12 = vector.load %arg6[%c0_20, %c0_21, %c0_22] : memref<3x22x22xf32, #tpu.memory_space<vmem>>, vector<1x22x16xf32>
    %13 = vector.shape_cast %12 : vector<1x22x16xf32> to vector<22x16xf32>
    %c0_23 = arith.constant 0 : index
    %14 = memref.load %arg1[%c0_23] : memref<147xf32, #tpu.memory_space<smem>>
    %15 = vector.extract_strided_slice %13 {offsets = [0, 0], sizes = [16, 16], strides = [1, 1]} : vector<22x16xf32> to vector<16x16xf32>
    %16 = vector.broadcast %14 : f32 to vector<16x16xf32>
    %17 = arith.mulf %15, %16 : vector<16x16xf32>
    %18 = arith.addf %11, %17 : vector<16x16xf32>
    %c7 = arith.constant 7 : index
    %19 = memref.load %arg1[%c7] : memref<147xf32, #tpu.memory_space<smem>>
    %20 = vector.extract_strided_slice %13 {offsets = [1, 0], sizes = [16, 16], strides = [1, 1]} : vector<22x16xf32> to vector<16x16xf32>
    %21 = vector.broadcast %19 : f32 to vector<16x16xf32>
    %22 = arith.mulf %20, %21 : vector<16x16xf32>
    %23 = arith.addf %18, %22 : vector<16x16xf32>
    %c14 = arith.constant 14 : index
    %24 = memref.load %arg1[%c14] : memref<147xf32, #tpu.memory_space<smem>>
    %25 = vector.extract_strided_slice %13 {offsets = [2, 0], sizes = [16, 16], strides = [1, 1]} : vector<22x16xf32> to vector<16x16xf32>
    %26 = vector.broadcast %24 : f32 to vector<16x16xf32>
    %27 = arith.mulf %25, %26 : vector<16x16xf32>
    %28 = arith.addf %23, %27 : vector<16x16xf32>
    %c21 = arith.constant 21 : index
    %29 = memref.load %arg1[%c21] : memref<147xf32, #tpu.memory_space<smem>>
    %30 = vector.extract_strided_slice %13 {offsets = [3, 0], sizes = [16, 16], strides = [1, 1]} : vector<22x16xf32> to vector<16x16xf32>
    %31 = vector.broadcast %29 : f32 to vector<16x16xf32>
    %32 = arith.mulf %30, %31 : vector<16x16xf32>
    %33 = arith.addf %28, %32 : vector<16x16xf32>
    %c28 = arith.constant 28 : index
    %34 = memref.load %arg1[%c28] : memref<147xf32, #tpu.memory_space<smem>>
    %35 = vector.extract_strided_slice %13 {offsets = [4, 0], sizes = [16, 16], strides = [1, 1]} : vector<22x16xf32> to vector<16x16xf32>
    %36 = vector.broadcast %34 : f32 to vector<16x16xf32>
    %37 = arith.mulf %35, %36 : vector<16x16xf32>
    %38 = arith.addf %33, %37 : vector<16x16xf32>
    %c35 = arith.constant 35 : index
    %39 = memref.load %arg1[%c35] : memref<147xf32, #tpu.memory_space<smem>>
    %40 = vector.extract_strided_slice %13 {offsets = [5, 0], sizes = [16, 16], strides = [1, 1]} : vector<22x16xf32> to vector<16x16xf32>
    %41 = vector.broadcast %39 : f32 to vector<16x16xf32>
    %42 = arith.mulf %40, %41 : vector<16x16xf32>
    %43 = arith.addf %38, %42 : vector<16x16xf32>
    %c42 = arith.constant 42 : index
    %44 = memref.load %arg1[%c42] : memref<147xf32, #tpu.memory_space<smem>>
    %45 = vector.extract_strided_slice %13 {offsets = [6, 0], sizes = [16, 16], strides = [1, 1]} : vector<22x16xf32> to vector<16x16xf32>
    %46 = vector.broadcast %44 : f32 to vector<16x16xf32>
    %47 = arith.mulf %45, %46 : vector<16x16xf32>
    %48 = arith.addf %43, %47 : vector<16x16xf32>
    %c0_24 = arith.constant 0 : index
    %c0_25 = arith.constant 0 : index
    %c1 = arith.constant 1 : index
    %49 = vector.load %arg6[%c0_24, %c0_25, %c1] : memref<3x22x22xf32, #tpu.memory_space<vmem>>, vector<1x22x16xf32>
    %50 = vector.shape_cast %49 : vector<1x22x16xf32> to vector<22x16xf32>
    %c1_26 = arith.constant 1 : index
    %51 = memref.load %arg1[%c1_26] : memref<147xf32, #tpu.memory_space<smem>>
    %52 = vector.extract_strided_slice %50 {offsets = [0, 0], sizes = [16, 16], strides = [1, 1]} : vector<22x16xf32> to vector<16x16xf32>
    %53 = vector.broadcast %51 : f32 to vector<16x16xf32>
    %54 = arith.mulf %52, %53 : vector<16x16xf32>
    %55 = arith.addf %48, %54 : vector<16x16xf32>
    %c8 = arith.constant 8 : index
    %56 = memref.load %arg1[%c8] : memref<147xf32, #tpu.memory_space<smem>>
    %57 = vector.extract_strided_slice %50 {offsets = [1, 0], sizes = [16, 16], strides = [1, 1]} : vector<22x16xf32> to vector<16x16xf32>
    %58 = vector.broadcast %56 : f32 to vector<16x16xf32>
    %59 = arith.mulf %57, %58 : vector<16x16xf32>
    %60 = arith.addf %55, %59 : vector<16x16xf32>
    %c15 = arith.constant 15 : index
    %61 = memref.load %arg1[%c15] : memref<147xf32, #tpu.memory_space<smem>>
    %62 = vector.extract_strided_slice %50 {offsets = [2, 0], sizes = [16, 16], strides = [1, 1]} : vector<22x16xf32> to vector<16x16xf32>
    %63 = vector.broadcast %61 : f32 to vector<16x16xf32>
    %64 = arith.mulf %62, %63 : vector<16x16xf32>
    %65 = arith.addf %60, %64 : vector<16x16xf32>
    %c22 = arith.constant 22 : index
    %66 = memref.load %arg1[%c22] : memref<147xf32, #tpu.memory_space<smem>>
    %67 = vector.extract_strided_slice %50 {offsets = [3, 0], sizes = [16, 16], strides = [1, 1]} : vector<22x16xf32> to vector<16x16xf32>
    %68 = vector.broadcast %66 : f32 to vector<16x16xf32>
    %69 = arith.mulf %67, %68 : vector<16x16xf32>
    %70 = arith.addf %65, %69 : vector<16x16xf32>
    %c29 = arith.constant 29 : index
    %71 = memref.load %arg1[%c29] : memref<147xf32, #tpu.memory_space<smem>>
    %72 = vector.extract_strided_slice %50 {offsets = [4, 0], sizes = [16, 16], strides = [1, 1]} : vector<22x16xf32> to vector<16x16xf32>
    %73 = vector.broadcast %71 : f32 to vector<16x16xf32>
    %74 = arith.mulf %72, %73 : vector<16x16xf32>
    %75 = arith.addf %70, %74 : vector<16x16xf32>
    %c36 = arith.constant 36 : index
    %76 = memref.load %arg1[%c36] : memref<147xf32, #tpu.memory_space<smem>>
    %77 = vector.extract_strided_slice %50 {offsets = [5, 0], sizes = [16, 16], strides = [1, 1]} : vector<22x16xf32> to vector<16x16xf32>
    %78 = vector.broadcast %76 : f32 to vector<16x16xf32>
    %79 = arith.mulf %77, %78 : vector<16x16xf32>
    %80 = arith.addf %75, %79 : vector<16x16xf32>
    %c43 = arith.constant 43 : index
    %81 = memref.load %arg1[%c43] : memref<147xf32, #tpu.memory_space<smem>>
    %82 = vector.extract_strided_slice %50 {offsets = [6, 0], sizes = [16, 16], strides = [1, 1]} : vector<22x16xf32> to vector<16x16xf32>
    %83 = vector.broadcast %81 : f32 to vector<16x16xf32>
    %84 = arith.mulf %82, %83 : vector<16x16xf32>
    %85 = arith.addf %80, %84 : vector<16x16xf32>
    %c0_27 = arith.constant 0 : index
    %c0_28 = arith.constant 0 : index
    %c2 = arith.constant 2 : index
    %86 = vector.load %arg6[%c0_27, %c0_28, %c2] : memref<3x22x22xf32, #tpu.memory_space<vmem>>, vector<1x22x16xf32>
    %87 = vector.shape_cast %86 : vector<1x22x16xf32> to vector<22x16xf32>
    %c2_29 = arith.constant 2 : index
    %88 = memref.load %arg1[%c2_29] : memref<147xf32, #tpu.memory_space<smem>>
    %89 = vector.extract_strided_slice %87 {offsets = [0, 0], sizes = [16, 16], strides = [1, 1]} : vector<22x16xf32> to vector<16x16xf32>
    %90 = vector.broadcast %88 : f32 to vector<16x16xf32>
    %91 = arith.mulf %89, %90 : vector<16x16xf32>
    %92 = arith.addf %85, %91 : vector<16x16xf32>
    %c9 = arith.constant 9 : index
    %93 = memref.load %arg1[%c9] : memref<147xf32, #tpu.memory_space<smem>>
    %94 = vector.extract_strided_slice %87 {offsets = [1, 0], sizes = [16, 16], strides = [1, 1]} : vector<22x16xf32> to vector<16x16xf32>
    %95 = vector.broadcast %93 : f32 to vector<16x16xf32>
    %96 = arith.mulf %94, %95 : vector<16x16xf32>
    %97 = arith.addf %92, %96 : vector<16x16xf32>
    %c16 = arith.constant 16 : index
    %98 = memref.load %arg1[%c16] : memref<147xf32, #tpu.memory_space<smem>>
    %99 = vector.extract_strided_slice %87 {offsets = [2, 0], sizes = [16, 16], strides = [1, 1]} : vector<22x16xf32> to vector<16x16xf32>
    %100 = vector.broadcast %98 : f32 to vector<16x16xf32>
    %101 = arith.mulf %99, %100 : vector<16x16xf32>
    %102 = arith.addf %97, %101 : vector<16x16xf32>
    %c23 = arith.constant 23 : index
    %103 = memref.load %arg1[%c23] : memref<147xf32, #tpu.memory_space<smem>>
    %104 = vector.extract_strided_slice %87 {offsets = [3, 0], sizes = [16, 16], strides = [1, 1]} : vector<22x16xf32> to vector<16x16xf32>
    %105 = vector.broadcast %103 : f32 to vector<16x16xf32>
    %106 = arith.mulf %104, %105 : vector<16x16xf32>
    %107 = arith.addf %102, %106 : vector<16x16xf32>
    %c30 = arith.constant 30 : index
    %108 = memref.load %arg1[%c30] : memref<147xf32, #tpu.memory_space<smem>>
    %109 = vector.extract_strided_slice %87 {offsets = [4, 0], sizes = [16, 16], strides = [1, 1]} : vector<22x16xf32> to vector<16x16xf32>
    %110 = vector.broadcast %108 : f32 to vector<16x16xf32>
    %111 = arith.mulf %109, %110 : vector<16x16xf32>
    %112 = arith.addf %107, %111 : vector<16x16xf32>
    %c37 = arith.constant 37 : index
    %113 = memref.load %arg1[%c37] : memref<147xf32, #tpu.memory_space<smem>>
    %114 = vector.extract_strided_slice %87 {offsets = [5, 0], sizes = [16, 16], strides = [1, 1]} : vector<22x16xf32> to vector<16x16xf32>
    %115 = vector.broadcast %113 : f32 to vector<16x16xf32>
    %116 = arith.mulf %114, %115 : vector<16x16xf32>
    %117 = arith.addf %112, %116 : vector<16x16xf32>
    %c44 = arith.constant 44 : index
    %118 = memref.load %arg1[%c44] : memref<147xf32, #tpu.memory_space<smem>>
    %119 = vector.extract_strided_slice %87 {offsets = [6, 0], sizes = [16, 16], strides = [1, 1]} : vector<22x16xf32> to vector<16x16xf32>
    %120 = vector.broadcast %118 : f32 to vector<16x16xf32>
    %121 = arith.mulf %119, %120 : vector<16x16xf32>
    %122 = arith.addf %117, %121 : vector<16x16xf32>
    %c0_30 = arith.constant 0 : index
    %c0_31 = arith.constant 0 : index
    %c3_32 = arith.constant 3 : index
    %123 = vector.load %arg6[%c0_30, %c0_31, %c3_32] : memref<3x22x22xf32, #tpu.memory_space<vmem>>, vector<1x22x16xf32>
    %124 = vector.shape_cast %123 : vector<1x22x16xf32> to vector<22x16xf32>
    %c3_33 = arith.constant 3 : index
    %125 = memref.load %arg1[%c3_33] : memref<147xf32, #tpu.memory_space<smem>>
    %126 = vector.extract_strided_slice %124 {offsets = [0, 0], sizes = [16, 16], strides = [1, 1]} : vector<22x16xf32> to vector<16x16xf32>
    %127 = vector.broadcast %125 : f32 to vector<16x16xf32>
    %128 = arith.mulf %126, %127 : vector<16x16xf32>
    %129 = arith.addf %122, %128 : vector<16x16xf32>
    %c10 = arith.constant 10 : index
    %130 = memref.load %arg1[%c10] : memref<147xf32, #tpu.memory_space<smem>>
    %131 = vector.extract_strided_slice %124 {offsets = [1, 0], sizes = [16, 16], strides = [1, 1]} : vector<22x16xf32> to vector<16x16xf32>
    %132 = vector.broadcast %130 : f32 to vector<16x16xf32>
    %133 = arith.mulf %131, %132 : vector<16x16xf32>
    %134 = arith.addf %129, %133 : vector<16x16xf32>
    %c17 = arith.constant 17 : index
    %135 = memref.load %arg1[%c17] : memref<147xf32, #tpu.memory_space<smem>>
    %136 = vector.extract_strided_slice %124 {offsets = [2, 0], sizes = [16, 16], strides = [1, 1]} : vector<22x16xf32> to vector<16x16xf32>
    %137 = vector.broadcast %135 : f32 to vector<16x16xf32>
    %138 = arith.mulf %136, %137 : vector<16x16xf32>
    %139 = arith.addf %134, %138 : vector<16x16xf32>
    %c24 = arith.constant 24 : index
    %140 = memref.load %arg1[%c24] : memref<147xf32, #tpu.memory_space<smem>>
    %141 = vector.extract_strided_slice %124 {offsets = [3, 0], sizes = [16, 16], strides = [1, 1]} : vector<22x16xf32> to vector<16x16xf32>
    %142 = vector.broadcast %140 : f32 to vector<16x16xf32>
    %143 = arith.mulf %141, %142 : vector<16x16xf32>
    %144 = arith.addf %139, %143 : vector<16x16xf32>
    %c31 = arith.constant 31 : index
    %145 = memref.load %arg1[%c31] : memref<147xf32, #tpu.memory_space<smem>>
    %146 = vector.extract_strided_slice %124 {offsets = [4, 0], sizes = [16, 16], strides = [1, 1]} : vector<22x16xf32> to vector<16x16xf32>
    %147 = vector.broadcast %145 : f32 to vector<16x16xf32>
    %148 = arith.mulf %146, %147 : vector<16x16xf32>
    %149 = arith.addf %144, %148 : vector<16x16xf32>
    %c38 = arith.constant 38 : index
    %150 = memref.load %arg1[%c38] : memref<147xf32, #tpu.memory_space<smem>>
    %151 = vector.extract_strided_slice %124 {offsets = [5, 0], sizes = [16, 16], strides = [1, 1]} : vector<22x16xf32> to vector<16x16xf32>
    %152 = vector.broadcast %150 : f32 to vector<16x16xf32>
    %153 = arith.mulf %151, %152 : vector<16x16xf32>
    %154 = arith.addf %149, %153 : vector<16x16xf32>
    %c45 = arith.constant 45 : index
    %155 = memref.load %arg1[%c45] : memref<147xf32, #tpu.memory_space<smem>>
    %156 = vector.extract_strided_slice %124 {offsets = [6, 0], sizes = [16, 16], strides = [1, 1]} : vector<22x16xf32> to vector<16x16xf32>
    %157 = vector.broadcast %155 : f32 to vector<16x16xf32>
    %158 = arith.mulf %156, %157 : vector<16x16xf32>
    %159 = arith.addf %154, %158 : vector<16x16xf32>
    %c0_34 = arith.constant 0 : index
    %c0_35 = arith.constant 0 : index
    %c4 = arith.constant 4 : index
    %160 = vector.load %arg6[%c0_34, %c0_35, %c4] : memref<3x22x22xf32, #tpu.memory_space<vmem>>, vector<1x22x16xf32>
    %161 = vector.shape_cast %160 : vector<1x22x16xf32> to vector<22x16xf32>
    %c4_36 = arith.constant 4 : index
    %162 = memref.load %arg1[%c4_36] : memref<147xf32, #tpu.memory_space<smem>>
    %163 = vector.extract_strided_slice %161 {offsets = [0, 0], sizes = [16, 16], strides = [1, 1]} : vector<22x16xf32> to vector<16x16xf32>
    %164 = vector.broadcast %162 : f32 to vector<16x16xf32>
    %165 = arith.mulf %163, %164 : vector<16x16xf32>
    %166 = arith.addf %159, %165 : vector<16x16xf32>
    %c11 = arith.constant 11 : index
    %167 = memref.load %arg1[%c11] : memref<147xf32, #tpu.memory_space<smem>>
    %168 = vector.extract_strided_slice %161 {offsets = [1, 0], sizes = [16, 16], strides = [1, 1]} : vector<22x16xf32> to vector<16x16xf32>
    %169 = vector.broadcast %167 : f32 to vector<16x16xf32>
    %170 = arith.mulf %168, %169 : vector<16x16xf32>
    %171 = arith.addf %166, %170 : vector<16x16xf32>
    %c18 = arith.constant 18 : index
    %172 = memref.load %arg1[%c18] : memref<147xf32, #tpu.memory_space<smem>>
    %173 = vector.extract_strided_slice %161 {offsets = [2, 0], sizes = [16, 16], strides = [1, 1]} : vector<22x16xf32> to vector<16x16xf32>
    %174 = vector.broadcast %172 : f32 to vector<16x16xf32>
    %175 = arith.mulf %173, %174 : vector<16x16xf32>
    %176 = arith.addf %171, %175 : vector<16x16xf32>
    %c25 = arith.constant 25 : index
    %177 = memref.load %arg1[%c25] : memref<147xf32, #tpu.memory_space<smem>>
    %178 = vector.extract_strided_slice %161 {offsets = [3, 0], sizes = [16, 16], strides = [1, 1]} : vector<22x16xf32> to vector<16x16xf32>
    %179 = vector.broadcast %177 : f32 to vector<16x16xf32>
    %180 = arith.mulf %178, %179 : vector<16x16xf32>
    %181 = arith.addf %176, %180 : vector<16x16xf32>
    %c32 = arith.constant 32 : index
    %182 = memref.load %arg1[%c32] : memref<147xf32, #tpu.memory_space<smem>>
    %183 = vector.extract_strided_slice %161 {offsets = [4, 0], sizes = [16, 16], strides = [1, 1]} : vector<22x16xf32> to vector<16x16xf32>
    %184 = vector.broadcast %182 : f32 to vector<16x16xf32>
    %185 = arith.mulf %183, %184 : vector<16x16xf32>
    %186 = arith.addf %181, %185 : vector<16x16xf32>
    %c39 = arith.constant 39 : index
    %187 = memref.load %arg1[%c39] : memref<147xf32, #tpu.memory_space<smem>>
    %188 = vector.extract_strided_slice %161 {offsets = [5, 0], sizes = [16, 16], strides = [1, 1]} : vector<22x16xf32> to vector<16x16xf32>
    %189 = vector.broadcast %187 : f32 to vector<16x16xf32>
    %190 = arith.mulf %188, %189 : vector<16x16xf32>
    %191 = arith.addf %186, %190 : vector<16x16xf32>
    %c46 = arith.constant 46 : index
    %192 = memref.load %arg1[%c46] : memref<147xf32, #tpu.memory_space<smem>>
    %193 = vector.extract_strided_slice %161 {offsets = [6, 0], sizes = [16, 16], strides = [1, 1]} : vector<22x16xf32> to vector<16x16xf32>
    %194 = vector.broadcast %192 : f32 to vector<16x16xf32>
    %195 = arith.mulf %193, %194 : vector<16x16xf32>
    %196 = arith.addf %191, %195 : vector<16x16xf32>
    %c0_37 = arith.constant 0 : index
    %c0_38 = arith.constant 0 : index
    %c5 = arith.constant 5 : index
    %197 = vector.load %arg6[%c0_37, %c0_38, %c5] : memref<3x22x22xf32, #tpu.memory_space<vmem>>, vector<1x22x16xf32>
    %198 = vector.shape_cast %197 : vector<1x22x16xf32> to vector<22x16xf32>
    %c5_39 = arith.constant 5 : index
    %199 = memref.load %arg1[%c5_39] : memref<147xf32, #tpu.memory_space<smem>>
    %200 = vector.extract_strided_slice %198 {offsets = [0, 0], sizes = [16, 16], strides = [1, 1]} : vector<22x16xf32> to vector<16x16xf32>
    %201 = vector.broadcast %199 : f32 to vector<16x16xf32>
    %202 = arith.mulf %200, %201 : vector<16x16xf32>
    %203 = arith.addf %196, %202 : vector<16x16xf32>
    %c12 = arith.constant 12 : index
    %204 = memref.load %arg1[%c12] : memref<147xf32, #tpu.memory_space<smem>>
    %205 = vector.extract_strided_slice %198 {offsets = [1, 0], sizes = [16, 16], strides = [1, 1]} : vector<22x16xf32> to vector<16x16xf32>
    %206 = vector.broadcast %204 : f32 to vector<16x16xf32>
    %207 = arith.mulf %205, %206 : vector<16x16xf32>
    %208 = arith.addf %203, %207 : vector<16x16xf32>
    %c19_40 = arith.constant 19 : index
    %209 = memref.load %arg1[%c19_40] : memref<147xf32, #tpu.memory_space<smem>>
    %210 = vector.extract_strided_slice %198 {offsets = [2, 0], sizes = [16, 16], strides = [1, 1]} : vector<22x16xf32> to vector<16x16xf32>
    %211 = vector.broadcast %209 : f32 to vector<16x16xf32>
    %212 = arith.mulf %210, %211 : vector<16x16xf32>
    %213 = arith.addf %208, %212 : vector<16x16xf32>
    %c26 = arith.constant 26 : index
    %214 = memref.load %arg1[%c26] : memref<147xf32, #tpu.memory_space<smem>>
    %215 = vector.extract_strided_slice %198 {offsets = [3, 0], sizes = [16, 16], strides = [1, 1]} : vector<22x16xf32> to vector<16x16xf32>
    %216 = vector.broadcast %214 : f32 to vector<16x16xf32>
    %217 = arith.mulf %215, %216 : vector<16x16xf32>
    %218 = arith.addf %213, %217 : vector<16x16xf32>
    %c33 = arith.constant 33 : index
    %219 = memref.load %arg1[%c33] : memref<147xf32, #tpu.memory_space<smem>>
    %220 = vector.extract_strided_slice %198 {offsets = [4, 0], sizes = [16, 16], strides = [1, 1]} : vector<22x16xf32> to vector<16x16xf32>
    %221 = vector.broadcast %219 : f32 to vector<16x16xf32>
    %222 = arith.mulf %220, %221 : vector<16x16xf32>
    %223 = arith.addf %218, %222 : vector<16x16xf32>
    %c40 = arith.constant 40 : index
    %224 = memref.load %arg1[%c40] : memref<147xf32, #tpu.memory_space<smem>>
    %225 = vector.extract_strided_slice %198 {offsets = [5, 0], sizes = [16, 16], strides = [1, 1]} : vector<22x16xf32> to vector<16x16xf32>
    %226 = vector.broadcast %224 : f32 to vector<16x16xf32>
    %227 = arith.mulf %225, %226 : vector<16x16xf32>
    %228 = arith.addf %223, %227 : vector<16x16xf32>
    %c47 = arith.constant 47 : index
    %229 = memref.load %arg1[%c47] : memref<147xf32, #tpu.memory_space<smem>>
    %230 = vector.extract_strided_slice %198 {offsets = [6, 0], sizes = [16, 16], strides = [1, 1]} : vector<22x16xf32> to vector<16x16xf32>
    %231 = vector.broadcast %229 : f32 to vector<16x16xf32>
    %232 = arith.mulf %230, %231 : vector<16x16xf32>
    %233 = arith.addf %228, %232 : vector<16x16xf32>
    %c0_41 = arith.constant 0 : index
    %c0_42 = arith.constant 0 : index
    %c6 = arith.constant 6 : index
    %234 = vector.load %arg6[%c0_41, %c0_42, %c6] : memref<3x22x22xf32, #tpu.memory_space<vmem>>, vector<1x22x16xf32>
    %235 = vector.shape_cast %234 : vector<1x22x16xf32> to vector<22x16xf32>
    %c6_43 = arith.constant 6 : index
    %236 = memref.load %arg1[%c6_43] : memref<147xf32, #tpu.memory_space<smem>>
    %237 = vector.extract_strided_slice %235 {offsets = [0, 0], sizes = [16, 16], strides = [1, 1]} : vector<22x16xf32> to vector<16x16xf32>
    %238 = vector.broadcast %236 : f32 to vector<16x16xf32>
    %239 = arith.mulf %237, %238 : vector<16x16xf32>
    %240 = arith.addf %233, %239 : vector<16x16xf32>
    %c13 = arith.constant 13 : index
    %241 = memref.load %arg1[%c13] : memref<147xf32, #tpu.memory_space<smem>>
    %242 = vector.extract_strided_slice %235 {offsets = [1, 0], sizes = [16, 16], strides = [1, 1]} : vector<22x16xf32> to vector<16x16xf32>
    %243 = vector.broadcast %241 : f32 to vector<16x16xf32>
    %244 = arith.mulf %242, %243 : vector<16x16xf32>
    %245 = arith.addf %240, %244 : vector<16x16xf32>
    %c20 = arith.constant 20 : index
    %246 = memref.load %arg1[%c20] : memref<147xf32, #tpu.memory_space<smem>>
    %247 = vector.extract_strided_slice %235 {offsets = [2, 0], sizes = [16, 16], strides = [1, 1]} : vector<22x16xf32> to vector<16x16xf32>
    %248 = vector.broadcast %246 : f32 to vector<16x16xf32>
    %249 = arith.mulf %247, %248 : vector<16x16xf32>
    %250 = arith.addf %245, %249 : vector<16x16xf32>
    %c27 = arith.constant 27 : index
    %251 = memref.load %arg1[%c27] : memref<147xf32, #tpu.memory_space<smem>>
    %252 = vector.extract_strided_slice %235 {offsets = [3, 0], sizes = [16, 16], strides = [1, 1]} : vector<22x16xf32> to vector<16x16xf32>
    %253 = vector.broadcast %251 : f32 to vector<16x16xf32>
    %254 = arith.mulf %252, %253 : vector<16x16xf32>
    %255 = arith.addf %250, %254 : vector<16x16xf32>
    %c34 = arith.constant 34 : index
    %256 = memref.load %arg1[%c34] : memref<147xf32, #tpu.memory_space<smem>>
    %257 = vector.extract_strided_slice %235 {offsets = [4, 0], sizes = [16, 16], strides = [1, 1]} : vector<22x16xf32> to vector<16x16xf32>
    %258 = vector.broadcast %256 : f32 to vector<16x16xf32>
    %259 = arith.mulf %257, %258 : vector<16x16xf32>
    %260 = arith.addf %255, %259 : vector<16x16xf32>
    %c41 = arith.constant 41 : index
    %261 = memref.load %arg1[%c41] : memref<147xf32, #tpu.memory_space<smem>>
    %262 = vector.extract_strided_slice %235 {offsets = [5, 0], sizes = [16, 16], strides = [1, 1]} : vector<22x16xf32> to vector<16x16xf32>
    %263 = vector.broadcast %261 : f32 to vector<16x16xf32>
    %264 = arith.mulf %262, %263 : vector<16x16xf32>
    %265 = arith.addf %260, %264 : vector<16x16xf32>
    %c48 = arith.constant 48 : index
    %266 = memref.load %arg1[%c48] : memref<147xf32, #tpu.memory_space<smem>>
    %267 = vector.extract_strided_slice %235 {offsets = [6, 0], sizes = [16, 16], strides = [1, 1]} : vector<22x16xf32> to vector<16x16xf32>
    %268 = vector.broadcast %266 : f32 to vector<16x16xf32>
    %269 = arith.mulf %267, %268 : vector<16x16xf32>
    %270 = arith.addf %265, %269 : vector<16x16xf32>
    %c1_44 = arith.constant 1 : index
    %c0_45 = arith.constant 0 : index
    %c0_46 = arith.constant 0 : index
    %271 = vector.load %arg6[%c1_44, %c0_45, %c0_46] : memref<3x22x22xf32, #tpu.memory_space<vmem>>, vector<1x22x16xf32>
    %272 = vector.shape_cast %271 : vector<1x22x16xf32> to vector<22x16xf32>
    %c49 = arith.constant 49 : index
    %273 = memref.load %arg1[%c49] : memref<147xf32, #tpu.memory_space<smem>>
    %274 = vector.extract_strided_slice %272 {offsets = [0, 0], sizes = [16, 16], strides = [1, 1]} : vector<22x16xf32> to vector<16x16xf32>
    %275 = vector.broadcast %273 : f32 to vector<16x16xf32>
    %276 = arith.mulf %274, %275 : vector<16x16xf32>
    %277 = arith.addf %270, %276 : vector<16x16xf32>
    %c56 = arith.constant 56 : index
    %278 = memref.load %arg1[%c56] : memref<147xf32, #tpu.memory_space<smem>>
    %279 = vector.extract_strided_slice %272 {offsets = [1, 0], sizes = [16, 16], strides = [1, 1]} : vector<22x16xf32> to vector<16x16xf32>
    %280 = vector.broadcast %278 : f32 to vector<16x16xf32>
    %281 = arith.mulf %279, %280 : vector<16x16xf32>
    %282 = arith.addf %277, %281 : vector<16x16xf32>
    %c63 = arith.constant 63 : index
    %283 = memref.load %arg1[%c63] : memref<147xf32, #tpu.memory_space<smem>>
    %284 = vector.extract_strided_slice %272 {offsets = [2, 0], sizes = [16, 16], strides = [1, 1]} : vector<22x16xf32> to vector<16x16xf32>
    %285 = vector.broadcast %283 : f32 to vector<16x16xf32>
    %286 = arith.mulf %284, %285 : vector<16x16xf32>
    %287 = arith.addf %282, %286 : vector<16x16xf32>
    %c70 = arith.constant 70 : index
    %288 = memref.load %arg1[%c70] : memref<147xf32, #tpu.memory_space<smem>>
    %289 = vector.extract_strided_slice %272 {offsets = [3, 0], sizes = [16, 16], strides = [1, 1]} : vector<22x16xf32> to vector<16x16xf32>
    %290 = vector.broadcast %288 : f32 to vector<16x16xf32>
    %291 = arith.mulf %289, %290 : vector<16x16xf32>
    %292 = arith.addf %287, %291 : vector<16x16xf32>
    %c77 = arith.constant 77 : index
    %293 = memref.load %arg1[%c77] : memref<147xf32, #tpu.memory_space<smem>>
    %294 = vector.extract_strided_slice %272 {offsets = [4, 0], sizes = [16, 16], strides = [1, 1]} : vector<22x16xf32> to vector<16x16xf32>
    %295 = vector.broadcast %293 : f32 to vector<16x16xf32>
    %296 = arith.mulf %294, %295 : vector<16x16xf32>
    %297 = arith.addf %292, %296 : vector<16x16xf32>
    %c84 = arith.constant 84 : index
    %298 = memref.load %arg1[%c84] : memref<147xf32, #tpu.memory_space<smem>>
    %299 = vector.extract_strided_slice %272 {offsets = [5, 0], sizes = [16, 16], strides = [1, 1]} : vector<22x16xf32> to vector<16x16xf32>
    %300 = vector.broadcast %298 : f32 to vector<16x16xf32>
    %301 = arith.mulf %299, %300 : vector<16x16xf32>
    %302 = arith.addf %297, %301 : vector<16x16xf32>
    %c91 = arith.constant 91 : index
    %303 = memref.load %arg1[%c91] : memref<147xf32, #tpu.memory_space<smem>>
    %304 = vector.extract_strided_slice %272 {offsets = [6, 0], sizes = [16, 16], strides = [1, 1]} : vector<22x16xf32> to vector<16x16xf32>
    %305 = vector.broadcast %303 : f32 to vector<16x16xf32>
    %306 = arith.mulf %304, %305 : vector<16x16xf32>
    %307 = arith.addf %302, %306 : vector<16x16xf32>
    %c1_47 = arith.constant 1 : index
    %c0_48 = arith.constant 0 : index
    %c1_49 = arith.constant 1 : index
    %308 = vector.load %arg6[%c1_47, %c0_48, %c1_49] : memref<3x22x22xf32, #tpu.memory_space<vmem>>, vector<1x22x16xf32>
    %309 = vector.shape_cast %308 : vector<1x22x16xf32> to vector<22x16xf32>
    %c50 = arith.constant 50 : index
    %310 = memref.load %arg1[%c50] : memref<147xf32, #tpu.memory_space<smem>>
    %311 = vector.extract_strided_slice %309 {offsets = [0, 0], sizes = [16, 16], strides = [1, 1]} : vector<22x16xf32> to vector<16x16xf32>
    %312 = vector.broadcast %310 : f32 to vector<16x16xf32>
    %313 = arith.mulf %311, %312 : vector<16x16xf32>
    %314 = arith.addf %307, %313 : vector<16x16xf32>
    %c57 = arith.constant 57 : index
    %315 = memref.load %arg1[%c57] : memref<147xf32, #tpu.memory_space<smem>>
    %316 = vector.extract_strided_slice %309 {offsets = [1, 0], sizes = [16, 16], strides = [1, 1]} : vector<22x16xf32> to vector<16x16xf32>
    %317 = vector.broadcast %315 : f32 to vector<16x16xf32>
    %318 = arith.mulf %316, %317 : vector<16x16xf32>
    %319 = arith.addf %314, %318 : vector<16x16xf32>
    %c64 = arith.constant 64 : index
    %320 = memref.load %arg1[%c64] : memref<147xf32, #tpu.memory_space<smem>>
    %321 = vector.extract_strided_slice %309 {offsets = [2, 0], sizes = [16, 16], strides = [1, 1]} : vector<22x16xf32> to vector<16x16xf32>
    %322 = vector.broadcast %320 : f32 to vector<16x16xf32>
    %323 = arith.mulf %321, %322 : vector<16x16xf32>
    %324 = arith.addf %319, %323 : vector<16x16xf32>
    %c71 = arith.constant 71 : index
    %325 = memref.load %arg1[%c71] : memref<147xf32, #tpu.memory_space<smem>>
    %326 = vector.extract_strided_slice %309 {offsets = [3, 0], sizes = [16, 16], strides = [1, 1]} : vector<22x16xf32> to vector<16x16xf32>
    %327 = vector.broadcast %325 : f32 to vector<16x16xf32>
    %328 = arith.mulf %326, %327 : vector<16x16xf32>
    %329 = arith.addf %324, %328 : vector<16x16xf32>
    %c78 = arith.constant 78 : index
    %330 = memref.load %arg1[%c78] : memref<147xf32, #tpu.memory_space<smem>>
    %331 = vector.extract_strided_slice %309 {offsets = [4, 0], sizes = [16, 16], strides = [1, 1]} : vector<22x16xf32> to vector<16x16xf32>
    %332 = vector.broadcast %330 : f32 to vector<16x16xf32>
    %333 = arith.mulf %331, %332 : vector<16x16xf32>
    %334 = arith.addf %329, %333 : vector<16x16xf32>
    %c85 = arith.constant 85 : index
    %335 = memref.load %arg1[%c85] : memref<147xf32, #tpu.memory_space<smem>>
    %336 = vector.extract_strided_slice %309 {offsets = [5, 0], sizes = [16, 16], strides = [1, 1]} : vector<22x16xf32> to vector<16x16xf32>
    %337 = vector.broadcast %335 : f32 to vector<16x16xf32>
    %338 = arith.mulf %336, %337 : vector<16x16xf32>
    %339 = arith.addf %334, %338 : vector<16x16xf32>
    %c92 = arith.constant 92 : index
    %340 = memref.load %arg1[%c92] : memref<147xf32, #tpu.memory_space<smem>>
    %341 = vector.extract_strided_slice %309 {offsets = [6, 0], sizes = [16, 16], strides = [1, 1]} : vector<22x16xf32> to vector<16x16xf32>
    %342 = vector.broadcast %340 : f32 to vector<16x16xf32>
    %343 = arith.mulf %341, %342 : vector<16x16xf32>
    %344 = arith.addf %339, %343 : vector<16x16xf32>
    %c1_50 = arith.constant 1 : index
    %c0_51 = arith.constant 0 : index
    %c2_52 = arith.constant 2 : index
    %345 = vector.load %arg6[%c1_50, %c0_51, %c2_52] : memref<3x22x22xf32, #tpu.memory_space<vmem>>, vector<1x22x16xf32>
    %346 = vector.shape_cast %345 : vector<1x22x16xf32> to vector<22x16xf32>
    %c51 = arith.constant 51 : index
    %347 = memref.load %arg1[%c51] : memref<147xf32, #tpu.memory_space<smem>>
    %348 = vector.extract_strided_slice %346 {offsets = [0, 0], sizes = [16, 16], strides = [1, 1]} : vector<22x16xf32> to vector<16x16xf32>
    %349 = vector.broadcast %347 : f32 to vector<16x16xf32>
    %350 = arith.mulf %348, %349 : vector<16x16xf32>
    %351 = arith.addf %344, %350 : vector<16x16xf32>
    %c58 = arith.constant 58 : index
    %352 = memref.load %arg1[%c58] : memref<147xf32, #tpu.memory_space<smem>>
    %353 = vector.extract_strided_slice %346 {offsets = [1, 0], sizes = [16, 16], strides = [1, 1]} : vector<22x16xf32> to vector<16x16xf32>
    %354 = vector.broadcast %352 : f32 to vector<16x16xf32>
    %355 = arith.mulf %353, %354 : vector<16x16xf32>
    %356 = arith.addf %351, %355 : vector<16x16xf32>
    %c65 = arith.constant 65 : index
    %357 = memref.load %arg1[%c65] : memref<147xf32, #tpu.memory_space<smem>>
    %358 = vector.extract_strided_slice %346 {offsets = [2, 0], sizes = [16, 16], strides = [1, 1]} : vector<22x16xf32> to vector<16x16xf32>
    %359 = vector.broadcast %357 : f32 to vector<16x16xf32>
    %360 = arith.mulf %358, %359 : vector<16x16xf32>
    %361 = arith.addf %356, %360 : vector<16x16xf32>
    %c72 = arith.constant 72 : index
    %362 = memref.load %arg1[%c72] : memref<147xf32, #tpu.memory_space<smem>>
    %363 = vector.extract_strided_slice %346 {offsets = [3, 0], sizes = [16, 16], strides = [1, 1]} : vector<22x16xf32> to vector<16x16xf32>
    %364 = vector.broadcast %362 : f32 to vector<16x16xf32>
    %365 = arith.mulf %363, %364 : vector<16x16xf32>
    %366 = arith.addf %361, %365 : vector<16x16xf32>
    %c79 = arith.constant 79 : index
    %367 = memref.load %arg1[%c79] : memref<147xf32, #tpu.memory_space<smem>>
    %368 = vector.extract_strided_slice %346 {offsets = [4, 0], sizes = [16, 16], strides = [1, 1]} : vector<22x16xf32> to vector<16x16xf32>
    %369 = vector.broadcast %367 : f32 to vector<16x16xf32>
    %370 = arith.mulf %368, %369 : vector<16x16xf32>
    %371 = arith.addf %366, %370 : vector<16x16xf32>
    %c86 = arith.constant 86 : index
    %372 = memref.load %arg1[%c86] : memref<147xf32, #tpu.memory_space<smem>>
    %373 = vector.extract_strided_slice %346 {offsets = [5, 0], sizes = [16, 16], strides = [1, 1]} : vector<22x16xf32> to vector<16x16xf32>
    %374 = vector.broadcast %372 : f32 to vector<16x16xf32>
    %375 = arith.mulf %373, %374 : vector<16x16xf32>
    %376 = arith.addf %371, %375 : vector<16x16xf32>
    %c93 = arith.constant 93 : index
    %377 = memref.load %arg1[%c93] : memref<147xf32, #tpu.memory_space<smem>>
    %378 = vector.extract_strided_slice %346 {offsets = [6, 0], sizes = [16, 16], strides = [1, 1]} : vector<22x16xf32> to vector<16x16xf32>
    %379 = vector.broadcast %377 : f32 to vector<16x16xf32>
    %380 = arith.mulf %378, %379 : vector<16x16xf32>
    %381 = arith.addf %376, %380 : vector<16x16xf32>
    %c1_53 = arith.constant 1 : index
    %c0_54 = arith.constant 0 : index
    %c3_55 = arith.constant 3 : index
    %382 = vector.load %arg6[%c1_53, %c0_54, %c3_55] : memref<3x22x22xf32, #tpu.memory_space<vmem>>, vector<1x22x16xf32>
    %383 = vector.shape_cast %382 : vector<1x22x16xf32> to vector<22x16xf32>
    %c52 = arith.constant 52 : index
    %384 = memref.load %arg1[%c52] : memref<147xf32, #tpu.memory_space<smem>>
    %385 = vector.extract_strided_slice %383 {offsets = [0, 0], sizes = [16, 16], strides = [1, 1]} : vector<22x16xf32> to vector<16x16xf32>
    %386 = vector.broadcast %384 : f32 to vector<16x16xf32>
    %387 = arith.mulf %385, %386 : vector<16x16xf32>
    %388 = arith.addf %381, %387 : vector<16x16xf32>
    %c59 = arith.constant 59 : index
    %389 = memref.load %arg1[%c59] : memref<147xf32, #tpu.memory_space<smem>>
    %390 = vector.extract_strided_slice %383 {offsets = [1, 0], sizes = [16, 16], strides = [1, 1]} : vector<22x16xf32> to vector<16x16xf32>
    %391 = vector.broadcast %389 : f32 to vector<16x16xf32>
    %392 = arith.mulf %390, %391 : vector<16x16xf32>
    %393 = arith.addf %388, %392 : vector<16x16xf32>
    %c66 = arith.constant 66 : index
    %394 = memref.load %arg1[%c66] : memref<147xf32, #tpu.memory_space<smem>>
    %395 = vector.extract_strided_slice %383 {offsets = [2, 0], sizes = [16, 16], strides = [1, 1]} : vector<22x16xf32> to vector<16x16xf32>
    %396 = vector.broadcast %394 : f32 to vector<16x16xf32>
    %397 = arith.mulf %395, %396 : vector<16x16xf32>
    %398 = arith.addf %393, %397 : vector<16x16xf32>
    %c73 = arith.constant 73 : index
    %399 = memref.load %arg1[%c73] : memref<147xf32, #tpu.memory_space<smem>>
    %400 = vector.extract_strided_slice %383 {offsets = [3, 0], sizes = [16, 16], strides = [1, 1]} : vector<22x16xf32> to vector<16x16xf32>
    %401 = vector.broadcast %399 : f32 to vector<16x16xf32>
    %402 = arith.mulf %400, %401 : vector<16x16xf32>
    %403 = arith.addf %398, %402 : vector<16x16xf32>
    %c80 = arith.constant 80 : index
    %404 = memref.load %arg1[%c80] : memref<147xf32, #tpu.memory_space<smem>>
    %405 = vector.extract_strided_slice %383 {offsets = [4, 0], sizes = [16, 16], strides = [1, 1]} : vector<22x16xf32> to vector<16x16xf32>
    %406 = vector.broadcast %404 : f32 to vector<16x16xf32>
    %407 = arith.mulf %405, %406 : vector<16x16xf32>
    %408 = arith.addf %403, %407 : vector<16x16xf32>
    %c87 = arith.constant 87 : index
    %409 = memref.load %arg1[%c87] : memref<147xf32, #tpu.memory_space<smem>>
    %410 = vector.extract_strided_slice %383 {offsets = [5, 0], sizes = [16, 16], strides = [1, 1]} : vector<22x16xf32> to vector<16x16xf32>
    %411 = vector.broadcast %409 : f32 to vector<16x16xf32>
    %412 = arith.mulf %410, %411 : vector<16x16xf32>
    %413 = arith.addf %408, %412 : vector<16x16xf32>
    %c94 = arith.constant 94 : index
    %414 = memref.load %arg1[%c94] : memref<147xf32, #tpu.memory_space<smem>>
    %415 = vector.extract_strided_slice %383 {offsets = [6, 0], sizes = [16, 16], strides = [1, 1]} : vector<22x16xf32> to vector<16x16xf32>
    %416 = vector.broadcast %414 : f32 to vector<16x16xf32>
    %417 = arith.mulf %415, %416 : vector<16x16xf32>
    %418 = arith.addf %413, %417 : vector<16x16xf32>
    %c1_56 = arith.constant 1 : index
    %c0_57 = arith.constant 0 : index
    %c4_58 = arith.constant 4 : index
    %419 = vector.load %arg6[%c1_56, %c0_57, %c4_58] : memref<3x22x22xf32, #tpu.memory_space<vmem>>, vector<1x22x16xf32>
    %420 = vector.shape_cast %419 : vector<1x22x16xf32> to vector<22x16xf32>
    %c53 = arith.constant 53 : index
    %421 = memref.load %arg1[%c53] : memref<147xf32, #tpu.memory_space<smem>>
    %422 = vector.extract_strided_slice %420 {offsets = [0, 0], sizes = [16, 16], strides = [1, 1]} : vector<22x16xf32> to vector<16x16xf32>
    %423 = vector.broadcast %421 : f32 to vector<16x16xf32>
    %424 = arith.mulf %422, %423 : vector<16x16xf32>
    %425 = arith.addf %418, %424 : vector<16x16xf32>
    %c60 = arith.constant 60 : index
    %426 = memref.load %arg1[%c60] : memref<147xf32, #tpu.memory_space<smem>>
    %427 = vector.extract_strided_slice %420 {offsets = [1, 0], sizes = [16, 16], strides = [1, 1]} : vector<22x16xf32> to vector<16x16xf32>
    %428 = vector.broadcast %426 : f32 to vector<16x16xf32>
    %429 = arith.mulf %427, %428 : vector<16x16xf32>
    %430 = arith.addf %425, %429 : vector<16x16xf32>
    %c67 = arith.constant 67 : index
    %431 = memref.load %arg1[%c67] : memref<147xf32, #tpu.memory_space<smem>>
    %432 = vector.extract_strided_slice %420 {offsets = [2, 0], sizes = [16, 16], strides = [1, 1]} : vector<22x16xf32> to vector<16x16xf32>
    %433 = vector.broadcast %431 : f32 to vector<16x16xf32>
    %434 = arith.mulf %432, %433 : vector<16x16xf32>
    %435 = arith.addf %430, %434 : vector<16x16xf32>
    %c74 = arith.constant 74 : index
    %436 = memref.load %arg1[%c74] : memref<147xf32, #tpu.memory_space<smem>>
    %437 = vector.extract_strided_slice %420 {offsets = [3, 0], sizes = [16, 16], strides = [1, 1]} : vector<22x16xf32> to vector<16x16xf32>
    %438 = vector.broadcast %436 : f32 to vector<16x16xf32>
    %439 = arith.mulf %437, %438 : vector<16x16xf32>
    %440 = arith.addf %435, %439 : vector<16x16xf32>
    %c81 = arith.constant 81 : index
    %441 = memref.load %arg1[%c81] : memref<147xf32, #tpu.memory_space<smem>>
    %442 = vector.extract_strided_slice %420 {offsets = [4, 0], sizes = [16, 16], strides = [1, 1]} : vector<22x16xf32> to vector<16x16xf32>
    %443 = vector.broadcast %441 : f32 to vector<16x16xf32>
    %444 = arith.mulf %442, %443 : vector<16x16xf32>
    %445 = arith.addf %440, %444 : vector<16x16xf32>
    %c88 = arith.constant 88 : index
    %446 = memref.load %arg1[%c88] : memref<147xf32, #tpu.memory_space<smem>>
    %447 = vector.extract_strided_slice %420 {offsets = [5, 0], sizes = [16, 16], strides = [1, 1]} : vector<22x16xf32> to vector<16x16xf32>
    %448 = vector.broadcast %446 : f32 to vector<16x16xf32>
    %449 = arith.mulf %447, %448 : vector<16x16xf32>
    %450 = arith.addf %445, %449 : vector<16x16xf32>
    %c95 = arith.constant 95 : index
    %451 = memref.load %arg1[%c95] : memref<147xf32, #tpu.memory_space<smem>>
    %452 = vector.extract_strided_slice %420 {offsets = [6, 0], sizes = [16, 16], strides = [1, 1]} : vector<22x16xf32> to vector<16x16xf32>
    %453 = vector.broadcast %451 : f32 to vector<16x16xf32>
    %454 = arith.mulf %452, %453 : vector<16x16xf32>
    %455 = arith.addf %450, %454 : vector<16x16xf32>
    %c1_59 = arith.constant 1 : index
    %c0_60 = arith.constant 0 : index
    %c5_61 = arith.constant 5 : index
    %456 = vector.load %arg6[%c1_59, %c0_60, %c5_61] : memref<3x22x22xf32, #tpu.memory_space<vmem>>, vector<1x22x16xf32>
    %457 = vector.shape_cast %456 : vector<1x22x16xf32> to vector<22x16xf32>
    %c54 = arith.constant 54 : index
    %458 = memref.load %arg1[%c54] : memref<147xf32, #tpu.memory_space<smem>>
    %459 = vector.extract_strided_slice %457 {offsets = [0, 0], sizes = [16, 16], strides = [1, 1]} : vector<22x16xf32> to vector<16x16xf32>
    %460 = vector.broadcast %458 : f32 to vector<16x16xf32>
    %461 = arith.mulf %459, %460 : vector<16x16xf32>
    %462 = arith.addf %455, %461 : vector<16x16xf32>
    %c61 = arith.constant 61 : index
    %463 = memref.load %arg1[%c61] : memref<147xf32, #tpu.memory_space<smem>>
    %464 = vector.extract_strided_slice %457 {offsets = [1, 0], sizes = [16, 16], strides = [1, 1]} : vector<22x16xf32> to vector<16x16xf32>
    %465 = vector.broadcast %463 : f32 to vector<16x16xf32>
    %466 = arith.mulf %464, %465 : vector<16x16xf32>
    %467 = arith.addf %462, %466 : vector<16x16xf32>
    %c68 = arith.constant 68 : index
    %468 = memref.load %arg1[%c68] : memref<147xf32, #tpu.memory_space<smem>>
    %469 = vector.extract_strided_slice %457 {offsets = [2, 0], sizes = [16, 16], strides = [1, 1]} : vector<22x16xf32> to vector<16x16xf32>
    %470 = vector.broadcast %468 : f32 to vector<16x16xf32>
    %471 = arith.mulf %469, %470 : vector<16x16xf32>
    %472 = arith.addf %467, %471 : vector<16x16xf32>
    %c75 = arith.constant 75 : index
    %473 = memref.load %arg1[%c75] : memref<147xf32, #tpu.memory_space<smem>>
    %474 = vector.extract_strided_slice %457 {offsets = [3, 0], sizes = [16, 16], strides = [1, 1]} : vector<22x16xf32> to vector<16x16xf32>
    %475 = vector.broadcast %473 : f32 to vector<16x16xf32>
    %476 = arith.mulf %474, %475 : vector<16x16xf32>
    %477 = arith.addf %472, %476 : vector<16x16xf32>
    %c82 = arith.constant 82 : index
    %478 = memref.load %arg1[%c82] : memref<147xf32, #tpu.memory_space<smem>>
    %479 = vector.extract_strided_slice %457 {offsets = [4, 0], sizes = [16, 16], strides = [1, 1]} : vector<22x16xf32> to vector<16x16xf32>
    %480 = vector.broadcast %478 : f32 to vector<16x16xf32>
    %481 = arith.mulf %479, %480 : vector<16x16xf32>
    %482 = arith.addf %477, %481 : vector<16x16xf32>
    %c89 = arith.constant 89 : index
    %483 = memref.load %arg1[%c89] : memref<147xf32, #tpu.memory_space<smem>>
    %484 = vector.extract_strided_slice %457 {offsets = [5, 0], sizes = [16, 16], strides = [1, 1]} : vector<22x16xf32> to vector<16x16xf32>
    %485 = vector.broadcast %483 : f32 to vector<16x16xf32>
    %486 = arith.mulf %484, %485 : vector<16x16xf32>
    %487 = arith.addf %482, %486 : vector<16x16xf32>
    %c96 = arith.constant 96 : index
    %488 = memref.load %arg1[%c96] : memref<147xf32, #tpu.memory_space<smem>>
    %489 = vector.extract_strided_slice %457 {offsets = [6, 0], sizes = [16, 16], strides = [1, 1]} : vector<22x16xf32> to vector<16x16xf32>
    %490 = vector.broadcast %488 : f32 to vector<16x16xf32>
    %491 = arith.mulf %489, %490 : vector<16x16xf32>
    %492 = arith.addf %487, %491 : vector<16x16xf32>
    %c1_62 = arith.constant 1 : index
    %c0_63 = arith.constant 0 : index
    %c6_64 = arith.constant 6 : index
    %493 = vector.load %arg6[%c1_62, %c0_63, %c6_64] : memref<3x22x22xf32, #tpu.memory_space<vmem>>, vector<1x22x16xf32>
    %494 = vector.shape_cast %493 : vector<1x22x16xf32> to vector<22x16xf32>
    %c55 = arith.constant 55 : index
    %495 = memref.load %arg1[%c55] : memref<147xf32, #tpu.memory_space<smem>>
    %496 = vector.extract_strided_slice %494 {offsets = [0, 0], sizes = [16, 16], strides = [1, 1]} : vector<22x16xf32> to vector<16x16xf32>
    %497 = vector.broadcast %495 : f32 to vector<16x16xf32>
    %498 = arith.mulf %496, %497 : vector<16x16xf32>
    %499 = arith.addf %492, %498 : vector<16x16xf32>
    %c62 = arith.constant 62 : index
    %500 = memref.load %arg1[%c62] : memref<147xf32, #tpu.memory_space<smem>>
    %501 = vector.extract_strided_slice %494 {offsets = [1, 0], sizes = [16, 16], strides = [1, 1]} : vector<22x16xf32> to vector<16x16xf32>
    %502 = vector.broadcast %500 : f32 to vector<16x16xf32>
    %503 = arith.mulf %501, %502 : vector<16x16xf32>
    %504 = arith.addf %499, %503 : vector<16x16xf32>
    %c69 = arith.constant 69 : index
    %505 = memref.load %arg1[%c69] : memref<147xf32, #tpu.memory_space<smem>>
    %506 = vector.extract_strided_slice %494 {offsets = [2, 0], sizes = [16, 16], strides = [1, 1]} : vector<22x16xf32> to vector<16x16xf32>
    %507 = vector.broadcast %505 : f32 to vector<16x16xf32>
    %508 = arith.mulf %506, %507 : vector<16x16xf32>
    %509 = arith.addf %504, %508 : vector<16x16xf32>
    %c76 = arith.constant 76 : index
    %510 = memref.load %arg1[%c76] : memref<147xf32, #tpu.memory_space<smem>>
    %511 = vector.extract_strided_slice %494 {offsets = [3, 0], sizes = [16, 16], strides = [1, 1]} : vector<22x16xf32> to vector<16x16xf32>
    %512 = vector.broadcast %510 : f32 to vector<16x16xf32>
    %513 = arith.mulf %511, %512 : vector<16x16xf32>
    %514 = arith.addf %509, %513 : vector<16x16xf32>
    %c83 = arith.constant 83 : index
    %515 = memref.load %arg1[%c83] : memref<147xf32, #tpu.memory_space<smem>>
    %516 = vector.extract_strided_slice %494 {offsets = [4, 0], sizes = [16, 16], strides = [1, 1]} : vector<22x16xf32> to vector<16x16xf32>
    %517 = vector.broadcast %515 : f32 to vector<16x16xf32>
    %518 = arith.mulf %516, %517 : vector<16x16xf32>
    %519 = arith.addf %514, %518 : vector<16x16xf32>
    %c90 = arith.constant 90 : index
    %520 = memref.load %arg1[%c90] : memref<147xf32, #tpu.memory_space<smem>>
    %521 = vector.extract_strided_slice %494 {offsets = [5, 0], sizes = [16, 16], strides = [1, 1]} : vector<22x16xf32> to vector<16x16xf32>
    %522 = vector.broadcast %520 : f32 to vector<16x16xf32>
    %523 = arith.mulf %521, %522 : vector<16x16xf32>
    %524 = arith.addf %519, %523 : vector<16x16xf32>
    %c97 = arith.constant 97 : index
    %525 = memref.load %arg1[%c97] : memref<147xf32, #tpu.memory_space<smem>>
    %526 = vector.extract_strided_slice %494 {offsets = [6, 0], sizes = [16, 16], strides = [1, 1]} : vector<22x16xf32> to vector<16x16xf32>
    %527 = vector.broadcast %525 : f32 to vector<16x16xf32>
    %528 = arith.mulf %526, %527 : vector<16x16xf32>
    %529 = arith.addf %524, %528 : vector<16x16xf32>
    %c2_65 = arith.constant 2 : index
    %c0_66 = arith.constant 0 : index
    %c0_67 = arith.constant 0 : index
    %530 = vector.load %arg6[%c2_65, %c0_66, %c0_67] : memref<3x22x22xf32, #tpu.memory_space<vmem>>, vector<1x22x16xf32>
    %531 = vector.shape_cast %530 : vector<1x22x16xf32> to vector<22x16xf32>
    %c98 = arith.constant 98 : index
    %532 = memref.load %arg1[%c98] : memref<147xf32, #tpu.memory_space<smem>>
    %533 = vector.extract_strided_slice %531 {offsets = [0, 0], sizes = [16, 16], strides = [1, 1]} : vector<22x16xf32> to vector<16x16xf32>
    %534 = vector.broadcast %532 : f32 to vector<16x16xf32>
    %535 = arith.mulf %533, %534 : vector<16x16xf32>
    %536 = arith.addf %529, %535 : vector<16x16xf32>
    %c105 = arith.constant 105 : index
    %537 = memref.load %arg1[%c105] : memref<147xf32, #tpu.memory_space<smem>>
    %538 = vector.extract_strided_slice %531 {offsets = [1, 0], sizes = [16, 16], strides = [1, 1]} : vector<22x16xf32> to vector<16x16xf32>
    %539 = vector.broadcast %537 : f32 to vector<16x16xf32>
    %540 = arith.mulf %538, %539 : vector<16x16xf32>
    %541 = arith.addf %536, %540 : vector<16x16xf32>
    %c112 = arith.constant 112 : index
    %542 = memref.load %arg1[%c112] : memref<147xf32, #tpu.memory_space<smem>>
    %543 = vector.extract_strided_slice %531 {offsets = [2, 0], sizes = [16, 16], strides = [1, 1]} : vector<22x16xf32> to vector<16x16xf32>
    %544 = vector.broadcast %542 : f32 to vector<16x16xf32>
    %545 = arith.mulf %543, %544 : vector<16x16xf32>
    %546 = arith.addf %541, %545 : vector<16x16xf32>
    %c119 = arith.constant 119 : index
    %547 = memref.load %arg1[%c119] : memref<147xf32, #tpu.memory_space<smem>>
    %548 = vector.extract_strided_slice %531 {offsets = [3, 0], sizes = [16, 16], strides = [1, 1]} : vector<22x16xf32> to vector<16x16xf32>
    %549 = vector.broadcast %547 : f32 to vector<16x16xf32>
    %550 = arith.mulf %548, %549 : vector<16x16xf32>
    %551 = arith.addf %546, %550 : vector<16x16xf32>
    %c126 = arith.constant 126 : index
    %552 = memref.load %arg1[%c126] : memref<147xf32, #tpu.memory_space<smem>>
    %553 = vector.extract_strided_slice %531 {offsets = [4, 0], sizes = [16, 16], strides = [1, 1]} : vector<22x16xf32> to vector<16x16xf32>
    %554 = vector.broadcast %552 : f32 to vector<16x16xf32>
    %555 = arith.mulf %553, %554 : vector<16x16xf32>
    %556 = arith.addf %551, %555 : vector<16x16xf32>
    %c133 = arith.constant 133 : index
    %557 = memref.load %arg1[%c133] : memref<147xf32, #tpu.memory_space<smem>>
    %558 = vector.extract_strided_slice %531 {offsets = [5, 0], sizes = [16, 16], strides = [1, 1]} : vector<22x16xf32> to vector<16x16xf32>
    %559 = vector.broadcast %557 : f32 to vector<16x16xf32>
    %560 = arith.mulf %558, %559 : vector<16x16xf32>
    %561 = arith.addf %556, %560 : vector<16x16xf32>
    %c140 = arith.constant 140 : index
    %562 = memref.load %arg1[%c140] : memref<147xf32, #tpu.memory_space<smem>>
    %563 = vector.extract_strided_slice %531 {offsets = [6, 0], sizes = [16, 16], strides = [1, 1]} : vector<22x16xf32> to vector<16x16xf32>
    %564 = vector.broadcast %562 : f32 to vector<16x16xf32>
    %565 = arith.mulf %563, %564 : vector<16x16xf32>
    %566 = arith.addf %561, %565 : vector<16x16xf32>
    %c2_68 = arith.constant 2 : index
    %c0_69 = arith.constant 0 : index
    %c1_70 = arith.constant 1 : index
    %567 = vector.load %arg6[%c2_68, %c0_69, %c1_70] : memref<3x22x22xf32, #tpu.memory_space<vmem>>, vector<1x22x16xf32>
    %568 = vector.shape_cast %567 : vector<1x22x16xf32> to vector<22x16xf32>
    %c99 = arith.constant 99 : index
    %569 = memref.load %arg1[%c99] : memref<147xf32, #tpu.memory_space<smem>>
    %570 = vector.extract_strided_slice %568 {offsets = [0, 0], sizes = [16, 16], strides = [1, 1]} : vector<22x16xf32> to vector<16x16xf32>
    %571 = vector.broadcast %569 : f32 to vector<16x16xf32>
    %572 = arith.mulf %570, %571 : vector<16x16xf32>
    %573 = arith.addf %566, %572 : vector<16x16xf32>
    %c106 = arith.constant 106 : index
    %574 = memref.load %arg1[%c106] : memref<147xf32, #tpu.memory_space<smem>>
    %575 = vector.extract_strided_slice %568 {offsets = [1, 0], sizes = [16, 16], strides = [1, 1]} : vector<22x16xf32> to vector<16x16xf32>
    %576 = vector.broadcast %574 : f32 to vector<16x16xf32>
    %577 = arith.mulf %575, %576 : vector<16x16xf32>
    %578 = arith.addf %573, %577 : vector<16x16xf32>
    %c113 = arith.constant 113 : index
    %579 = memref.load %arg1[%c113] : memref<147xf32, #tpu.memory_space<smem>>
    %580 = vector.extract_strided_slice %568 {offsets = [2, 0], sizes = [16, 16], strides = [1, 1]} : vector<22x16xf32> to vector<16x16xf32>
    %581 = vector.broadcast %579 : f32 to vector<16x16xf32>
    %582 = arith.mulf %580, %581 : vector<16x16xf32>
    %583 = arith.addf %578, %582 : vector<16x16xf32>
    %c120 = arith.constant 120 : index
    %584 = memref.load %arg1[%c120] : memref<147xf32, #tpu.memory_space<smem>>
    %585 = vector.extract_strided_slice %568 {offsets = [3, 0], sizes = [16, 16], strides = [1, 1]} : vector<22x16xf32> to vector<16x16xf32>
    %586 = vector.broadcast %584 : f32 to vector<16x16xf32>
    %587 = arith.mulf %585, %586 : vector<16x16xf32>
    %588 = arith.addf %583, %587 : vector<16x16xf32>
    %c127 = arith.constant 127 : index
    %589 = memref.load %arg1[%c127] : memref<147xf32, #tpu.memory_space<smem>>
    %590 = vector.extract_strided_slice %568 {offsets = [4, 0], sizes = [16, 16], strides = [1, 1]} : vector<22x16xf32> to vector<16x16xf32>
    %591 = vector.broadcast %589 : f32 to vector<16x16xf32>
    %592 = arith.mulf %590, %591 : vector<16x16xf32>
    %593 = arith.addf %588, %592 : vector<16x16xf32>
    %c134 = arith.constant 134 : index
    %594 = memref.load %arg1[%c134] : memref<147xf32, #tpu.memory_space<smem>>
    %595 = vector.extract_strided_slice %568 {offsets = [5, 0], sizes = [16, 16], strides = [1, 1]} : vector<22x16xf32> to vector<16x16xf32>
    %596 = vector.broadcast %594 : f32 to vector<16x16xf32>
    %597 = arith.mulf %595, %596 : vector<16x16xf32>
    %598 = arith.addf %593, %597 : vector<16x16xf32>
    %c141 = arith.constant 141 : index
    %599 = memref.load %arg1[%c141] : memref<147xf32, #tpu.memory_space<smem>>
    %600 = vector.extract_strided_slice %568 {offsets = [6, 0], sizes = [16, 16], strides = [1, 1]} : vector<22x16xf32> to vector<16x16xf32>
    %601 = vector.broadcast %599 : f32 to vector<16x16xf32>
    %602 = arith.mulf %600, %601 : vector<16x16xf32>
    %603 = arith.addf %598, %602 : vector<16x16xf32>
    %c2_71 = arith.constant 2 : index
    %c0_72 = arith.constant 0 : index
    %c2_73 = arith.constant 2 : index
    %604 = vector.load %arg6[%c2_71, %c0_72, %c2_73] : memref<3x22x22xf32, #tpu.memory_space<vmem>>, vector<1x22x16xf32>
    %605 = vector.shape_cast %604 : vector<1x22x16xf32> to vector<22x16xf32>
    %c100 = arith.constant 100 : index
    %606 = memref.load %arg1[%c100] : memref<147xf32, #tpu.memory_space<smem>>
    %607 = vector.extract_strided_slice %605 {offsets = [0, 0], sizes = [16, 16], strides = [1, 1]} : vector<22x16xf32> to vector<16x16xf32>
    %608 = vector.broadcast %606 : f32 to vector<16x16xf32>
    %609 = arith.mulf %607, %608 : vector<16x16xf32>
    %610 = arith.addf %603, %609 : vector<16x16xf32>
    %c107 = arith.constant 107 : index
    %611 = memref.load %arg1[%c107] : memref<147xf32, #tpu.memory_space<smem>>
    %612 = vector.extract_strided_slice %605 {offsets = [1, 0], sizes = [16, 16], strides = [1, 1]} : vector<22x16xf32> to vector<16x16xf32>
    %613 = vector.broadcast %611 : f32 to vector<16x16xf32>
    %614 = arith.mulf %612, %613 : vector<16x16xf32>
    %615 = arith.addf %610, %614 : vector<16x16xf32>
    %c114 = arith.constant 114 : index
    %616 = memref.load %arg1[%c114] : memref<147xf32, #tpu.memory_space<smem>>
    %617 = vector.extract_strided_slice %605 {offsets = [2, 0], sizes = [16, 16], strides = [1, 1]} : vector<22x16xf32> to vector<16x16xf32>
    %618 = vector.broadcast %616 : f32 to vector<16x16xf32>
    %619 = arith.mulf %617, %618 : vector<16x16xf32>
    %620 = arith.addf %615, %619 : vector<16x16xf32>
    %c121 = arith.constant 121 : index
    %621 = memref.load %arg1[%c121] : memref<147xf32, #tpu.memory_space<smem>>
    %622 = vector.extract_strided_slice %605 {offsets = [3, 0], sizes = [16, 16], strides = [1, 1]} : vector<22x16xf32> to vector<16x16xf32>
    %623 = vector.broadcast %621 : f32 to vector<16x16xf32>
    %624 = arith.mulf %622, %623 : vector<16x16xf32>
    %625 = arith.addf %620, %624 : vector<16x16xf32>
    %c128 = arith.constant 128 : index
    %626 = memref.load %arg1[%c128] : memref<147xf32, #tpu.memory_space<smem>>
    %627 = vector.extract_strided_slice %605 {offsets = [4, 0], sizes = [16, 16], strides = [1, 1]} : vector<22x16xf32> to vector<16x16xf32>
    %628 = vector.broadcast %626 : f32 to vector<16x16xf32>
    %629 = arith.mulf %627, %628 : vector<16x16xf32>
    %630 = arith.addf %625, %629 : vector<16x16xf32>
    %c135 = arith.constant 135 : index
    %631 = memref.load %arg1[%c135] : memref<147xf32, #tpu.memory_space<smem>>
    %632 = vector.extract_strided_slice %605 {offsets = [5, 0], sizes = [16, 16], strides = [1, 1]} : vector<22x16xf32> to vector<16x16xf32>
    %633 = vector.broadcast %631 : f32 to vector<16x16xf32>
    %634 = arith.mulf %632, %633 : vector<16x16xf32>
    %635 = arith.addf %630, %634 : vector<16x16xf32>
    %c142 = arith.constant 142 : index
    %636 = memref.load %arg1[%c142] : memref<147xf32, #tpu.memory_space<smem>>
    %637 = vector.extract_strided_slice %605 {offsets = [6, 0], sizes = [16, 16], strides = [1, 1]} : vector<22x16xf32> to vector<16x16xf32>
    %638 = vector.broadcast %636 : f32 to vector<16x16xf32>
    %639 = arith.mulf %637, %638 : vector<16x16xf32>
    %640 = arith.addf %635, %639 : vector<16x16xf32>
    %c2_74 = arith.constant 2 : index
    %c0_75 = arith.constant 0 : index
    %c3_76 = arith.constant 3 : index
    %641 = vector.load %arg6[%c2_74, %c0_75, %c3_76] : memref<3x22x22xf32, #tpu.memory_space<vmem>>, vector<1x22x16xf32>
    %642 = vector.shape_cast %641 : vector<1x22x16xf32> to vector<22x16xf32>
    %c101 = arith.constant 101 : index
    %643 = memref.load %arg1[%c101] : memref<147xf32, #tpu.memory_space<smem>>
    %644 = vector.extract_strided_slice %642 {offsets = [0, 0], sizes = [16, 16], strides = [1, 1]} : vector<22x16xf32> to vector<16x16xf32>
    %645 = vector.broadcast %643 : f32 to vector<16x16xf32>
    %646 = arith.mulf %644, %645 : vector<16x16xf32>
    %647 = arith.addf %640, %646 : vector<16x16xf32>
    %c108 = arith.constant 108 : index
    %648 = memref.load %arg1[%c108] : memref<147xf32, #tpu.memory_space<smem>>
    %649 = vector.extract_strided_slice %642 {offsets = [1, 0], sizes = [16, 16], strides = [1, 1]} : vector<22x16xf32> to vector<16x16xf32>
    %650 = vector.broadcast %648 : f32 to vector<16x16xf32>
    %651 = arith.mulf %649, %650 : vector<16x16xf32>
    %652 = arith.addf %647, %651 : vector<16x16xf32>
    %c115 = arith.constant 115 : index
    %653 = memref.load %arg1[%c115] : memref<147xf32, #tpu.memory_space<smem>>
    %654 = vector.extract_strided_slice %642 {offsets = [2, 0], sizes = [16, 16], strides = [1, 1]} : vector<22x16xf32> to vector<16x16xf32>
    %655 = vector.broadcast %653 : f32 to vector<16x16xf32>
    %656 = arith.mulf %654, %655 : vector<16x16xf32>
    %657 = arith.addf %652, %656 : vector<16x16xf32>
    %c122 = arith.constant 122 : index
    %658 = memref.load %arg1[%c122] : memref<147xf32, #tpu.memory_space<smem>>
    %659 = vector.extract_strided_slice %642 {offsets = [3, 0], sizes = [16, 16], strides = [1, 1]} : vector<22x16xf32> to vector<16x16xf32>
    %660 = vector.broadcast %658 : f32 to vector<16x16xf32>
    %661 = arith.mulf %659, %660 : vector<16x16xf32>
    %662 = arith.addf %657, %661 : vector<16x16xf32>
    %c129 = arith.constant 129 : index
    %663 = memref.load %arg1[%c129] : memref<147xf32, #tpu.memory_space<smem>>
    %664 = vector.extract_strided_slice %642 {offsets = [4, 0], sizes = [16, 16], strides = [1, 1]} : vector<22x16xf32> to vector<16x16xf32>
    %665 = vector.broadcast %663 : f32 to vector<16x16xf32>
    %666 = arith.mulf %664, %665 : vector<16x16xf32>
    %667 = arith.addf %662, %666 : vector<16x16xf32>
    %c136 = arith.constant 136 : index
    %668 = memref.load %arg1[%c136] : memref<147xf32, #tpu.memory_space<smem>>
    %669 = vector.extract_strided_slice %642 {offsets = [5, 0], sizes = [16, 16], strides = [1, 1]} : vector<22x16xf32> to vector<16x16xf32>
    %670 = vector.broadcast %668 : f32 to vector<16x16xf32>
    %671 = arith.mulf %669, %670 : vector<16x16xf32>
    %672 = arith.addf %667, %671 : vector<16x16xf32>
    %c143 = arith.constant 143 : index
    %673 = memref.load %arg1[%c143] : memref<147xf32, #tpu.memory_space<smem>>
    %674 = vector.extract_strided_slice %642 {offsets = [6, 0], sizes = [16, 16], strides = [1, 1]} : vector<22x16xf32> to vector<16x16xf32>
    %675 = vector.broadcast %673 : f32 to vector<16x16xf32>
    %676 = arith.mulf %674, %675 : vector<16x16xf32>
    %677 = arith.addf %672, %676 : vector<16x16xf32>
    %c2_77 = arith.constant 2 : index
    %c0_78 = arith.constant 0 : index
    %c4_79 = arith.constant 4 : index
    %678 = vector.load %arg6[%c2_77, %c0_78, %c4_79] : memref<3x22x22xf32, #tpu.memory_space<vmem>>, vector<1x22x16xf32>
    %679 = vector.shape_cast %678 : vector<1x22x16xf32> to vector<22x16xf32>
    %c102 = arith.constant 102 : index
    %680 = memref.load %arg1[%c102] : memref<147xf32, #tpu.memory_space<smem>>
    %681 = vector.extract_strided_slice %679 {offsets = [0, 0], sizes = [16, 16], strides = [1, 1]} : vector<22x16xf32> to vector<16x16xf32>
    %682 = vector.broadcast %680 : f32 to vector<16x16xf32>
    %683 = arith.mulf %681, %682 : vector<16x16xf32>
    %684 = arith.addf %677, %683 : vector<16x16xf32>
    %c109 = arith.constant 109 : index
    %685 = memref.load %arg1[%c109] : memref<147xf32, #tpu.memory_space<smem>>
    %686 = vector.extract_strided_slice %679 {offsets = [1, 0], sizes = [16, 16], strides = [1, 1]} : vector<22x16xf32> to vector<16x16xf32>
    %687 = vector.broadcast %685 : f32 to vector<16x16xf32>
    %688 = arith.mulf %686, %687 : vector<16x16xf32>
    %689 = arith.addf %684, %688 : vector<16x16xf32>
    %c116 = arith.constant 116 : index
    %690 = memref.load %arg1[%c116] : memref<147xf32, #tpu.memory_space<smem>>
    %691 = vector.extract_strided_slice %679 {offsets = [2, 0], sizes = [16, 16], strides = [1, 1]} : vector<22x16xf32> to vector<16x16xf32>
    %692 = vector.broadcast %690 : f32 to vector<16x16xf32>
    %693 = arith.mulf %691, %692 : vector<16x16xf32>
    %694 = arith.addf %689, %693 : vector<16x16xf32>
    %c123 = arith.constant 123 : index
    %695 = memref.load %arg1[%c123] : memref<147xf32, #tpu.memory_space<smem>>
    %696 = vector.extract_strided_slice %679 {offsets = [3, 0], sizes = [16, 16], strides = [1, 1]} : vector<22x16xf32> to vector<16x16xf32>
    %697 = vector.broadcast %695 : f32 to vector<16x16xf32>
    %698 = arith.mulf %696, %697 : vector<16x16xf32>
    %699 = arith.addf %694, %698 : vector<16x16xf32>
    %c130 = arith.constant 130 : index
    %700 = memref.load %arg1[%c130] : memref<147xf32, #tpu.memory_space<smem>>
    %701 = vector.extract_strided_slice %679 {offsets = [4, 0], sizes = [16, 16], strides = [1, 1]} : vector<22x16xf32> to vector<16x16xf32>
    %702 = vector.broadcast %700 : f32 to vector<16x16xf32>
    %703 = arith.mulf %701, %702 : vector<16x16xf32>
    %704 = arith.addf %699, %703 : vector<16x16xf32>
    %c137 = arith.constant 137 : index
    %705 = memref.load %arg1[%c137] : memref<147xf32, #tpu.memory_space<smem>>
    %706 = vector.extract_strided_slice %679 {offsets = [5, 0], sizes = [16, 16], strides = [1, 1]} : vector<22x16xf32> to vector<16x16xf32>
    %707 = vector.broadcast %705 : f32 to vector<16x16xf32>
    %708 = arith.mulf %706, %707 : vector<16x16xf32>
    %709 = arith.addf %704, %708 : vector<16x16xf32>
    %c144 = arith.constant 144 : index
    %710 = memref.load %arg1[%c144] : memref<147xf32, #tpu.memory_space<smem>>
    %711 = vector.extract_strided_slice %679 {offsets = [6, 0], sizes = [16, 16], strides = [1, 1]} : vector<22x16xf32> to vector<16x16xf32>
    %712 = vector.broadcast %710 : f32 to vector<16x16xf32>
    %713 = arith.mulf %711, %712 : vector<16x16xf32>
    %714 = arith.addf %709, %713 : vector<16x16xf32>
    %c2_80 = arith.constant 2 : index
    %c0_81 = arith.constant 0 : index
    %c5_82 = arith.constant 5 : index
    %715 = vector.load %arg6[%c2_80, %c0_81, %c5_82] : memref<3x22x22xf32, #tpu.memory_space<vmem>>, vector<1x22x16xf32>
    %716 = vector.shape_cast %715 : vector<1x22x16xf32> to vector<22x16xf32>
    %c103 = arith.constant 103 : index
    %717 = memref.load %arg1[%c103] : memref<147xf32, #tpu.memory_space<smem>>
    %718 = vector.extract_strided_slice %716 {offsets = [0, 0], sizes = [16, 16], strides = [1, 1]} : vector<22x16xf32> to vector<16x16xf32>
    %719 = vector.broadcast %717 : f32 to vector<16x16xf32>
    %720 = arith.mulf %718, %719 : vector<16x16xf32>
    %721 = arith.addf %714, %720 : vector<16x16xf32>
    %c110 = arith.constant 110 : index
    %722 = memref.load %arg1[%c110] : memref<147xf32, #tpu.memory_space<smem>>
    %723 = vector.extract_strided_slice %716 {offsets = [1, 0], sizes = [16, 16], strides = [1, 1]} : vector<22x16xf32> to vector<16x16xf32>
    %724 = vector.broadcast %722 : f32 to vector<16x16xf32>
    %725 = arith.mulf %723, %724 : vector<16x16xf32>
    %726 = arith.addf %721, %725 : vector<16x16xf32>
    %c117 = arith.constant 117 : index
    %727 = memref.load %arg1[%c117] : memref<147xf32, #tpu.memory_space<smem>>
    %728 = vector.extract_strided_slice %716 {offsets = [2, 0], sizes = [16, 16], strides = [1, 1]} : vector<22x16xf32> to vector<16x16xf32>
    %729 = vector.broadcast %727 : f32 to vector<16x16xf32>
    %730 = arith.mulf %728, %729 : vector<16x16xf32>
    %731 = arith.addf %726, %730 : vector<16x16xf32>
    %c124 = arith.constant 124 : index
    %732 = memref.load %arg1[%c124] : memref<147xf32, #tpu.memory_space<smem>>
    %733 = vector.extract_strided_slice %716 {offsets = [3, 0], sizes = [16, 16], strides = [1, 1]} : vector<22x16xf32> to vector<16x16xf32>
    %734 = vector.broadcast %732 : f32 to vector<16x16xf32>
    %735 = arith.mulf %733, %734 : vector<16x16xf32>
    %736 = arith.addf %731, %735 : vector<16x16xf32>
    %c131 = arith.constant 131 : index
    %737 = memref.load %arg1[%c131] : memref<147xf32, #tpu.memory_space<smem>>
    %738 = vector.extract_strided_slice %716 {offsets = [4, 0], sizes = [16, 16], strides = [1, 1]} : vector<22x16xf32> to vector<16x16xf32>
    %739 = vector.broadcast %737 : f32 to vector<16x16xf32>
    %740 = arith.mulf %738, %739 : vector<16x16xf32>
    %741 = arith.addf %736, %740 : vector<16x16xf32>
    %c138 = arith.constant 138 : index
    %742 = memref.load %arg1[%c138] : memref<147xf32, #tpu.memory_space<smem>>
    %743 = vector.extract_strided_slice %716 {offsets = [5, 0], sizes = [16, 16], strides = [1, 1]} : vector<22x16xf32> to vector<16x16xf32>
    %744 = vector.broadcast %742 : f32 to vector<16x16xf32>
    %745 = arith.mulf %743, %744 : vector<16x16xf32>
    %746 = arith.addf %741, %745 : vector<16x16xf32>
    %c145 = arith.constant 145 : index
    %747 = memref.load %arg1[%c145] : memref<147xf32, #tpu.memory_space<smem>>
    %748 = vector.extract_strided_slice %716 {offsets = [6, 0], sizes = [16, 16], strides = [1, 1]} : vector<22x16xf32> to vector<16x16xf32>
    %749 = vector.broadcast %747 : f32 to vector<16x16xf32>
    %750 = arith.mulf %748, %749 : vector<16x16xf32>
    %751 = arith.addf %746, %750 : vector<16x16xf32>
    %c2_83 = arith.constant 2 : index
    %c0_84 = arith.constant 0 : index
    %c6_85 = arith.constant 6 : index
    %752 = vector.load %arg6[%c2_83, %c0_84, %c6_85] : memref<3x22x22xf32, #tpu.memory_space<vmem>>, vector<1x22x16xf32>
    %753 = vector.shape_cast %752 : vector<1x22x16xf32> to vector<22x16xf32>
    %c104 = arith.constant 104 : index
    %754 = memref.load %arg1[%c104] : memref<147xf32, #tpu.memory_space<smem>>
    %755 = vector.extract_strided_slice %753 {offsets = [0, 0], sizes = [16, 16], strides = [1, 1]} : vector<22x16xf32> to vector<16x16xf32>
    %756 = vector.broadcast %754 : f32 to vector<16x16xf32>
    %757 = arith.mulf %755, %756 : vector<16x16xf32>
    %758 = arith.addf %751, %757 : vector<16x16xf32>
    %c111 = arith.constant 111 : index
    %759 = memref.load %arg1[%c111] : memref<147xf32, #tpu.memory_space<smem>>
    %760 = vector.extract_strided_slice %753 {offsets = [1, 0], sizes = [16, 16], strides = [1, 1]} : vector<22x16xf32> to vector<16x16xf32>
    %761 = vector.broadcast %759 : f32 to vector<16x16xf32>
    %762 = arith.mulf %760, %761 : vector<16x16xf32>
    %763 = arith.addf %758, %762 : vector<16x16xf32>
    %c118 = arith.constant 118 : index
    %764 = memref.load %arg1[%c118] : memref<147xf32, #tpu.memory_space<smem>>
    %765 = vector.extract_strided_slice %753 {offsets = [2, 0], sizes = [16, 16], strides = [1, 1]} : vector<22x16xf32> to vector<16x16xf32>
    %766 = vector.broadcast %764 : f32 to vector<16x16xf32>
    %767 = arith.mulf %765, %766 : vector<16x16xf32>
    %768 = arith.addf %763, %767 : vector<16x16xf32>
    %c125 = arith.constant 125 : index
    %769 = memref.load %arg1[%c125] : memref<147xf32, #tpu.memory_space<smem>>
    %770 = vector.extract_strided_slice %753 {offsets = [3, 0], sizes = [16, 16], strides = [1, 1]} : vector<22x16xf32> to vector<16x16xf32>
    %771 = vector.broadcast %769 : f32 to vector<16x16xf32>
    %772 = arith.mulf %770, %771 : vector<16x16xf32>
    %773 = arith.addf %768, %772 : vector<16x16xf32>
    %c132 = arith.constant 132 : index
    %774 = memref.load %arg1[%c132] : memref<147xf32, #tpu.memory_space<smem>>
    %775 = vector.extract_strided_slice %753 {offsets = [4, 0], sizes = [16, 16], strides = [1, 1]} : vector<22x16xf32> to vector<16x16xf32>
    %776 = vector.broadcast %774 : f32 to vector<16x16xf32>
    %777 = arith.mulf %775, %776 : vector<16x16xf32>
    %778 = arith.addf %773, %777 : vector<16x16xf32>
    %c139 = arith.constant 139 : index
    %779 = memref.load %arg1[%c139] : memref<147xf32, #tpu.memory_space<smem>>
    %780 = vector.extract_strided_slice %753 {offsets = [5, 0], sizes = [16, 16], strides = [1, 1]} : vector<22x16xf32> to vector<16x16xf32>
    %781 = vector.broadcast %779 : f32 to vector<16x16xf32>
    %782 = arith.mulf %780, %781 : vector<16x16xf32>
    %783 = arith.addf %778, %782 : vector<16x16xf32>
    %c146 = arith.constant 146 : index
    %784 = memref.load %arg1[%c146] : memref<147xf32, #tpu.memory_space<smem>>
    %785 = vector.extract_strided_slice %753 {offsets = [6, 0], sizes = [16, 16], strides = [1, 1]} : vector<22x16xf32> to vector<16x16xf32>
    %786 = vector.broadcast %784 : f32 to vector<16x16xf32>
    %787 = arith.mulf %785, %786 : vector<16x16xf32>
    %788 = arith.addf %783, %787 : vector<16x16xf32>
    %c0_86 = arith.constant 0 : index
    %789 = memref.load %arg2[%c0_86] : memref<2xf32, #tpu.memory_space<smem>>
    %790 = vector.broadcast %789 : f32 to vector<16x16xf32>
    %791 = arith.mulf %788, %790 : vector<16x16xf32>
    %c1_87 = arith.constant 1 : index
    %792 = memref.load %arg2[%c1_87] : memref<2xf32, #tpu.memory_space<smem>>
    %793 = vector.broadcast %792 : f32 to vector<16x16xf32>
    %794 = arith.addf %791, %793 : vector<16x16xf32>
    %795 = arith.negf %794 : vector<16x16xf32>
    %796 = math.exp %795 : vector<16x16xf32>
    %cst_88 = arith.constant 1.000000e+00 : f32
    %797 = vector.broadcast %cst_88 : f32 to vector<16x16xf32>
    %798 = arith.addf %797, %796 : vector<16x16xf32>
    %799 = arith.divf %797, %798 : vector<16x16xf32>
    %c0_89 = arith.constant 0 : index
    %c0_90 = arith.constant 0 : index
    %c0_91 = arith.constant 0 : index
    %c0_92 = arith.constant 0 : index
    %800 = vector.load %arg5[%c0_89, %c0_90, %c0_91, %c0_92] : memref<1x1x16x16xf32, #tpu.memory_space<vmem>>, vector<1x1x16x16xf32>
    %801 = vector.shape_cast %800 : vector<1x1x16x16xf32> to vector<16x16xf32>
    %802 = vector.shape_cast %799 : vector<16x16xf32> to vector<1x1x16x16xf32>
    tpu.vector_store %arg5[%c0_89, %c0_90, %c0_91, %c0_92], %802 {strides = array<i32>} : memref<1x1x16x16xf32, #tpu.memory_space<vmem>>, vector<1x1x16x16xf32>,
    %cst_93 = arith.constant 1.000000e+00 : f32
    %803 = vector.broadcast %cst_93 : f32 to vector<16x16xf32>
    %804 = arith.addf %799, %803 : vector<16x16xf32>
    %805 = vector.shape_cast %804 : vector<16x16xf32> to vector<1x16x16xf32>
    %806 = vector.broadcast %805 : vector<1x16x16xf32> to vector<3x16x16xf32>
    %807 = arith.mulf %9, %806 : vector<3x16x16xf32>
    %c0_94 = arith.constant 0 : index
    %c0_95 = arith.constant 0 : index
    %c0_96 = arith.constant 0 : index
    %c0_97 = arith.constant 0 : index
    %808 = vector.load %arg4[%c0_94, %c0_95, %c0_96, %c0_97] : memref<1x3x16x16xf32, #tpu.memory_space<vmem>>, vector<1x3x16x16xf32>
    %809 = vector.shape_cast %808 : vector<1x3x16x16xf32> to vector<3x16x16xf32>
    %810 = vector.shape_cast %807 : vector<3x16x16xf32> to vector<1x3x16x16xf32>
    tpu.vector_store %arg4[%c0_94, %c0_95, %c0_96, %c0_97], %810 {strides = array<i32>} : memref<1x3x16x16xf32, #tpu.memory_space<vmem>>, vector<1x3x16x16xf32>,
    return
  }
  func.func @transform_0(%arg0: i32) -> i32 {
    %c0_i32 = arith.constant 0 : i32
    %c0_i32_0 = arith.constant 0 : i32
    return %c0_i32 : i32
  }
  func.func @transform_1(%arg0: i32) -> i32 {
    %c0_i32 = arith.constant 0 : i32
    %c0_i32_0 = arith.constant 0 : i32
    return %c0_i32 : i32
  }
  func.func @transform_2(%arg0: i32) -> (i32, i32, i32, i32) {
    %c0_i32 = arith.constant 0 : i32
    %c0_i32_0 = arith.constant 0 : i32
    %c0_i32_1 = arith.constant 0 : i32
    %c0_i32_2 = arith.constant 0 : i32
    return %arg0, %c0_i32, %c0_i32_0, %c0_i32_1 : i32, i32, i32, i32
  }
  func.func @transform_3(%arg0: i32) -> (i32, i32, i32, i32) {
    %c0_i32 = arith.constant 0 : i32
    %c0_i32_0 = arith.constant 0 : i32
    %c0_i32_1 = arith.constant 0 : i32
    %c0_i32_2 = arith.constant 0 : i32
    return %arg0, %c0_i32, %c0_i32_0, %c0_i32_1 : i32, i32, i32, i32
  }
  func.func @transform_4(%arg0: i32) -> (i32, i32, i32, i32) {
    %c0_i32 = arith.constant 0 : i32
    %c0_i32_0 = arith.constant 0 : i32
    %c0_i32_1 = arith.constant 0 : i32
    %c0_i32_2 = arith.constant 0 : i32
    return %arg0, %c0_i32, %c0_i32_0, %c0_i32_1 : i32, i32, i32, i32
  }
}

</mosaic_0001>

<llo_original>
// kernel: spatial_gate.1
$region0: #{spatial_gate.1}
  #allocation0 [shape = 'u32[]', space=smem, size = 0x4, offset = 0x4, fixed_abs, tag = 'smem constant byte address 0x4 - core index']
  #allocation1 [shape = 'u32[72,128]{1,0:T(1,128)}', space=vmem, size = 0x9000, scoped, tag = 'internal scratch']
  #allocation2 [shape = 'f32[3,22,22]{2,1,0:T(8,128)}', space=vmem, size = 0x9000, scoped, tag = 'scratch operand']
  %s0 = inlined_call_operand.vmem [shape: f32[147], index: 0, kind: input, shape index: {}]
  %s1 = inlined_call_operand.vmem [shape: f32[2], index: 1, kind: input, shape index: {}]
  %s2 = inlined_call_operand.hbm [shape: f32[2,3,16,16], index: 2, kind: input, shape index: {}]
  %s3 = inlined_call_operand.hbm [shape: f32[2,3,16,16], index: 3, kind: output, shape index: {0}]
  %s4 = inlined_call_operand.hbm [shape: f32[2,1,16,16], index: 4, kind: output, shape index: {1}]
  %5 = xla_tuple %s3, %s4
  %s6 = sld [smem:[#allocation0]]
  $region65: #{spatial_gate.1} parent=0
    _
  %s8 = ssub.s32 1, %s6
  %s9 = scalar_select 0, %s8, %s6
  $region1: #{spatial_gate.1} parent=0
    #allocation3 [shape = 'u8[1024]{0}', space=smem, size = 0x400, scoped, tag = 'input window, operand 0, single buffered']
    #allocation4 [shape = 's32[2]{0}', space=sflag, size = 0x8, scoped, tag = 'scoped memory for spatial_gate.1']
    #allocation5 [shape = 's32[2]{0}', space=sflag, size = 0x8, scoped, tag = 'scoped memory for spatial_gate.1']
    #allocation6 [shape = 's32[2]{0}', space=sflag, size = 0x8, scoped, tag = 'scoped memory for spatial_gate.1']
    #allocation7 [shape = 'u8[512]{0}', space=smem, size = 0x200, scoped, tag = 'input window, operand 1, single buffered']
    #allocation8 [shape = 's32[1]{0}', space=sflag, size = 0x4, scoped, tag = 'scoped memory for spatial_gate.1']
    #allocation9 [shape = 'u8[49152]{0}', space=vmem, size = 0xc000, scoped, tag = 'input window, operand 2']
    #allocation10 [shape = 'u8[49152]{0}', space=vmem, size = 0xc000, scoped, tag = 'output window, operand 0']
    #allocation11 [shape = 'u8[16384]{0}', space=vmem, size = 0x4000, scoped, tag = 'output window, operand 1']
    #allocation12 [shape = 's32[2]{0}', space=sflag, size = 0x8, scoped, tag = 'scoped memory for spatial_gate.1']
    %10 = vsyncpa [#allocation6], 0
    %11 = vsyncpa [#allocation8], 0
    %12 = vsyncpa [#allocation4], 0
    %s13 = scalar_lea.sflag [#allocation4], 1
    %14 = vsyncpa %s13, 0
    %15 = vsyncpa [#allocation5], 0
    %s16 = scalar_lea.sflag [#allocation5], 1
    %17 = vsyncpa %s16, 0
    %18 = vsyncpa [#allocation12], 0
    %s19 = scalar_lea.sflag [#allocation12], 1
    %20 = vsyncpa %s19, 0
    loop: start=0, step=1, limit=4
    $region2: #{spatial_gate.1} parent=1 // loop_pre_header
      _
    $region3: #{spatial_gate.1} parent=1 // loop_header
      %s22 = sphi 0, %s26
      %p23 = scmp.ge.s32.totalorder %s22, 4
      %s30 = sphi 0, %s30
      %s32 = sphi 0, %s30
      %s33 = sphi 0, %s32
      %s47 = sphi 0, %s33
      %s51 = sphi 0, %s51
      %s53 = sphi 0, %s51
      %s54 = sphi 0, %s53
      %s68 = sphi 0, %s54
      %s74 = sphi 0, %s76
      %s77 = sphi 0, %s74
      %s78 = sphi 0, %s77
      %s94 = sphi 0, %s78
      %s100 = sphi 0, %s102
      %s103 = sphi 0, %s100
      %s104 = sphi 0, %s103
      %s120 = sphi 0, %s104
      %s126 = sphi 0, %s128
      %s129 = sphi 0, %s126
      %s130 = sphi 0, %s129
      %s146 = sphi 0, %s130
    $region4: #{spatial_gate.1} parent=1 // loop_header_branch
      %25 = sbr.rel (%p23) target = $region8
    $region5: #{spatial_gate.1} parent=1 // loop_body
      %s27 = ssub.s32 %s22, 1
      %s28 = ssub.s32 %s22, 2
      %s29 = sadd.s32 %s22, 1
      %s31 = sadd.s32 %s30, 1
      %p34 = scmp.eq.s32.totalorder %s22, 1
      %p35 = scmp.ne.s32.totalorder %s30, %s32
      %p36 = scmp.eq.s32.totalorder %s22, 0
      %p37 = por %p35, %p36
      %p38 = scmp.ne.s32.totalorder %s30, %s32
      %p39 = scmp.eq.s32.totalorder %s27, 1
      %p40 = por %p38, %p39
      %p41 = scmp.ne.s32.totalorder %s32, %s33
      %p42 = scmp.eq.s32.totalorder %s27, 0
      %p43 = por %p41, %p42
      %p44 = scmp.ne.s32.totalorder %s32, %s33
      %p45 = scmp.eq.s32.totalorder %s28, 1
      %p46 = por %p44, %p45
      %p48 = scmp.ne.s32.totalorder %s33, %s47
      %p49 = scmp.eq.s32.totalorder %s28, 0
      %p50 = por %p48, %p49
      %s52 = sadd.s32 %s51, 1
      %p55 = scmp.eq.s32.totalorder %s22, 1
      %p56 = scmp.ne.s32.totalorder %s51, %s53
      %p57 = scmp.eq.s32.totalorder %s22, 0
      %p58 = por %p56, %p57
      %p59 = scmp.ne.s32.totalorder %s51, %s53
      %p60 = scmp.eq.s32.totalorder %s27, 1
      %p61 = por %p59, %p60
      %p62 = scmp.ne.s32.totalorder %s53, %s54
      %p63 = scmp.eq.s32.totalorder %s27, 0
      %p64 = por %p62, %p63
      %p65 = scmp.ne.s32.totalorder %s53, %s54
      %p66 = scmp.eq.s32.totalorder %s28, 1
      %p67 = por %p65, %p66
      %p69 = scmp.ne.s32.totalorder %s54, %s68
      %p70 = scmp.eq.s32.totalorder %s28, 0
      %p71 = por %p69, %p70
      %s72 = ssub.s32 %s22, %s29
      %p73 = scmp.eq.s32.totalorder %s72, 0
      %s75 = sadd.s32 %s74, 1
      %s76 = scalar_select %p73, %s74, %s75
      %p79 = pneg %p73
      %p80 = scmp.eq.s32.totalorder %s22, 1
      %p81 = por %p79, %p80
      %p82 = scmp.ne.s32.totalorder %s74, %s77
      %p83 = scmp.eq.s32.totalorder %s22, 0
      %p84 = por %p82, %p83
      %p85 = scmp.ne.s32.totalorder %s74, %s77
      %p86 = scmp.eq.s32.totalorder %s27, 1
      %p87 = por %p85, %p86
      %p88 = scmp.ne.s32.totalorder %s77, %s78
      %p89 = scmp.eq.s32.totalorder %s27, 0
      %p90 = por %p88, %p89
      %p91 = scmp.ne.s32.totalorder %s77, %s78
      %p92 = scmp.eq.s32.totalorder %s28, 1
      %p93 = por %p91, %p92
      %p95 = scmp.ne.s32.totalorder %s78, %s94
      %p96 = scmp.eq.s32.totalorder %s28, 0
      %p97 = por %p95, %p96
      %s98 = ssub.s32 %s22, %s29
      %p99 = scmp.eq.s32.totalorder %s98, 0
      %s101 = sadd.s32 %s100, 1
      %s102 = scalar_select %p99, %s100, %s101
      %p105 = pneg %p99
      %p106 = scmp.eq.s32.totalorder %s22, 1
      %p107 = por %p105, %p106
      %p108 = scmp.ne.s32.totalorder %s100, %s103
      %p109 = scmp.eq.s32.totalorder %s22, 0
      %p110 = por %p108, %p109
      %p111 = scmp.ne.s32.totalorder %s100, %s103
      %p112 = scmp.eq.s32.totalorder %s27, 1
      %p113 = por %p111, %p112
      %p114 = scmp.ne.s32.totalorder %s103, %s104
      %p115 = scmp.eq.s32.totalorder %s27, 0
      %p116 = por %p114, %p115
      %p117 = scmp.ne.s32.totalorder %s103, %s104
      %p118 = scmp.eq.s32.totalorder %s28, 1
      %p119 = por %p117, %p118
      %p121 = scmp.ne.s32.totalorder %s104, %s120
      %p122 = scmp.eq.s32.totalorder %s28, 0
      %p123 = por %p121, %p122
      %s124 = ssub.s32 %s22, %s29
      %p125 = scmp.eq.s32.totalorder %s124, 0
      %s127 = sadd.s32 %s126, 1
      %s128 = scalar_select %p125, %s126, %s127
      %p131 = pneg %p125
      %p132 = scmp.eq.s32.totalorder %s22, 1
      %p133 = por %p131, %p132
      %p134 = scmp.ne.s32.totalorder %s126, %s129
      %p135 = scmp.eq.s32.totalorder %s22, 0
      %p136 = por %p134, %p135
      %p137 = scmp.ne.s32.totalorder %s126, %s129
      %p138 = scmp.eq.s32.totalorder %s27, 1
      %p139 = por %p137, %p138
      %p140 = scmp.ne.s32.totalorder %s129, %s130
      %p141 = scmp.eq.s32.totalorder %s27, 0
      %p142 = por %p140, %p141
      %p143 = scmp.ne.s32.totalorder %s129, %s130
      %p144 = scmp.eq.s32.totalorder %s28, 1
      %p145 = por %p143, %p144
      %p147 = scmp.ne.s32.totalorder %s130, %s146
      %p148 = scmp.eq.s32.totalorder %s28, 0
      %p149 = por %p147, %p148
      %p150 = scmp.le.s32.totalorder 1, %s22
      %p151 = scmp.lt.s32.totalorder %s22, 3
      %p152 = pnand %p150, %p151
      %p153 = pneg %p152
      // Predicated region
      $region9: #{spatial_gate.1} parent=5 // pred_check
        _
      $region10: #{spatial_gate.1} parent=5 // pred_check_branch
        %155 = sbr.rel (%p152) target = $region12
      $region11: #{spatial_gate.1} parent=5 // pred_region
        %s156 = ssub.s32 %s22, 1
        // Predicated region
        $region13: #{spatial_gate.1} parent=11 // pred_check
          %p157 = pneg %p43
        $region14: #{spatial_gate.1} parent=11 // pred_check_branch
          %159 = sbr.rel (%p157) target = $region16
        $region15: #{spatial_gate.1} parent=11 // pred_region
          %161 = vsyncadd [#allocation6], 0
          %s163 = sshll.u32 %s0, 4
          %s164 = int_to_ptr.vmem [resolvable:$true] %s163
          %166 = dma.vmem_to_smem %s164, 32, [#allocation3], [#allocation6]
        $region16: #{spatial_gate.1} parent=11 // pred_fallthru
          _
        // Predicated region
        $region17: #{spatial_gate.1} parent=11 // pred_check
          %p167 = pneg %p64
        $region18: #{spatial_gate.1} parent=11 // pred_check_branch
          %169 = sbr.rel (%p167) target = $region20
        $region19: #{spatial_gate.1} parent=11 // pred_region
          %171 = vsyncadd [#allocation8], 0
          %s173 = sshll.u32 %s1, 4
          %s174 = int_to_ptr.vmem [resolvable:$true] %s173
          %176 = dma.vmem_to_smem %s174, 16, [#allocation7], [#allocation8]
        $region20: #{spatial_gate.1} parent=11 // pred_fallthru
          _
      $region12: #{spatial_gate.1} parent=5 // pred_fallthru
        _
      %p177 = scmp.lt.s32.totalorder %s22, 2
      // Predicated region
      $region21: #{spatial_gate.1} parent=5 // pred_check
        %p178 = pneg %p177
      $region22: #{spatial_gate.1} parent=5 // pred_check_branch
        %180 = sbr.rel (%p178) target = $region24
      $region23: #{spatial_gate.1} parent=5 // pred_region
        // Predicated region
        $region25: #{spatial_gate.1} parent=23 // pred_check
          %p181 = pneg %p84
        $region26: #{spatial_gate.1} parent=23 // pred_check_branch
          %183 = sbr.rel (%p181) target = $region28
        $region27: #{spatial_gate.1} parent=23 // pred_region
          %s184 = sand.u32 %s74, 1
          %s185 = scalar_lea.sflag [#allocation4], %s184
          %s186 = sand.u32 %s74, 1
          %s187 = smul.addr %s186, 48
          %s188 = scalar_lea.vmem [#allocation9], %s187
          %190 = vsyncadd %s185, 0
          %s191 = smul.addr %s22, 6
          %s192 = smul.addr %s191, 8
          %s193 = scalar_lea.hbm %s2, %s192
          %s194 = sshll.u32 %s193, 4
          %s195 = int_to_ptr.hbm [resolvable:$true] %s194
          %s196 = sshll.u32 %s188, 4
          %s197 = int_to_ptr.vmem [resolvable:$true] %s196
          %202 = dma.hbm_to_vmem [thread:$0]  %s195, 768, %s197, %s185, 128, 128, 8
        $region28: #{spatial_gate.1} parent=23 // pred_fallthru
          _
      $region24: #{spatial_gate.1} parent=5 // pred_fallthru
        _
      %p203 = scmp.le.s32.totalorder 1, %s22
      %p204 = scmp.lt.s32.totalorder %s22, 3
      %p205 = pnand %p203, %p204
      %p206 = pneg %p205
      // Predicated region
      $region29: #{spatial_gate.1} parent=5 // pred_check
        _
      $region30: #{spatial_gate.1} parent=5 // pred_check_branch
        %208 = sbr.rel (%p205) target = $region32
      $region31: #{spatial_gate.1} parent=5 // pred_region
        %s209 = ssub.s32 %s22, 1
        // Predicated region
        $region33: #{spatial_gate.1} parent=31 // pred_check
          %p210 = pneg %p43
        $region34: #{spatial_gate.1} parent=31 // pred_check_branch
          %212 = sbr.rel (%p210) target = $region36
        $region35: #{spatial_gate.1} parent=31 // pred_region
          %214 = dma.done [#allocation6], 32
        $region36: #{spatial_gate.1} parent=31 // pred_fallthru
          _
        // Predicated region
        $region37: #{spatial_gate.1} parent=31 // pred_check
          %p215 = pneg %p64
        $region38: #{spatial_gate.1} parent=31 // pred_check_branch
          %217 = sbr.rel (%p215) target = $region40
        $region39: #{spatial_gate.1} parent=31 // pred_region
          %219 = dma.done [#allocation8], 16
        $region40: #{spatial_gate.1} parent=31 // pred_fallthru
          _
        %s220 = sand.u32 %s77, 1
        %s221 = scalar_lea.sflag [#allocation4], %s220
        %s222 = sand.u32 %s77, 1
        %s223 = smul.addr %s222, 48
        %s224 = scalar_lea.vmem [#allocation9], %s223
        // Predicated region
        $region41: #{spatial_gate.1} parent=31 // pred_check
          %p225 = pneg %p90
        $region42: #{spatial_gate.1} parent=31 // pred_check_branch
          %227 = sbr.rel (%p225) target = $region44
        $region43: #{spatial_gate.1} parent=31 // pred_region
          %229 = dma.done %s221, 768
        $region44: #{spatial_gate.1} parent=31 // pred_fallthru
          _
        %230 = sfence
        %p231 = pneg %p43
        %p232 = pneg %p40
        %p233 = pneg %p64
        %p234 = pneg %p61
        %s235 = sand.u32 %s77, 1
        %s236 = scalar_lea.sflag [#allocation4], %s235
        %s237 = sand.u32 %s77, 1
        %s238 = smul.addr %s237, 48
        %s239 = scalar_lea.vmem [#allocation9], %s238
        %p240 = pneg %p90
        %p241 = pneg %p87
        %p242 = pneg %p116
        %p243 = pneg %p113
        %s244 = sand.u32 %s103, 1
        %s245 = scalar_lea.sflag [#allocation5], %s244
        %s246 = sand.u32 %s103, 1
        %s247 = smul.addr %s246, 48
        %s248 = scalar_lea.vmem [#allocation10], %s247
        %p249 = pneg %p142
        %p250 = pneg %p139
        %s251 = sand.u32 %s129, 1
        %s252 = scalar_lea.sflag [#allocation12], %s251
        %s253 = sand.u32 %s129, 1
        %s254 = smul.addr %s253, 16
        %s255 = scalar_lea.vmem [#allocation11], %s254
        %vm256 = vcmask 174080
        %257 = vst.msk [vmem:[#allocation2] sm:$0x7] %vm256, 0.0
        %258 = vst.msk [vmem:[#allocation2 + $0x18] sm:$0x7] %vm256, 0.0
        %259 = vst.msk [vmem:[#allocation2 + $0x30] sm:$0x7] %vm256, 0.0
        %260 = vst.msk [vmem:[#allocation2 + $0x13] sm:$0x7] %vm256, 0.0
        %261 = vst.msk [vmem:[#allocation2 + $0x2b] sm:$0x7] %vm256, 0.0
        %262 = vst.msk [vmem:[#allocation2 + $0x43] sm:$0x7] %vm256, 0.0
        %vm263 = vcmask 23552
        %264 = vst.msk [vmem:[#allocation2] sm:$0xff] %vm263, 0.0
        %265 = vst.msk [vmem:[#allocation2 + $0x8] sm:$0xff] %vm263, 0.0
        %vm266 = vcmask 21504
        %267 = vst.msk [vmem:[#allocation2 + $0x10] sm:$0x3f] %vm266, 0.0
        %268 = vst.msk [vmem:[#allocation2 + $0x18] sm:$0xff] %vm263, 0.0
        %269 = vst.msk [vmem:[#allocation2 + $0x20] sm:$0xff] %vm263, 0.0
        %270 = vst.msk [vmem:[#allocation2 + $0x28] sm:$0x3f] %vm266, 0.0
        %271 = vst.msk [vmem:[#allocation2 + $0x30] sm:$0xff] %vm263, 0.0
        %272 = vst.msk [vmem:[#allocation2 + $0x38] sm:$0xff] %vm263, 0.0
        %273 = vst.msk [vmem:[#allocation2 + $0x40] sm:$0x3f] %vm266, 0.0
        %vm274 = vcmask 179352
        %275 = vst.msk [vmem:[#allocation2] sm:$0xff] %vm274, 0.0
        %276 = vst.msk [vmem:[#allocation2 + $0x8] sm:$0xff] %vm274, 0.0
        %vm277 = vcmask 177304
        %278 = vst.msk [vmem:[#allocation2 + $0x10] sm:$0x3f] %vm277, 0.0
        %279 = vst.msk [vmem:[#allocation2 + $0x18] sm:$0xff] %vm274, 0.0
        %280 = vst.msk [vmem:[#allocation2 + $0x20] sm:$0xff] %vm274, 0.0
        %281 = vst.msk [vmem:[#allocation2 + $0x28] sm:$0x3f] %vm277, 0.0
        %282 = vst.msk [vmem:[#allocation2 + $0x30] sm:$0xff] %vm274, 0.0
        %283 = vst.msk [vmem:[#allocation2 + $0x38] sm:$0xff] %vm274, 0.0
        %284 = vst.msk [vmem:[#allocation2 + $0x40] sm:$0x3f] %vm277, 0.0
        %v285 = vld [vmem:[%s224] sm:$0xff]
        %v286 = vld [vmem:[%s224 + $0x8] sm:$0xff]
        %v287 = vld [vmem:[%s224 + $0x10] sm:$0xff]
        %v288 = vld [vmem:[%s224 + $0x18] sm:$0xff]
        %v289 = vld [vmem:[%s224 + $0x20] sm:$0xff]
        %v290 = vld [vmem:[%s224 + $0x28] sm:$0xff]
        %297 = vrot.lane.b32.xlu0 %v285, 3
        %v298 = vpop.permute.xlu0 %297
        %299 = vrot.lane.b32.xlu0 %v286, 3
        %v300 = vpop.permute.xlu0 %299
        %301 = vrot.lane.b32.xlu0 %v287, 3
        %v302 = vpop.permute.xlu0 %301
        %303 = vrot.lane.b32.xlu0 %v288, 3
        %v304 = vpop.permute.xlu0 %303
        %305 = vrot.lane.b32.xlu0 %v289, 3
        %v306 = vpop.permute.xlu0 %305
        %307 = vrot.lane.b32.xlu0 %v290, 3
        %v308 = vpop.permute.xlu0 %307
        %vm315 = vcmask 154648
        %316 = vst.msk [vmem:[#allocation2 + $0x3] sm:$0xff] %vm315, %v298
        %317 = vst.msk [vmem:[#allocation2 + $0xb] sm:$0xff] %vm315, %v300
        %318 = vst.msk [vmem:[#allocation2 + $0x1b] sm:$0xff] %vm315, %v302
        %319 = vst.msk [vmem:[#allocation2 + $0x23] sm:$0xff] %vm315, %v304
        %320 = vst.msk [vmem:[#allocation2 + $0x33] sm:$0xff] %vm315, %v306
        %321 = vst.msk [vmem:[#allocation2 + $0x3b] sm:$0xff] %vm315, %v308
        %v322 = vld [vmem:[#allocation2] sm:$0xff]
        %v323 = vld [vmem:[#allocation2 + $0x8] sm:$0xff]
        %v324 = vld [vmem:[#allocation2 + $0x10] sm:$0x3f]
        %s325 = sld [smem:[#allocation3]]
        %v326 = vstv %s325
        %v327 = vmul.f32 %v322, %v326
        %v328 = vmul.f32 %v323, %v326
        %v329 = vadd.f32 %v327, 0.0
        %v330 = vadd.f32 %v328, 0.0
        %s331 = sld [smem:[#allocation3 + $0x7]]
        %v332 = vstv %s331
        %v333 = vmul.f32 %v322, %v332
        %v334 = vmul.f32 %v323, %v332
        %v335 = vmul.f32 %v324, %v332
        %vm339 = vcmask 1046528
        %v340 = vrot.slane %v333, 1
        %v341 = vrot.slane %v334, 1
        %v342 = vsel %vm339, %v340, %v341
        %v343 = vrot.slane %v335, 1
        %v344 = vsel %vm339, %v341, %v343
        %v347 = vadd.f32 %v329, %v342
        %v348 = vadd.f32 %v330, %v344
        %s349 = sld [smem:[#allocation3 + $0xe]]
        %v350 = vstv %s349
        %v351 = vmul.f32 %v322, %v350
        %v352 = vmul.f32 %v323, %v350
        %v353 = vmul.f32 %v324, %v350
        %vm357 = vcmask 1045504
        %v358 = vrot.slane %v351, 2
        %v359 = vrot.slane %v352, 2
        %v360 = vsel %vm357, %v358, %v359
        %v361 = vrot.slane %v353, 2
        %v362 = vsel %vm357, %v359, %v361
        %v365 = vadd.f32 %v347, %v360
        %v366 = vadd.f32 %v348, %v362
        %s367 = sld [smem:[#allocation3 + $0x15]]
        %v368 = vstv %s367
        %v369 = vmul.f32 %v322, %v368
        %v370 = vmul.f32 %v323, %v368
        %v371 = vmul.f32 %v324, %v368
        %vm375 = vcmask 1044480
        %v376 = vrot.slane %v369, 3
        %v377 = vrot.slane %v370, 3
        %v378 = vsel %vm375, %v376, %v377
        %v379 = vrot.slane %v371, 3
        %v380 = vsel %vm375, %v377, %v379
        %v383 = vadd.f32 %v365, %v378
        %v384 = vadd.f32 %v366, %v380
        %s385 = sld [smem:[#allocation3 + $0x1c]]
        %v386 = vstv %s385
        %v387 = vmul.f32 %v322, %v386
        %v388 = vmul.f32 %v323, %v386
        %v389 = vmul.f32 %v324, %v386
        %vm393 = vcmask 1043456
        %v394 = vrot.slane %v387, 4
        %v395 = vrot.slane %v388, 4
        %v396 = vsel %vm393, %v394, %v395
        %v397 = vrot.slane %v389, 4
        %v398 = vsel %vm393, %v395, %v397
        %v401 = vadd.f32 %v383, %v396
        %v402 = vadd.f32 %v384, %v398
        %s403 = sld [smem:[#allocation3 + $0x23]]
        %v404 = vstv %s403
        %v405 = vmul.f32 %v322, %v404
        %v406 = vmul.f32 %v323, %v404
        %v407 = vmul.f32 %v324, %v404
        %vm411 = vcmask 1042432
        %v412 = vrot.slane %v405, 5
        %v413 = vrot.slane %v406, 5
        %v414 = vsel %vm411, %v412, %v413
        %v415 = vrot.slane %v407, 5
        %v416 = vsel %vm411, %v413, %v415
        %v419 = vadd.f32 %v401, %v414
        %v420 = vadd.f32 %v402, %v416
        %s421 = sld [smem:[#allocation3 + $0x2a]]
        %v422 = vstv %s421
        %v423 = vmul.f32 %v322, %v422
        %v424 = vmul.f32 %v323, %v422
        %v425 = vmul.f32 %v324, %v422
        %vm429 = vcmask 1041408
        %v430 = vrot.slane %v423, 6
        %v431 = vrot.slane %v424, 6
        %v432 = vsel %vm429, %v430, %v431
        %v433 = vrot.slane %v425, 6
        %v434 = vsel %vm429, %v431, %v433
        %v437 = vadd.f32 %v419, %v432
        %v438 = vadd.f32 %v420, %v434
        %s439 = sld [smem:[#allocation3 + $0x1]]
        %v440 = vstv %s439
        %v441 = vmul.f32 %v322, %v440
        %v442 = vmul.f32 %v323, %v440
        %445 = vrot.lane.b32.xlu0 %v441, 127
        %v446 = vpop.permute.xlu0 %445
        %447 = vrot.lane.b32.xlu0 %v442, 127
        %v448 = vpop.permute.xlu0 %447
        %v451 = vadd.f32 %v437, %v446
        %v452 = vadd.f32 %v438, %v448
        %s453 = sld [smem:[#allocation3 + $0x8]]
        %v454 = vstv %s453
        %v455 = vmul.f32 %v322, %v454
        %v456 = vmul.f32 %v323, %v454
        %v457 = vmul.f32 %v324, %v454
        %v461 = vrot.slane %v455, 1
        %v462 = vrot.slane %v456, 1
        %v463 = vsel %vm339, %v461, %v462
        %v464 = vrot.slane %v457, 1
        %v465 = vsel %vm339, %v462, %v464
        %466 = vrot.lane.b32.xlu0 %v463, 127
        %v467 = vpop.permute.xlu0 %466
        %468 = vrot.lane.b32.xlu0 %v465, 127
        %v469 = vpop.permute.xlu0 %468
        %v472 = vadd.f32 %v451, %v467
        %v473 = vadd.f32 %v452, %v469
        %s474 = sld [smem:[#allocation3 + $0xf]]
        %v475 = vstv %s474
        %v476 = vmul.f32 %v322, %v475
        %v477 = vmul.f32 %v323, %v475
        %v478 = vmul.f32 %v324, %v475
        %v482 = vrot.slane %v476, 2
        %v483 = vrot.slane %v477, 2
        %v484 = vsel %vm357, %v482, %v483
        %v485 = vrot.slane %v478, 2
        %v486 = vsel %vm357, %v483, %v485
        %487 = vrot.lane.b32.xlu0 %v484, 127
        %v488 = vpop.permute.xlu0 %487
        %489 = vrot.lane.b32.xlu0 %v486, 127
        %v490 = vpop.permute.xlu0 %489
        %v493 = vadd.f32 %v472, %v488
        %v494 = vadd.f32 %v473, %v490
        %s495 = sld [smem:[#allocation3 + $0x16]]
        %v496 = vstv %s495
        %v497 = vmul.f32 %v322, %v496
        %v498 = vmul.f32 %v323, %v496
        %v499 = vmul.f32 %v324, %v496
        %v503 = vrot.slane %v497, 3
        %v504 = vrot.slane %v498, 3
        %v505 = vsel %vm375, %v503, %v504
        %v506 = vrot.slane %v499, 3
        %v507 = vsel %vm375, %v504, %v506
        %508 = vrot.lane.b32.xlu0 %v505, 127
        %v509 = vpop.permute.xlu0 %508
        %510 = vrot.lane.b32.xlu0 %v507, 127
        %v511 = vpop.permute.xlu0 %510
        %v514 = vadd.f32 %v493, %v509
        %v515 = vadd.f32 %v494, %v511
        %s516 = sld [smem:[#allocation3 + $0x1d]]
        %v517 = vstv %s516
        %v518 = vmul.f32 %v322, %v517
        %v519 = vmul.f32 %v323, %v517
        %v520 = vmul.f32 %v324, %v517
        %v524 = vrot.slane %v518, 4
        %v525 = vrot.slane %v519, 4
        %v526 = vsel %vm393, %v524, %v525
        %v527 = vrot.slane %v520, 4
        %v528 = vsel %vm393, %v525, %v527
        %529 = vrot.lane.b32.xlu0 %v526, 127
        %v530 = vpop.permute.xlu0 %529
        %531 = vrot.lane.b32.xlu0 %v528, 127
        %v532 = vpop.permute.xlu0 %531
        %v535 = vadd.f32 %v514, %v530
        %v536 = vadd.f32 %v515, %v532
        %s537 = sld [smem:[#allocation3 + $0x24]]
        %v538 = vstv %s537
        %v539 = vmul.f32 %v322, %v538
        %v540 = vmul.f32 %v323, %v538
        %v541 = vmul.f32 %v324, %v538
        %v545 = vrot.slane %v539, 5
        %v546 = vrot.slane %v540, 5
        %v547 = vsel %vm411, %v545, %v546
        %v548 = vrot.slane %v541, 5
        %v549 = vsel %vm411, %v546, %v548
        %550 = vrot.lane.b32.xlu0 %v547, 127
        %v551 = vpop.permute.xlu0 %550
        %552 = vrot.lane.b32.xlu0 %v549, 127
        %v553 = vpop.permute.xlu0 %552
        %v556 = vadd.f32 %v535, %v551
        %v557 = vadd.f32 %v536, %v553
        %s558 = sld [smem:[#allocation3 + $0x2b]]
        %v559 = vstv %s558
        %v560 = vmul.f32 %v322, %v559
        %v561 = vmul.f32 %v323, %v559
        %v562 = vmul.f32 %v324, %v559
        %v566 = vrot.slane %v560, 6
        %v567 = vrot.slane %v561, 6
        %v568 = vsel %vm429, %v566, %v567
        %v569 = vrot.slane %v562, 6
        %v570 = vsel %vm429, %v567, %v569
        %571 = vrot.lane.b32.xlu0 %v568, 127
        %v572 = vpop.permute.xlu0 %571
        %573 = vrot.lane.b32.xlu0 %v570, 127
        %v574 = vpop.permute.xlu0 %573
        %v577 = vadd.f32 %v556, %v572
        %v578 = vadd.f32 %v557, %v574
        %s579 = sld [smem:[#allocation3 + $0x2]]
        %v580 = vstv %s579
        %v581 = vmul.f32 %v322, %v580
        %v582 = vmul.f32 %v323, %v580
        %585 = vrot.lane.b32.xlu0 %v581, 126
        %v586 = vpop.permute.xlu0 %585
        %587 = vrot.lane.b32.xlu0 %v582, 126
        %v588 = vpop.permute.xlu0 %587
        %v591 = vadd.f32 %v577, %v586
        %v592 = vadd.f32 %v578, %v588
        %s593 = sld [smem:[#allocation3 + $0x9]]
        %v594 = vstv %s593
        %v595 = vmul.f32 %v322, %v594
        %v596 = vmul.f32 %v323, %v594
        %v597 = vmul.f32 %v324, %v594
        %v601 = vrot.slane %v595, 1
        %v602 = vrot.slane %v596, 1
        %v603 = vsel %vm339, %v601, %v602
        %v604 = vrot.slane %v597, 1
        %v605 = vsel %vm339, %v602, %v604
        %606 = vrot.lane.b32.xlu0 %v603, 126
        %v607 = vpop.permute.xlu0 %606
        %608 = vrot.lane.b32.xlu0 %v605, 126
        %v609 = vpop.permute.xlu0 %608
        %v612 = vadd.f32 %v591, %v607
        %v613 = vadd.f32 %v592, %v609
        %s614 = sld [smem:[#allocation3 + $0x10]]
        %v615 = vstv %s614
        %v616 = vmul.f32 %v322, %v615
        %v617 = vmul.f32 %v323, %v615
        %v618 = vmul.f32 %v324, %v615
        %v622 = vrot.slane %v616, 2
        %v623 = vrot.slane %v617, 2
        %v624 = vsel %vm357, %v622, %v623
        %v625 = vrot.slane %v618, 2
        %v626 = vsel %vm357, %v623, %v625
        %627 = vrot.lane.b32.xlu0 %v624, 126
        %v628 = vpop.permute.xlu0 %627
        %629 = vrot.lane.b32.xlu0 %v626, 126
        %v630 = vpop.permute.xlu0 %629
        %v633 = vadd.f32 %v612, %v628
        %v634 = vadd.f32 %v613, %v630
        %s635 = sld [smem:[#allocation3 + $0x17]]
        %v636 = vstv %s635
        %v637 = vmul.f32 %v322, %v636
        %v638 = vmul.f32 %v323, %v636
        %v639 = vmul.f32 %v324, %v636
        %v643 = vrot.slane %v637, 3
        %v644 = vrot.slane %v638, 3
        %v645 = vsel %vm375, %v643, %v644
        %v646 = vrot.slane %v639, 3
        %v647 = vsel %vm375, %v644, %v646
        %648 = vrot.lane.b32.xlu0 %v645, 126
        %v649 = vpop.permute.xlu0 %648
        %650 = vrot.lane.b32.xlu0 %v647, 126
        %v651 = vpop.permute.xlu0 %650
        %v654 = vadd.f32 %v633, %v649
        %v655 = vadd.f32 %v634, %v651
        %s656 = sld [smem:[#allocation3 + $0x1e]]
        %v657 = vstv %s656
        %v658 = vmul.f32 %v322, %v657
        %v659 = vmul.f32 %v323, %v657
        %v660 = vmul.f32 %v324, %v657
        %v664 = vrot.slane %v658, 4
        %v665 = vrot.slane %v659, 4
        %v666 = vsel %vm393, %v664, %v665
        %v667 = vrot.slane %v660, 4
        %v668 = vsel %vm393, %v665, %v667
        %669 = vrot.lane.b32.xlu0 %v666, 126
        %v670 = vpop.permute.xlu0 %669
        %671 = vrot.lane.b32.xlu0 %v668, 126
        %v672 = vpop.permute.xlu0 %671
        %v675 = vadd.f32 %v654, %v670
        %v676 = vadd.f32 %v655, %v672
        %s677 = sld [smem:[#allocation3 + $0x25]]
        %v678 = vstv %s677
        %v679 = vmul.f32 %v322, %v678
        %v680 = vmul.f32 %v323, %v678
        %v681 = vmul.f32 %v324, %v678
        %v685 = vrot.slane %v679, 5
        %v686 = vrot.slane %v680, 5
        %v687 = vsel %vm411, %v685, %v686
        %v688 = vrot.slane %v681, 5
        %v689 = vsel %vm411, %v686, %v688
        %690 = vrot.lane.b32.xlu0 %v687, 126
        %v691 = vpop.permute.xlu0 %690
        %692 = vrot.lane.b32.xlu0 %v689, 126
        %v693 = vpop.permute.xlu0 %692
        %v696 = vadd.f32 %v675, %v691
        %v697 = vadd.f32 %v676, %v693
        %s698 = sld [smem:[#allocation3 + $0x2c]]
        %v699 = vstv %s698
        %v700 = vmul.f32 %v322, %v699
        %v701 = vmul.f32 %v323, %v699
        %v702 = vmul.f32 %v324, %v699
        %v706 = vrot.slane %v700, 6
        %v707 = vrot.slane %v701, 6
        %v708 = vsel %vm429, %v706, %v707
        %v709 = vrot.slane %v702, 6
        %v710 = vsel %vm429, %v707, %v709
        %711 = vrot.lane.b32.xlu0 %v708, 126
        %v712 = vpop.permute.xlu0 %711
        %713 = vrot.lane.b32.xlu0 %v710, 126
        %v714 = vpop.permute.xlu0 %713
        %v717 = vadd.f32 %v696, %v712
        %v718 = vadd.f32 %v697, %v714
        %s719 = sld [smem:[#allocation3 + $0x3]]
        %v720 = vstv %s719
        %v721 = vmul.f32 %v322, %v720
        %v722 = vmul.f32 %v323, %v720
        %725 = vrot.lane.b32.xlu0 %v721, 125
        %v726 = vpop.permute.xlu0 %725
        %727 = vrot.lane.b32.xlu0 %v722, 125
        %v728 = vpop.permute.xlu0 %727
        %v731 = vadd.f32 %v717, %v726
        %v732 = vadd.f32 %v718, %v728
        %s733 = sld [smem:[#allocation3 + $0xa]]
        %v734 = vstv %s733
        %v735 = vmul.f32 %v322, %v734
        %v736 = vmul.f32 %v323, %v734
        %v737 = vmul.f32 %v324, %v734
        %v741 = vrot.slane %v735, 1
        %v742 = vrot.slane %v736, 1
        %v743 = vsel %vm339, %v741, %v742
        %v744 = vrot.slane %v737, 1
        %v745 = vsel %vm339, %v742, %v744
        %746 = vrot.lane.b32.xlu0 %v743, 125
        %v747 = vpop.permute.xlu0 %746
        %748 = vrot.lane.b32.xlu0 %v745, 125
        %v749 = vpop.permute.xlu0 %748
        %v752 = vadd.f32 %v731, %v747
        %v753 = vadd.f32 %v732, %v749
        %s754 = sld [smem:[#allocation3 + $0x11]]
        %v755 = vstv %s754
        %v756 = vmul.f32 %v322, %v755
        %v757 = vmul.f32 %v323, %v755
        %v758 = vmul.f32 %v324, %v755
        %v762 = vrot.slane %v756, 2
        %v763 = vrot.slane %v757, 2
        %v764 = vsel %vm357, %v762, %v763
        %v765 = vrot.slane %v758, 2
        %v766 = vsel %vm357, %v763, %v765
        %767 = vrot.lane.b32.xlu0 %v764, 125
        %v768 = vpop.permute.xlu0 %767
        %769 = vrot.lane.b32.xlu0 %v766, 125
        %v770 = vpop.permute.xlu0 %769
        %v773 = vadd.f32 %v752, %v768
        %v774 = vadd.f32 %v753, %v770
        %s775 = sld [smem:[#allocation3 + $0x18]]
        %v776 = vstv %s775
        %v777 = vmul.f32 %v322, %v776
        %v778 = vmul.f32 %v323, %v776
        %v779 = vmul.f32 %v324, %v776
        %v783 = vrot.slane %v777, 3
        %v784 = vrot.slane %v778, 3
        %v785 = vsel %vm375, %v783, %v784
        %v786 = vrot.slane %v779, 3
        %v787 = vsel %vm375, %v784, %v786
        %788 = vrot.lane.b32.xlu0 %v785, 125
        %v789 = vpop.permute.xlu0 %788
        %790 = vrot.lane.b32.xlu0 %v787, 125
        %v791 = vpop.permute.xlu0 %790
        %v794 = vadd.f32 %v773, %v789
        %v795 = vadd.f32 %v774, %v791
        %s796 = sld [smem:[#allocation3 + $0x1f]]
        %v797 = vstv %s796
        %v798 = vmul.f32 %v322, %v797
        %v799 = vmul.f32 %v323, %v797
        %v800 = vmul.f32 %v324, %v797
        %v804 = vrot.slane %v798, 4
        %v805 = vrot.slane %v799, 4
        %v806 = vsel %vm393, %v804, %v805
        %v807 = vrot.slane %v800, 4
        %v808 = vsel %vm393, %v805, %v807
        %809 = vrot.lane.b32.xlu0 %v806, 125
        %v810 = vpop.permute.xlu0 %809
        %811 = vrot.lane.b32.xlu0 %v808, 125
        %v812 = vpop.permute.xlu0 %811
        %v815 = vadd.f32 %v794, %v810
        %v816 = vadd.f32 %v795, %v812
        %s817 = sld [smem:[#allocation3 + $0x26]]
        %v818 = vstv %s817
        %v819 = vmul.f32 %v322, %v818
        %v820 = vmul.f32 %v323, %v818
        %v821 = vmul.f32 %v324, %v818
        %v825 = vrot.slane %v819, 5
        %v826 = vrot.slane %v820, 5
        %v827 = vsel %vm411, %v825, %v826
        %v828 = vrot.slane %v821, 5
        %v829 = vsel %vm411, %v826, %v828
        %830 = vrot.lane.b32.xlu0 %v827, 125
        %v831 = vpop.permute.xlu0 %830
        %832 = vrot.lane.b32.xlu0 %v829, 125
        %v833 = vpop.permute.xlu0 %832
        %v836 = vadd.f32 %v815, %v831
        %v837 = vadd.f32 %v816, %v833
        %s838 = sld [smem:[#allocation3 + $0x2d]]
        %v839 = vstv %s838
        %v840 = vmul.f32 %v322, %v839
        %v841 = vmul.f32 %v323, %v839
        %v842 = vmul.f32 %v324, %v839
        %v846 = vrot.slane %v840, 6
        %v847 = vrot.slane %v841, 6
        %v848 = vsel %vm429, %v846, %v847
        %v849 = vrot.slane %v842, 6
        %v850 = vsel %vm429, %v847, %v849
        %851 = vrot.lane.b32.xlu0 %v848, 125
        %v852 = vpop.permute.xlu0 %851
        %853 = vrot.lane.b32.xlu0 %v850, 125
        %v854 = vpop.permute.xlu0 %853
        %v857 = vadd.f32 %v836, %v852
        %v858 = vadd.f32 %v837, %v854
        %s859 = sld [smem:[#allocation3 + $0x4]]
        %v860 = vstv %s859
        %v861 = vmul.f32 %v322, %v860
        %v862 = vmul.f32 %v323, %v860
        %865 = vrot.lane.b32.xlu0 %v861, 124
        %v866 = vpop.permute.xlu0 %865
        %867 = vrot.lane.b32.xlu0 %v862, 124
        %v868 = vpop.permute.xlu0 %867
        %v871 = vadd.f32 %v857, %v866
        %v872 = vadd.f32 %v858, %v868
        %s873 = sld [smem:[#allocation3 + $0xb]]
        %v874 = vstv %s873
        %v875 = vmul.f32 %v322, %v874
        %v876 = vmul.f32 %v323, %v874
        %v877 = vmul.f32 %v324, %v874
        %v881 = vrot.slane %v875, 1
        %v882 = vrot.slane %v876, 1
        %v883 = vsel %vm339, %v881, %v882
        %v884 = vrot.slane %v877, 1
        %v885 = vsel %vm339, %v882, %v884
        %886 = vrot.lane.b32.xlu0 %v883, 124
        %v887 = vpop.permute.xlu0 %886
        %888 = vrot.lane.b32.xlu0 %v885, 124
        %v889 = vpop.permute.xlu0 %888
        %v892 = vadd.f32 %v871, %v887
        %v893 = vadd.f32 %v872, %v889
        %s894 = sld [smem:[#allocation3 + $0x12]]
        %v895 = vstv %s894
        %v896 = vmul.f32 %v322, %v895
        %v897 = vmul.f32 %v323, %v895
        %v898 = vmul.f32 %v324, %v895
        %v902 = vrot.slane %v896, 2
        %v903 = vrot.slane %v897, 2
        %v904 = vsel %vm357, %v902, %v903
        %v905 = vrot.slane %v898, 2
        %v906 = vsel %vm357, %v903, %v905
        %907 = vrot.lane.b32.xlu0 %v904, 124
        %v908 = vpop.permute.xlu0 %907
        %909 = vrot.lane.b32.xlu0 %v906, 124
        %v910 = vpop.permute.xlu0 %909
        %v913 = vadd.f32 %v892, %v908
        %v914 = vadd.f32 %v893, %v910
        %s915 = sld [smem:[#allocation3 + $0x19]]
        %v916 = vstv %s915
        %v917 = vmul.f32 %v322, %v916
        %v918 = vmul.f32 %v323, %v916
        %v919 = vmul.f32 %v324, %v916
        %v923 = vrot.slane %v917, 3
        %v924 = vrot.slane %v918, 3
        %v925 = vsel %vm375, %v923, %v924
        %v926 = vrot.slane %v919, 3
        %v927 = vsel %vm375, %v924, %v926
        %928 = vrot.lane.b32.xlu0 %v925, 124
        %v929 = vpop.permute.xlu0 %928
        %930 = vrot.lane.b32.xlu0 %v927, 124
        %v931 = vpop.permute.xlu0 %930
        %v934 = vadd.f32 %v913, %v929
        %v935 = vadd.f32 %v914, %v931
        %s936 = sld [smem:[#allocation3 + $0x20]]
        %v937 = vstv %s936
        %v938 = vmul.f32 %v322, %v937
        %v939 = vmul.f32 %v323, %v937
        %v940 = vmul.f32 %v324, %v937
        %v944 = vrot.slane %v938, 4
        %v945 = vrot.slane %v939, 4
        %v946 = vsel %vm393, %v944, %v945
        %v947 = vrot.slane %v940, 4
        %v948 = vsel %vm393, %v945, %v947
        %949 = vrot.lane.b32.xlu0 %v946, 124
        %v950 = vpop.permute.xlu0 %949
        %951 = vrot.lane.b32.xlu0 %v948, 124
        %v952 = vpop.permute.xlu0 %951
        %v955 = vadd.f32 %v934, %v950
        %v956 = vadd.f32 %v935, %v952
        %s957 = sld [smem:[#allocation3 + $0x27]]
        %v958 = vstv %s957
        %v959 = vmul.f32 %v322, %v958
        %v960 = vmul.f32 %v323, %v958
        %v961 = vmul.f32 %v324, %v958
        %v965 = vrot.slane %v959, 5
        %v966 = vrot.slane %v960, 5
        %v967 = vsel %vm411, %v965, %v966
        %v968 = vrot.slane %v961, 5
        %v969 = vsel %vm411, %v966, %v968
        %970 = vrot.lane.b32.xlu0 %v967, 124
        %v971 = vpop.permute.xlu0 %970
        %972 = vrot.lane.b32.xlu0 %v969, 124
        %v973 = vpop.permute.xlu0 %972
        %v976 = vadd.f32 %v955, %v971
        %v977 = vadd.f32 %v956, %v973
        %s978 = sld [smem:[#allocation3 + $0x2e]]
        %v979 = vstv %s978
        %v980 = vmul.f32 %v322, %v979
        %v981 = vmul.f32 %v323, %v979
        %v982 = vmul.f32 %v324, %v979
        %v986 = vrot.slane %v980, 6
        %v987 = vrot.slane %v981, 6
        %v988 = vsel %vm429, %v986, %v987
        %v989 = vrot.slane %v982, 6
        %v990 = vsel %vm429, %v987, %v989
        %991 = vrot.lane.b32.xlu0 %v988, 124
        %v992 = vpop.permute.xlu0 %991
        %993 = vrot.lane.b32.xlu0 %v990, 124
        %v994 = vpop.permute.xlu0 %993
        %v997 = vadd.f32 %v976, %v992
        %v998 = vadd.f32 %v977, %v994
        %s999 = sld [smem:[#allocation3 + $0x5]]
        %v1000 = vstv %s999
        %v1001 = vmul.f32 %v322, %v1000
        %v1002 = vmul.f32 %v323, %v1000
        %1005 = vrot.lane.b32.xlu0 %v1001, 123
        %v1006 = vpop.permute.xlu0 %1005
        %1007 = vrot.lane.b32.xlu0 %v1002, 123
        %v1008 = vpop.permute.xlu0 %1007
        %v1011 = vadd.f32 %v997, %v1006
        %v1012 = vadd.f32 %v998, %v1008
        %s1013 = sld [smem:[#allocation3 + $0xc]]
        %v1014 = vstv %s1013
        %v1015 = vmul.f32 %v322, %v1014
        %v1016 = vmul.f32 %v323, %v1014
        %v1017 = vmul.f32 %v324, %v1014
        %v1021 = vrot.slane %v1015, 1
        %v1022 = vrot.slane %v1016, 1
        %v1023 = vsel %vm339, %v1021, %v1022
        %v1024 = vrot.slane %v1017, 1
        %v1025 = vsel %vm339, %v1022, %v1024
        %1026 = vrot.lane.b32.xlu0 %v1023, 123
        %v1027 = vpop.permute.xlu0 %1026
        %1028 = vrot.lane.b32.xlu0 %v1025, 123
        %v1029 = vpop.permute.xlu0 %1028
        %v1032 = vadd.f32 %v1011, %v1027
        %v1033 = vadd.f32 %v1012, %v1029
        %s1034 = sld [smem:[#allocation3 + $0x13]]
        %v1035 = vstv %s1034
        %v1036 = vmul.f32 %v322, %v1035
        %v1037 = vmul.f32 %v323, %v1035
        %v1038 = vmul.f32 %v324, %v1035
        %v1042 = vrot.slane %v1036, 2
        %v1043 = vrot.slane %v1037, 2
        %v1044 = vsel %vm357, %v1042, %v1043
        %v1045 = vrot.slane %v1038, 2
        %v1046 = vsel %vm357, %v1043, %v1045
        %1047 = vrot.lane.b32.xlu0 %v1044, 123
        %v1048 = vpop.permute.xlu0 %1047
        %1049 = vrot.lane.b32.xlu0 %v1046, 123
        %v1050 = vpop.permute.xlu0 %1049
        %v1053 = vadd.f32 %v1032, %v1048
        %v1054 = vadd.f32 %v1033, %v1050
        %s1055 = sld [smem:[#allocation3 + $0x1a]]
        %v1056 = vstv %s1055
        %v1057 = vmul.f32 %v322, %v1056
        %v1058 = vmul.f32 %v323, %v1056
        %v1059 = vmul.f32 %v324, %v1056
        %v1063 = vrot.slane %v1057, 3
        %v1064 = vrot.slane %v1058, 3
        %v1065 = vsel %vm375, %v1063, %v1064
        %v1066 = vrot.slane %v1059, 3
        %v1067 = vsel %vm375, %v1064, %v1066
        %1068 = vrot.lane.b32.xlu0 %v1065, 123
        %v1069 = vpop.permute.xlu0 %1068
        %1070 = vrot.lane.b32.xlu0 %v1067, 123
        %v1071 = vpop.permute.xlu0 %1070
        %v1074 = vadd.f32 %v1053, %v1069
        %v1075 = vadd.f32 %v1054, %v1071
        %s1076 = sld [smem:[#allocation3 + $0x21]]
        %v1077 = vstv %s1076
        %v1078 = vmul.f32 %v322, %v1077
        %v1079 = vmul.f32 %v323, %v1077
        %v1080 = vmul.f32 %v324, %v1077
        %v1084 = vrot.slane %v1078, 4
        %v1085 = vrot.slane %v1079, 4
        %v1086 = vsel %vm393, %v1084, %v1085
        %v1087 = vrot.slane %v1080, 4
        %v1088 = vsel %vm393, %v1085, %v1087
        %1089 = vrot.lane.b32.xlu0 %v1086, 123
        %v1090 = vpop.permute.xlu0 %1089
        %1091 = vrot.lane.b32.xlu0 %v1088, 123
        %v1092 = vpop.permute.xlu0 %1091
        %v1095 = vadd.f32 %v1074, %v1090
        %v1096 = vadd.f32 %v1075, %v1092
        %s1097 = sld [smem:[#allocation3 + $0x28]]
        %v1098 = vstv %s1097
        %v1099 = vmul.f32 %v322, %v1098
        %v1100 = vmul.f32 %v323, %v1098
        %v1101 = vmul.f32 %v324, %v1098
        %v1105 = vrot.slane %v1099, 5
        %v1106 = vrot.slane %v1100, 5
        %v1107 = vsel %vm411, %v1105, %v1106
        %v1108 = vrot.slane %v1101, 5
        %v1109 = vsel %vm411, %v1106, %v1108
        %1110 = vrot.lane.b32.xlu0 %v1107, 123
        %v1111 = vpop.permute.xlu0 %1110
        %1112 = vrot.lane.b32.xlu0 %v1109, 123
        %v1113 = vpop.permute.xlu0 %1112
        %v1116 = vadd.f32 %v1095, %v1111
        %v1117 = vadd.f32 %v1096, %v1113
        %s1118 = sld [smem:[#allocation3 + $0x2f]]
        %v1119 = vstv %s1118
        %v1120 = vmul.f32 %v322, %v1119
        %v1121 = vmul.f32 %v323, %v1119
        %v1122 = vmul.f32 %v324, %v1119
        %v1126 = vrot.slane %v1120, 6
        %v1127 = vrot.slane %v1121, 6
        %v1128 = vsel %vm429, %v1126, %v1127
        %v1129 = vrot.slane %v1122, 6
        %v1130 = vsel %vm429, %v1127, %v1129
        %1131 = vrot.lane.b32.xlu0 %v1128, 123
        %v1132 = vpop.permute.xlu0 %1131
        %1133 = vrot.lane.b32.xlu0 %v1130, 123
        %v1134 = vpop.permute.xlu0 %1133
        %v1137 = vadd.f32 %v1116, %v1132
        %v1138 = vadd.f32 %v1117, %v1134
        %s1139 = sld [smem:[#allocation3 + $0x6]]
        %v1140 = vstv %s1139
        %v1141 = vmul.f32 %v322, %v1140
        %v1142 = vmul.f32 %v323, %v1140
        %1145 = vrot.lane.b32.xlu0 %v1141, 122
        %v1146 = vpop.permute.xlu0 %1145
        %1147 = vrot.lane.b32.xlu0 %v1142, 122
        %v1148 = vpop.permute.xlu0 %1147
        %v1151 = vadd.f32 %v1137, %v1146
        %v1152 = vadd.f32 %v1138, %v1148
        %s1153 = sld [smem:[#allocation3 + $0xd]]
        %v1154 = vstv %s1153
        %v1155 = vmul.f32 %v322, %v1154
        %v1156 = vmul.f32 %v323, %v1154
        %v1157 = vmul.f32 %v324, %v1154
        %v1161 = vrot.slane %v1155, 1
        %v1162 = vrot.slane %v1156, 1
        %v1163 = vsel %vm339, %v1161, %v1162
        %v1164 = vrot.slane %v1157, 1
        %v1165 = vsel %vm339, %v1162, %v1164
        %1166 = vrot.lane.b32.xlu0 %v1163, 122
        %v1167 = vpop.permute.xlu0 %1166
        %1168 = vrot.lane.b32.xlu0 %v1165, 122
        %v1169 = vpop.permute.xlu0 %1168
        %v1172 = vadd.f32 %v1151, %v1167
        %v1173 = vadd.f32 %v1152, %v1169
        %s1174 = sld [smem:[#allocation3 + $0x14]]
        %v1175 = vstv %s1174
        %v1176 = vmul.f32 %v322, %v1175
        %v1177 = vmul.f32 %v323, %v1175
        %v1178 = vmul.f32 %v324, %v1175
        %v1182 = vrot.slane %v1176, 2
        %v1183 = vrot.slane %v1177, 2
        %v1184 = vsel %vm357, %v1182, %v1183
        %v1185 = vrot.slane %v1178, 2
        %v1186 = vsel %vm357, %v1183, %v1185
        %1187 = vrot.lane.b32.xlu0 %v1184, 122
        %v1188 = vpop.permute.xlu0 %1187
        %1189 = vrot.lane.b32.xlu0 %v1186, 122
        %v1190 = vpop.permute.xlu0 %1189
        %v1193 = vadd.f32 %v1172, %v1188
        %v1194 = vadd.f32 %v1173, %v1190
        %s1195 = sld [smem:[#allocation3 + $0x1b]]
        %v1196 = vstv %s1195
        %v1197 = vmul.f32 %v322, %v1196
        %v1198 = vmul.f32 %v323, %v1196
        %v1199 = vmul.f32 %v324, %v1196
        %v1203 = vrot.slane %v1197, 3
        %v1204 = vrot.slane %v1198, 3
        %v1205 = vsel %vm375, %v1203, %v1204
        %v1206 = vrot.slane %v1199, 3
        %v1207 = vsel %vm375, %v1204, %v1206
        %1208 = vrot.lane.b32.xlu0 %v1205, 122
        %v1209 = vpop.permute.xlu0 %1208
        %1210 = vrot.lane.b32.xlu0 %v1207, 122
        %v1211 = vpop.permute.xlu0 %1210
        %v1214 = vadd.f32 %v1193, %v1209
        %v1215 = vadd.f32 %v1194, %v1211
        %s1216 = sld [smem:[#allocation3 + $0x22]]
        %v1217 = vstv %s1216
        %v1218 = vmul.f32 %v322, %v1217
        %v1219 = vmul.f32 %v323, %v1217
        %v1220 = vmul.f32 %v324, %v1217
        %v1224 = vrot.slane %v1218, 4
        %v1225 = vrot.slane %v1219, 4
        %v1226 = vsel %vm393, %v1224, %v1225
        %v1227 = vrot.slane %v1220, 4
        %v1228 = vsel %vm393, %v1225, %v1227
        %1229 = vrot.lane.b32.xlu0 %v1226, 122
        %v1230 = vpop.permute.xlu0 %1229
        %1231 = vrot.lane.b32.xlu0 %v1228, 122
        %v1232 = vpop.permute.xlu0 %1231
        %v1235 = vadd.f32 %v1214, %v1230
        %v1236 = vadd.f32 %v1215, %v1232
        %s1237 = sld [smem:[#allocation3 + $0x29]]
        %v1238 = vstv %s1237
        %v1239 = vmul.f32 %v322, %v1238
        %v1240 = vmul.f32 %v323, %v1238
        %v1241 = vmul.f32 %v324, %v1238
        %v1245 = vrot.slane %v1239, 5
        %v1246 = vrot.slane %v1240, 5
        %v1247 = vsel %vm411, %v1245, %v1246
        %v1248 = vrot.slane %v1241, 5
        %v1249 = vsel %vm411, %v1246, %v1248
        %1250 = vrot.lane.b32.xlu0 %v1247, 122
        %v1251 = vpop.permute.xlu0 %1250
        %1252 = vrot.lane.b32.xlu0 %v1249, 122
        %v1253 = vpop.permute.xlu0 %1252
        %v1256 = vadd.f32 %v1235, %v1251
        %v1257 = vadd.f32 %v1236, %v1253
        %s1258 = sld [smem:[#allocation3 + $0x30]]
        %v1259 = vstv %s1258
        %v1260 = vmul.f32 %v322, %v1259
        %v1261 = vmul.f32 %v323, %v1259
        %v1262 = vmul.f32 %v324, %v1259
        %v1266 = vrot.slane %v1260, 6
        %v1267 = vrot.slane %v1261, 6
        %v1268 = vsel %vm429, %v1266, %v1267
        %v1269 = vrot.slane %v1262, 6
        %v1270 = vsel %vm429, %v1267, %v1269
        %1271 = vrot.lane.b32.xlu0 %v1268, 122
        %v1272 = vpop.permute.xlu0 %1271
        %1273 = vrot.lane.b32.xlu0 %v1270, 122
        %v1274 = vpop.permute.xlu0 %1273
        %v1277 = vadd.f32 %v1256, %v1272
        %v1278 = vadd.f32 %v1257, %v1274
        %s1279 = scalar_lea.vmem [#allocation2], 24
        %v1280 = vld [vmem:[%s1279] sm:$0xff]
        %v1281 = vld [vmem:[%s1279 + $0x8] sm:$0xff]
        %v1282 = vld [vmem:[%s1279 + $0x10] sm:$0x3f]
        %s1283 = sld [smem:[#allocation3 + $0x31]]
        %v1284 = vstv %s1283
        %v1285 = vmul.f32 %v1280, %v1284
        %v1286 = vmul.f32 %v1281, %v1284
        %v1287 = vadd.f32 %v1277, %v1285
        %v1288 = vadd.f32 %v1278, %v1286
        %s1289 = sld [smem:[#allocation3 + $0x38]]
        %v1290 = vstv %s1289
        %v1291 = vmul.f32 %v1280, %v1290
        %v1292 = vmul.f32 %v1281, %v1290
        %v1293 = vmul.f32 %v1282, %v1290
        %v1297 = vrot.slane %v1291, 1
        %v1298 = vrot.slane %v1292, 1
        %v1299 = vsel %vm339, %v1297, %v1298
        %v1300 = vrot.slane %v1293, 1
        %v1301 = vsel %vm339, %v1298, %v1300
        %v1304 = vadd.f32 %v1287, %v1299
        %v1305 = vadd.f32 %v1288, %v1301
        %s1306 = sld [smem:[#allocation3 + $0x3f]]
        %v1307 = vstv %s1306
        %v1308 = vmul.f32 %v1280, %v1307
        %v1309 = vmul.f32 %v1281, %v1307
        %v1310 = vmul.f32 %v1282, %v1307
        %v1314 = vrot.slane %v1308, 2
        %v1315 = vrot.slane %v1309, 2
        %v1316 = vsel %vm357, %v1314, %v1315
        %v1317 = vrot.slane %v1310, 2
        %v1318 = vsel %vm357, %v1315, %v1317
        %v1321 = vadd.f32 %v1304, %v1316
        %v1322 = vadd.f32 %v1305, %v1318
        %s1323 = sld [smem:[#allocation3 + $0x46]]
        %v1324 = vstv %s1323
        %v1325 = vmul.f32 %v1280, %v1324
        %v1326 = vmul.f32 %v1281, %v1324
        %v1327 = vmul.f32 %v1282, %v1324
        %v1331 = vrot.slane %v1325, 3
        %v1332 = vrot.slane %v1326, 3
        %v1333 = vsel %vm375, %v1331, %v1332
        %v1334 = vrot.slane %v1327, 3
        %v1335 = vsel %vm375, %v1332, %v1334
        %v1338 = vadd.f32 %v1321, %v1333
        %v1339 = vadd.f32 %v1322, %v1335
        %s1340 = sld [smem:[#allocation3 + $0x4d]]
        %v1341 = vstv %s1340
        %v1342 = vmul.f32 %v1280, %v1341
        %v1343 = vmul.f32 %v1281, %v1341
        %v1344 = vmul.f32 %v1282, %v1341
        %v1348 = vrot.slane %v1342, 4
        %v1349 = vrot.slane %v1343, 4
        %v1350 = vsel %vm393, %v1348, %v1349
        %v1351 = vrot.slane %v1344, 4
        %v1352 = vsel %vm393, %v1349, %v1351
        %v1355 = vadd.f32 %v1338, %v1350
        %v1356 = vadd.f32 %v1339, %v1352
        %s1357 = sld [smem:[#allocation3 + $0x54]]
        %v1358 = vstv %s1357
        %v1359 = vmul.f32 %v1280, %v1358
        %v1360 = vmul.f32 %v1281, %v1358
        %v1361 = vmul.f32 %v1282, %v1358
        %v1365 = vrot.slane %v1359, 5
        %v1366 = vrot.slane %v1360, 5
        %v1367 = vsel %vm411, %v1365, %v1366
        %v1368 = vrot.slane %v1361, 5
        %v1369 = vsel %vm411, %v1366, %v1368
        %v1372 = vadd.f32 %v1355, %v1367
        %v1373 = vadd.f32 %v1356, %v1369
        %s1374 = sld [smem:[#allocation3 + $0x5b]]
        %v1375 = vstv %s1374
        %v1376 = vmul.f32 %v1280, %v1375
        %v1377 = vmul.f32 %v1281, %v1375
        %v1378 = vmul.f32 %v1282, %v1375
        %v1382 = vrot.slane %v1376, 6
        %v1383 = vrot.slane %v1377, 6
        %v1384 = vsel %vm429, %v1382, %v1383
        %v1385 = vrot.slane %v1378, 6
        %v1386 = vsel %vm429, %v1383, %v1385
        %v1389 = vadd.f32 %v1372, %v1384
        %v1390 = vadd.f32 %v1373, %v1386
        %s1391 = sld [smem:[#allocation3 + $0x32]]
        %v1392 = vstv %s1391
        %v1393 = vmul.f32 %v1280, %v1392
        %v1394 = vmul.f32 %v1281, %v1392
        %1397 = vrot.lane.b32.xlu0 %v1393, 127
        %v1398 = vpop.permute.xlu0 %1397
        %1399 = vrot.lane.b32.xlu0 %v1394, 127
        %v1400 = vpop.permute.xlu0 %1399
        %v1403 = vadd.f32 %v1389, %v1398
        %v1404 = vadd.f32 %v1390, %v1400
        %s1405 = sld [smem:[#allocation3 + $0x39]]
        %v1406 = vstv %s1405
        %v1407 = vmul.f32 %v1280, %v1406
        %v1408 = vmul.f32 %v1281, %v1406
        %v1409 = vmul.f32 %v1282, %v1406
        %v1413 = vrot.slane %v1407, 1
        %v1414 = vrot.slane %v1408, 1
        %v1415 = vsel %vm339, %v1413, %v1414
        %v1416 = vrot.slane %v1409, 1
        %v1417 = vsel %vm339, %v1414, %v1416
        %1418 = vrot.lane.b32.xlu0 %v1415, 127
        %v1419 = vpop.permute.xlu0 %1418
        %1420 = vrot.lane.b32.xlu0 %v1417, 127
        %v1421 = vpop.permute.xlu0 %1420
        %v1424 = vadd.f32 %v1403, %v1419
        %v1425 = vadd.f32 %v1404, %v1421
        %s1426 = sld [smem:[#allocation3 + $0x40]]
        %v1427 = vstv %s1426
        %v1428 = vmul.f32 %v1280, %v1427
        %v1429 = vmul.f32 %v1281, %v1427
        %v1430 = vmul.f32 %v1282, %v1427
        %v1434 = vrot.slane %v1428, 2
        %v1435 = vrot.slane %v1429, 2
        %v1436 = vsel %vm357, %v1434, %v1435
        %v1437 = vrot.slane %v1430, 2
        %v1438 = vsel %vm357, %v1435, %v1437
        %1439 = vrot.lane.b32.xlu0 %v1436, 127
        %v1440 = vpop.permute.xlu0 %1439
        %1441 = vrot.lane.b32.xlu0 %v1438, 127
        %v1442 = vpop.permute.xlu0 %1441
        %v1445 = vadd.f32 %v1424, %v1440
        %v1446 = vadd.f32 %v1425, %v1442
        %s1447 = sld [smem:[#allocation3 + $0x47]]
        %v1448 = vstv %s1447
        %v1449 = vmul.f32 %v1280, %v1448
        %v1450 = vmul.f32 %v1281, %v1448
        %v1451 = vmul.f32 %v1282, %v1448
        %v1455 = vrot.slane %v1449, 3
        %v1456 = vrot.slane %v1450, 3
        %v1457 = vsel %vm375, %v1455, %v1456
        %v1458 = vrot.slane %v1451, 3
        %v1459 = vsel %vm375, %v1456, %v1458
        %1460 = vrot.lane.b32.xlu0 %v1457, 127
        %v1461 = vpop.permute.xlu0 %1460
        %1462 = vrot.lane.b32.xlu0 %v1459, 127
        %v1463 = vpop.permute.xlu0 %1462
        %v1466 = vadd.f32 %v1445, %v1461
        %v1467 = vadd.f32 %v1446, %v1463
        %s1468 = sld [smem:[#allocation3 + $0x4e]]
        %v1469 = vstv %s1468
        %v1470 = vmul.f32 %v1280, %v1469
        %v1471 = vmul.f32 %v1281, %v1469
        %v1472 = vmul.f32 %v1282, %v1469
        %v1476 = vrot.slane %v1470, 4
        %v1477 = vrot.slane %v1471, 4
        %v1478 = vsel %vm393, %v1476, %v1477
        %v1479 = vrot.slane %v1472, 4
        %v1480 = vsel %vm393, %v1477, %v1479
        %1481 = vrot.lane.b32.xlu0 %v1478, 127
        %v1482 = vpop.permute.xlu0 %1481
        %1483 = vrot.lane.b32.xlu0 %v1480, 127
        %v1484 = vpop.permute.xlu0 %1483
        %v1487 = vadd.f32 %v1466, %v1482
        %v1488 = vadd.f32 %v1467, %v1484
        %s1489 = sld [smem:[#allocation3 + $0x55]]
        %v1490 = vstv %s1489
        %v1491 = vmul.f32 %v1280, %v1490
        %v1492 = vmul.f32 %v1281, %v1490
        %v1493 = vmul.f32 %v1282, %v1490
        %v1497 = vrot.slane %v1491, 5
        %v1498 = vrot.slane %v1492, 5
        %v1499 = vsel %vm411, %v1497, %v1498
        %v1500 = vrot.slane %v1493, 5
        %v1501 = vsel %vm411, %v1498, %v1500
        %1502 = vrot.lane.b32.xlu0 %v1499, 127
        %v1503 = vpop.permute.xlu0 %1502
        %1504 = vrot.lane.b32.xlu0 %v1501, 127
        %v1505 = vpop.permute.xlu0 %1504
        %v1508 = vadd.f32 %v1487, %v1503
        %v1509 = vadd.f32 %v1488, %v1505
        %s1510 = sld [smem:[#allocation3 + $0x5c]]
        %v1511 = vstv %s1510
        %v1512 = vmul.f32 %v1280, %v1511
        %v1513 = vmul.f32 %v1281, %v1511
        %v1514 = vmul.f32 %v1282, %v1511
        %v1518 = vrot.slane %v1512, 6
        %v1519 = vrot.slane %v1513, 6
        %v1520 = vsel %vm429, %v1518, %v1519
        %v1521 = vrot.slane %v1514, 6
        %v1522 = vsel %vm429, %v1519, %v1521
        %1523 = vrot.lane.b32.xlu0 %v1520, 127
        %v1524 = vpop.permute.xlu0 %1523
        %1525 = vrot.lane.b32.xlu0 %v1522, 127
        %v1526 = vpop.permute.xlu0 %1525
        %v1529 = vadd.f32 %v1508, %v1524
        %v1530 = vadd.f32 %v1509, %v1526
        %s1531 = sld [smem:[#allocation3 + $0x33]]
        %v1532 = vstv %s1531
        %v1533 = vmul.f32 %v1280, %v1532
        %v1534 = vmul.f32 %v1281, %v1532
        %1537 = vrot.lane.b32.xlu0 %v1533, 126
        %v1538 = vpop.permute.xlu0 %1537
        %1539 = vrot.lane.b32.xlu0 %v1534, 126
        %v1540 = vpop.permute.xlu0 %1539
        %v1543 = vadd.f32 %v1529, %v1538
        %v1544 = vadd.f32 %v1530, %v1540
        %s1545 = sld [smem:[#allocation3 + $0x3a]]
        %v1546 = vstv %s1545
        %v1547 = vmul.f32 %v1280, %v1546
        %v1548 = vmul.f32 %v1281, %v1546
        %v1549 = vmul.f32 %v1282, %v1546
        %v1553 = vrot.slane %v1547, 1
        %v1554 = vrot.slane %v1548, 1
        %v1555 = vsel %vm339, %v1553, %v1554
        %v1556 = vrot.slane %v1549, 1
        %v1557 = vsel %vm339, %v1554, %v1556
        %1558 = vrot.lane.b32.xlu0 %v1555, 126
        %v1559 = vpop.permute.xlu0 %1558
        %1560 = vrot.lane.b32.xlu0 %v1557, 126
        %v1561 = vpop.permute.xlu0 %1560
        %v1564 = vadd.f32 %v1543, %v1559
        %v1565 = vadd.f32 %v1544, %v1561
        %s1566 = sld [smem:[#allocation3 + $0x41]]
        %v1567 = vstv %s1566
        %v1568 = vmul.f32 %v1280, %v1567
        %v1569 = vmul.f32 %v1281, %v1567
        %v1570 = vmul.f32 %v1282, %v1567
        %v1574 = vrot.slane %v1568, 2
        %v1575 = vrot.slane %v1569, 2
        %v1576 = vsel %vm357, %v1574, %v1575
        %v1577 = vrot.slane %v1570, 2
        %v1578 = vsel %vm357, %v1575, %v1577
        %1579 = vrot.lane.b32.xlu0 %v1576, 126
        %v1580 = vpop.permute.xlu0 %1579
        %1581 = vrot.lane.b32.xlu0 %v1578, 126
        %v1582 = vpop.permute.xlu0 %1581
        %v1585 = vadd.f32 %v1564, %v1580
        %v1586 = vadd.f32 %v1565, %v1582
        %s1587 = sld [smem:[#allocation3 + $0x48]]
        %v1588 = vstv %s1587
        %v1589 = vmul.f32 %v1280, %v1588
        %v1590 = vmul.f32 %v1281, %v1588
        %v1591 = vmul.f32 %v1282, %v1588
        %v1595 = vrot.slane %v1589, 3
        %v1596 = vrot.slane %v1590, 3
        %v1597 = vsel %vm375, %v1595, %v1596
        %v1598 = vrot.slane %v1591, 3
        %v1599 = vsel %vm375, %v1596, %v1598
        %1600 = vrot.lane.b32.xlu0 %v1597, 126
        %v1601 = vpop.permute.xlu0 %1600
        %1602 = vrot.lane.b32.xlu0 %v1599, 126
        %v1603 = vpop.permute.xlu0 %1602
        %v1606 = vadd.f32 %v1585, %v1601
        %v1607 = vadd.f32 %v1586, %v1603
        %s1608 = sld [smem:[#allocation3 + $0x4f]]
        %v1609 = vstv %s1608
        %v1610 = vmul.f32 %v1280, %v1609
        %v1611 = vmul.f32 %v1281, %v1609
        %v1612 = vmul.f32 %v1282, %v1609
        %v1616 = vrot.slane %v1610, 4
        %v1617 = vrot.slane %v1611, 4
        %v1618 = vsel %vm393, %v1616, %v1617
        %v1619 = vrot.slane %v1612, 4
        %v1620 = vsel %vm393, %v1617, %v1619
        %1621 = vrot.lane.b32.xlu0 %v1618, 126
        %v1622 = vpop.permute.xlu0 %1621
        %1623 = vrot.lane.b32.xlu0 %v1620, 126
        %v1624 = vpop.permute.xlu0 %1623
        %v1627 = vadd.f32 %v1606, %v1622
        %v1628 = vadd.f32 %v1607, %v1624
        %s1629 = sld [smem:[#allocation3 + $0x56]]
        %v1630 = vstv %s1629
        %v1631 = vmul.f32 %v1280, %v1630
        %v1632 = vmul.f32 %v1281, %v1630
        %v1633 = vmul.f32 %v1282, %v1630
        %v1637 = vrot.slane %v1631, 5
        %v1638 = vrot.slane %v1632, 5
        %v1639 = vsel %vm411, %v1637, %v1638
        %v1640 = vrot.slane %v1633, 5
        %v1641 = vsel %vm411, %v1638, %v1640
        %1642 = vrot.lane.b32.xlu0 %v1639, 126
        %v1643 = vpop.permute.xlu0 %1642
        %1644 = vrot.lane.b32.xlu0 %v1641, 126
        %v1645 = vpop.permute.xlu0 %1644
        %v1648 = vadd.f32 %v1627, %v1643
        %v1649 = vadd.f32 %v1628, %v1645
        %s1650 = sld [smem:[#allocation3 + $0x5d]]
        %v1651 = vstv %s1650
        %v1652 = vmul.f32 %v1280, %v1651
        %v1653 = vmul.f32 %v1281, %v1651
        %v1654 = vmul.f32 %v1282, %v1651
        %v1658 = vrot.slane %v1652, 6
        %v1659 = vrot.slane %v1653, 6
        %v1660 = vsel %vm429, %v1658, %v1659
        %v1661 = vrot.slane %v1654, 6
        %v1662 = vsel %vm429, %v1659, %v1661
        %1663 = vrot.lane.b32.xlu0 %v1660, 126
        %v1664 = vpop.permute.xlu0 %1663
        %1665 = vrot.lane.b32.xlu0 %v1662, 126
        %v1666 = vpop.permute.xlu0 %1665
        %v1669 = vadd.f32 %v1648, %v1664
        %v1670 = vadd.f32 %v1649, %v1666
        %s1671 = sld [smem:[#allocation3 + $0x34]]
        %v1672 = vstv %s1671
        %v1673 = vmul.f32 %v1280, %v1672
        %v1674 = vmul.f32 %v1281, %v1672
        %1677 = vrot.lane.b32.xlu0 %v1673, 125
        %v1678 = vpop.permute.xlu0 %1677
        %1679 = vrot.lane.b32.xlu0 %v1674, 125
        %v1680 = vpop.permute.xlu0 %1679
        %v1683 = vadd.f32 %v1669, %v1678
        %v1684 = vadd.f32 %v1670, %v1680
        %s1685 = sld [smem:[#allocation3 + $0x3b]]
        %v1686 = vstv %s1685
        %v1687 = vmul.f32 %v1280, %v1686
        %v1688 = vmul.f32 %v1281, %v1686
        %v1689 = vmul.f32 %v1282, %v1686
        %v1693 = vrot.slane %v1687, 1
        %v1694 = vrot.slane %v1688, 1
        %v1695 = vsel %vm339, %v1693, %v1694
        %v1696 = vrot.slane %v1689, 1
        %v1697 = vsel %vm339, %v1694, %v1696
        %1698 = vrot.lane.b32.xlu0 %v1695, 125
        %v1699 = vpop.permute.xlu0 %1698
        %1700 = vrot.lane.b32.xlu0 %v1697, 125
        %v1701 = vpop.permute.xlu0 %1700
        %v1704 = vadd.f32 %v1683, %v1699
        %v1705 = vadd.f32 %v1684, %v1701
        %s1706 = sld [smem:[#allocation3 + $0x42]]
        %v1707 = vstv %s1706
        %v1708 = vmul.f32 %v1280, %v1707
        %v1709 = vmul.f32 %v1281, %v1707
        %v1710 = vmul.f32 %v1282, %v1707
        %v1714 = vrot.slane %v1708, 2
        %v1715 = vrot.slane %v1709, 2
        %v1716 = vsel %vm357, %v1714, %v1715
        %v1717 = vrot.slane %v1710, 2
        %v1718 = vsel %vm357, %v1715, %v1717
        %1719 = vrot.lane.b32.xlu0 %v1716, 125
        %v1720 = vpop.permute.xlu0 %1719
        %1721 = vrot.lane.b32.xlu0 %v1718, 125
        %v1722 = vpop.permute.xlu0 %1721
        %v1725 = vadd.f32 %v1704, %v1720
        %v1726 = vadd.f32 %v1705, %v1722
        %s1727 = sld [smem:[#allocation3 + $0x49]]
        %v1728 = vstv %s1727
        %v1729 = vmul.f32 %v1280, %v1728
        %v1730 = vmul.f32 %v1281, %v1728
        %v1731 = vmul.f32 %v1282, %v1728
        %v1735 = vrot.slane %v1729, 3
        %v1736 = vrot.slane %v1730, 3
        %v1737 = vsel %vm375, %v1735, %v1736
        %v1738 = vrot.slane %v1731, 3
        %v1739 = vsel %vm375, %v1736, %v1738
        %1740 = vrot.lane.b32.xlu0 %v1737, 125
        %v1741 = vpop.permute.xlu0 %1740
        %1742 = vrot.lane.b32.xlu0 %v1739, 125
        %v1743 = vpop.permute.xlu0 %1742
        %v1746 = vadd.f32 %v1725, %v1741
        %v1747 = vadd.f32 %v1726, %v1743
        %s1748 = sld [smem:[#allocation3 + $0x50]]
        %v1749 = vstv %s1748
        %v1750 = vmul.f32 %v1280, %v1749
        %v1751 = vmul.f32 %v1281, %v1749
        %v1752 = vmul.f32 %v1282, %v1749
        %v1756 = vrot.slane %v1750, 4
        %v1757 = vrot.slane %v1751, 4
        %v1758 = vsel %vm393, %v1756, %v1757
        %v1759 = vrot.slane %v1752, 4
        %v1760 = vsel %vm393, %v1757, %v1759
        %1761 = vrot.lane.b32.xlu0 %v1758, 125
        %v1762 = vpop.permute.xlu0 %1761
        %1763 = vrot.lane.b32.xlu0 %v1760, 125
        %v1764 = vpop.permute.xlu0 %1763
        %v1767 = vadd.f32 %v1746, %v1762
        %v1768 = vadd.f32 %v1747, %v1764
        %s1769 = sld [smem:[#allocation3 + $0x57]]
        %v1770 = vstv %s1769
        %v1771 = vmul.f32 %v1280, %v1770
        %v1772 = vmul.f32 %v1281, %v1770
        %v1773 = vmul.f32 %v1282, %v1770
        %v1777 = vrot.slane %v1771, 5
        %v1778 = vrot.slane %v1772, 5
        %v1779 = vsel %vm411, %v1777, %v1778
        %v1780 = vrot.slane %v1773, 5
        %v1781 = vsel %vm411, %v1778, %v1780
        %1782 = vrot.lane.b32.xlu0 %v1779, 125
        %v1783 = vpop.permute.xlu0 %1782
        %1784 = vrot.lane.b32.xlu0 %v1781, 125
        %v1785 = vpop.permute.xlu0 %1784
        %v1788 = vadd.f32 %v1767, %v1783
        %v1789 = vadd.f32 %v1768, %v1785
        %s1790 = sld [smem:[#allocation3 + $0x5e]]
        %v1791 = vstv %s1790
        %v1792 = vmul.f32 %v1280, %v1791
        %v1793 = vmul.f32 %v1281, %v1791
        %v1794 = vmul.f32 %v1282, %v1791
        %v1798 = vrot.slane %v1792, 6
        %v1799 = vrot.slane %v1793, 6
        %v1800 = vsel %vm429, %v1798, %v1799
        %v1801 = vrot.slane %v1794, 6
        %v1802 = vsel %vm429, %v1799, %v1801
        %1803 = vrot.lane.b32.xlu0 %v1800, 125
        %v1804 = vpop.permute.xlu0 %1803
        %1805 = vrot.lane.b32.xlu0 %v1802, 125
        %v1806 = vpop.permute.xlu0 %1805
        %v1809 = vadd.f32 %v1788, %v1804
        %v1810 = vadd.f32 %v1789, %v1806
        %s1811 = sld [smem:[#allocation3 + $0x35]]
        %v1812 = vstv %s1811
        %v1813 = vmul.f32 %v1280, %v1812
        %v1814 = vmul.f32 %v1281, %v1812
        %1817 = vrot.lane.b32.xlu0 %v1813, 124
        %v1818 = vpop.permute.xlu0 %1817
        %1819 = vrot.lane.b32.xlu0 %v1814, 124
        %v1820 = vpop.permute.xlu0 %1819
        %v1823 = vadd.f32 %v1809, %v1818
        %v1824 = vadd.f32 %v1810, %v1820
        %s1825 = sld [smem:[#allocation3 + $0x3c]]
        %v1826 = vstv %s1825
        %v1827 = vmul.f32 %v1280, %v1826
        %v1828 = vmul.f32 %v1281, %v1826
        %v1829 = vmul.f32 %v1282, %v1826
        %v1833 = vrot.slane %v1827, 1
        %v1834 = vrot.slane %v1828, 1
        %v1835 = vsel %vm339, %v1833, %v1834
        %v1836 = vrot.slane %v1829, 1
        %v1837 = vsel %vm339, %v1834, %v1836
        %1838 = vrot.lane.b32.xlu0 %v1835, 124
        %v1839 = vpop.permute.xlu0 %1838
        %1840 = vrot.lane.b32.xlu0 %v1837, 124
        %v1841 = vpop.permute.xlu0 %1840
        %v1844 = vadd.f32 %v1823, %v1839
        %v1845 = vadd.f32 %v1824, %v1841
        %s1846 = sld [smem:[#allocation3 + $0x43]]
        %v1847 = vstv %s1846
        %v1848 = vmul.f32 %v1280, %v1847
        %v1849 = vmul.f32 %v1281, %v1847
        %v1850 = vmul.f32 %v1282, %v1847
        %v1854 = vrot.slane %v1848, 2
        %v1855 = vrot.slane %v1849, 2
        %v1856 = vsel %vm357, %v1854, %v1855
        %v1857 = vrot.slane %v1850, 2
        %v1858 = vsel %vm357, %v1855, %v1857
        %1859 = vrot.lane.b32.xlu0 %v1856, 124
        %v1860 = vpop.permute.xlu0 %1859
        %1861 = vrot.lane.b32.xlu0 %v1858, 124
        %v1862 = vpop.permute.xlu0 %1861
        %v1865 = vadd.f32 %v1844, %v1860
        %v1866 = vadd.f32 %v1845, %v1862
        %s1867 = sld [smem:[#allocation3 + $0x4a]]
        %v1868 = vstv %s1867
        %v1869 = vmul.f32 %v1280, %v1868
        %v1870 = vmul.f32 %v1281, %v1868
        %v1871 = vmul.f32 %v1282, %v1868
        %v1875 = vrot.slane %v1869, 3
        %v1876 = vrot.slane %v1870, 3
        %v1877 = vsel %vm375, %v1875, %v1876
        %v1878 = vrot.slane %v1871, 3
        %v1879 = vsel %vm375, %v1876, %v1878
        %1880 = vrot.lane.b32.xlu0 %v1877, 124
        %v1881 = vpop.permute.xlu0 %1880
        %1882 = vrot.lane.b32.xlu0 %v1879, 124
        %v1883 = vpop.permute.xlu0 %1882
        %v1886 = vadd.f32 %v1865, %v1881
        %v1887 = vadd.f32 %v1866, %v1883
        %s1888 = sld [smem:[#allocation3 + $0x51]]
        %v1889 = vstv %s1888
        %v1890 = vmul.f32 %v1280, %v1889
        %v1891 = vmul.f32 %v1281, %v1889
        %v1892 = vmul.f32 %v1282, %v1889
        %v1896 = vrot.slane %v1890, 4
        %v1897 = vrot.slane %v1891, 4
        %v1898 = vsel %vm393, %v1896, %v1897
        %v1899 = vrot.slane %v1892, 4
        %v1900 = vsel %vm393, %v1897, %v1899
        %1901 = vrot.lane.b32.xlu0 %v1898, 124
        %v1902 = vpop.permute.xlu0 %1901
        %1903 = vrot.lane.b32.xlu0 %v1900, 124
        %v1904 = vpop.permute.xlu0 %1903
        %v1907 = vadd.f32 %v1886, %v1902
        %v1908 = vadd.f32 %v1887, %v1904
        %s1909 = sld [smem:[#allocation3 + $0x58]]
        %v1910 = vstv %s1909
        %v1911 = vmul.f32 %v1280, %v1910
        %v1912 = vmul.f32 %v1281, %v1910
        %v1913 = vmul.f32 %v1282, %v1910
        %v1917 = vrot.slane %v1911, 5
        %v1918 = vrot.slane %v1912, 5
        %v1919 = vsel %vm411, %v1917, %v1918
        %v1920 = vrot.slane %v1913, 5
        %v1921 = vsel %vm411, %v1918, %v1920
        %1922 = vrot.lane.b32.xlu0 %v1919, 124
        %v1923 = vpop.permute.xlu0 %1922
        %1924 = vrot.lane.b32.xlu0 %v1921, 124
        %v1925 = vpop.permute.xlu0 %1924
        %v1928 = vadd.f32 %v1907, %v1923
        %v1929 = vadd.f32 %v1908, %v1925
        %s1930 = sld [smem:[#allocation3 + $0x5f]]
        %v1931 = vstv %s1930
        %v1932 = vmul.f32 %v1280, %v1931
        %v1933 = vmul.f32 %v1281, %v1931
        %v1934 = vmul.f32 %v1282, %v1931
        %v1938 = vrot.slane %v1932, 6
        %v1939 = vrot.slane %v1933, 6
        %v1940 = vsel %vm429, %v1938, %v1939
        %v1941 = vrot.slane %v1934, 6
        %v1942 = vsel %vm429, %v1939, %v1941
        %1943 = vrot.lane.b32.xlu0 %v1940, 124
        %v1944 = vpop.permute.xlu0 %1943
        %1945 = vrot.lane.b32.xlu0 %v1942, 124
        %v1946 = vpop.permute.xlu0 %1945
        %v1949 = vadd.f32 %v1928, %v1944
        %v1950 = vadd.f32 %v1929, %v1946
        %s1951 = sld [smem:[#allocation3 + $0x36]]
        %v1952 = vstv %s1951
        %v1953 = vmul.f32 %v1280, %v1952
        %v1954 = vmul.f32 %v1281, %v1952
        %1957 = vrot.lane.b32.xlu0 %v1953, 123
        %v1958 = vpop.permute.xlu0 %1957
        %1959 = vrot.lane.b32.xlu0 %v1954, 123
        %v1960 = vpop.permute.xlu0 %1959
        %v1963 = vadd.f32 %v1949, %v1958
        %v1964 = vadd.f32 %v1950, %v1960
        %s1965 = sld [smem:[#allocation3 + $0x3d]]
        %v1966 = vstv %s1965
        %v1967 = vmul.f32 %v1280, %v1966
        %v1968 = vmul.f32 %v1281, %v1966
        %v1969 = vmul.f32 %v1282, %v1966
        %v1973 = vrot.slane %v1967, 1
        %v1974 = vrot.slane %v1968, 1
        %v1975 = vsel %vm339, %v1973, %v1974
        %v1976 = vrot.slane %v1969, 1
        %v1977 = vsel %vm339, %v1974, %v1976
        %1978 = vrot.lane.b32.xlu0 %v1975, 123
        %v1979 = vpop.permute.xlu0 %1978
        %1980 = vrot.lane.b32.xlu0 %v1977, 123
        %v1981 = vpop.permute.xlu0 %1980
        %v1984 = vadd.f32 %v1963, %v1979
        %v1985 = vadd.f32 %v1964, %v1981
        %s1986 = sld [smem:[#allocation3 + $0x44]]
        %v1987 = vstv %s1986
        %v1988 = vmul.f32 %v1280, %v1987
        %v1989 = vmul.f32 %v1281, %v1987
        %v1990 = vmul.f32 %v1282, %v1987
        %v1994 = vrot.slane %v1988, 2
        %v1995 = vrot.slane %v1989, 2
        %v1996 = vsel %vm357, %v1994, %v1995
        %v1997 = vrot.slane %v1990, 2
        %v1998 = vsel %vm357, %v1995, %v1997
        %1999 = vrot.lane.b32.xlu0 %v1996, 123
        %v2000 = vpop.permute.xlu0 %1999
        %2001 = vrot.lane.b32.xlu0 %v1998, 123
        %v2002 = vpop.permute.xlu0 %2001
        %v2005 = vadd.f32 %v1984, %v2000
        %v2006 = vadd.f32 %v1985, %v2002
        %s2007 = sld [smem:[#allocation3 + $0x4b]]
        %v2008 = vstv %s2007
        %v2009 = vmul.f32 %v1280, %v2008
        %v2010 = vmul.f32 %v1281, %v2008
        %v2011 = vmul.f32 %v1282, %v2008
        %v2015 = vrot.slane %v2009, 3
        %v2016 = vrot.slane %v2010, 3
        %v2017 = vsel %vm375, %v2015, %v2016
        %v2018 = vrot.slane %v2011, 3
        %v2019 = vsel %vm375, %v2016, %v2018
        %2020 = vrot.lane.b32.xlu0 %v2017, 123
        %v2021 = vpop.permute.xlu0 %2020
        %2022 = vrot.lane.b32.xlu0 %v2019, 123
        %v2023 = vpop.permute.xlu0 %2022
        %v2026 = vadd.f32 %v2005, %v2021
        %v2027 = vadd.f32 %v2006, %v2023
        %s2028 = sld [smem:[#allocation3 + $0x52]]
        %v2029 = vstv %s2028
        %v2030 = vmul.f32 %v1280, %v2029
        %v2031 = vmul.f32 %v1281, %v2029
        %v2032 = vmul.f32 %v1282, %v2029
        %v2036 = vrot.slane %v2030, 4
        %v2037 = vrot.slane %v2031, 4
        %v2038 = vsel %vm393, %v2036, %v2037
        %v2039 = vrot.slane %v2032, 4
        %v2040 = vsel %vm393, %v2037, %v2039
        %2041 = vrot.lane.b32.xlu0 %v2038, 123
        %v2042 = vpop.permute.xlu0 %2041
        %2043 = vrot.lane.b32.xlu0 %v2040, 123
        %v2044 = vpop.permute.xlu0 %2043
        %v2047 = vadd.f32 %v2026, %v2042
        %v2048 = vadd.f32 %v2027, %v2044
        %s2049 = sld [smem:[#allocation3 + $0x59]]
        %v2050 = vstv %s2049
        %v2051 = vmul.f32 %v1280, %v2050
        %v2052 = vmul.f32 %v1281, %v2050
        %v2053 = vmul.f32 %v1282, %v2050
        %v2057 = vrot.slane %v2051, 5
        %v2058 = vrot.slane %v2052, 5
        %v2059 = vsel %vm411, %v2057, %v2058
        %v2060 = vrot.slane %v2053, 5
        %v2061 = vsel %vm411, %v2058, %v2060
        %2062 = vrot.lane.b32.xlu0 %v2059, 123
        %v2063 = vpop.permute.xlu0 %2062
        %2064 = vrot.lane.b32.xlu0 %v2061, 123
        %v2065 = vpop.permute.xlu0 %2064
        %v2068 = vadd.f32 %v2047, %v2063
        %v2069 = vadd.f32 %v2048, %v2065
        %s2070 = sld [smem:[#allocation3 + $0x60]]
        %v2071 = vstv %s2070
        %v2072 = vmul.f32 %v1280, %v2071
        %v2073 = vmul.f32 %v1281, %v2071
        %v2074 = vmul.f32 %v1282, %v2071
        %v2078 = vrot.slane %v2072, 6
        %v2079 = vrot.slane %v2073, 6
        %v2080 = vsel %vm429, %v2078, %v2079
        %v2081 = vrot.slane %v2074, 6
        %v2082 = vsel %vm429, %v2079, %v2081
        %2083 = vrot.lane.b32.xlu0 %v2080, 123
        %v2084 = vpop.permute.xlu0 %2083
        %2085 = vrot.lane.b32.xlu0 %v2082, 123
        %v2086 = vpop.permute.xlu0 %2085
        %v2089 = vadd.f32 %v2068, %v2084
        %v2090 = vadd.f32 %v2069, %v2086
        %s2091 = sld [smem:[#allocation3 + $0x37]]
        %v2092 = vstv %s2091
        %v2093 = vmul.f32 %v1280, %v2092
        %v2094 = vmul.f32 %v1281, %v2092
        %2097 = vrot.lane.b32.xlu0 %v2093, 122
        %v2098 = vpop.permute.xlu0 %2097
        %2099 = vrot.lane.b32.xlu0 %v2094, 122
        %v2100 = vpop.permute.xlu0 %2099
        %v2103 = vadd.f32 %v2089, %v2098
        %v2104 = vadd.f32 %v2090, %v2100
        %s2105 = sld [smem:[#allocation3 + $0x3e]]
        %v2106 = vstv %s2105
        %v2107 = vmul.f32 %v1280, %v2106
        %v2108 = vmul.f32 %v1281, %v2106
        %v2109 = vmul.f32 %v1282, %v2106
        %v2113 = vrot.slane %v2107, 1
        %v2114 = vrot.slane %v2108, 1
        %v2115 = vsel %vm339, %v2113, %v2114
        %v2116 = vrot.slane %v2109, 1
        %v2117 = vsel %vm339, %v2114, %v2116
        %2118 = vrot.lane.b32.xlu0 %v2115, 122
        %v2119 = vpop.permute.xlu0 %2118
        %2120 = vrot.lane.b32.xlu0 %v2117, 122
        %v2121 = vpop.permute.xlu0 %2120
        %v2124 = vadd.f32 %v2103, %v2119
        %v2125 = vadd.f32 %v2104, %v2121
        %s2126 = sld [smem:[#allocation3 + $0x45]]
        %v2127 = vstv %s2126
        %v2128 = vmul.f32 %v1280, %v2127
        %v2129 = vmul.f32 %v1281, %v2127
        %v2130 = vmul.f32 %v1282, %v2127
        %v2134 = vrot.slane %v2128, 2
        %v2135 = vrot.slane %v2129, 2
        %v2136 = vsel %vm357, %v2134, %v2135
        %v2137 = vrot.slane %v2130, 2
        %v2138 = vsel %vm357, %v2135, %v2137
        %2139 = vrot.lane.b32.xlu0 %v2136, 122
        %v2140 = vpop.permute.xlu0 %2139
        %2141 = vrot.lane.b32.xlu0 %v2138, 122
        %v2142 = vpop.permute.xlu0 %2141
        %v2145 = vadd.f32 %v2124, %v2140
        %v2146 = vadd.f32 %v2125, %v2142
        %s2147 = sld [smem:[#allocation3 + $0x4c]]
        %v2148 = vstv %s2147
        %v2149 = vmul.f32 %v1280, %v2148
        %v2150 = vmul.f32 %v1281, %v2148
        %v2151 = vmul.f32 %v1282, %v2148
        %v2155 = vrot.slane %v2149, 3
        %v2156 = vrot.slane %v2150, 3
        %v2157 = vsel %vm375, %v2155, %v2156
        %v2158 = vrot.slane %v2151, 3
        %v2159 = vsel %vm375, %v2156, %v2158
        %2160 = vrot.lane.b32.xlu0 %v2157, 122
        %v2161 = vpop.permute.xlu0 %2160
        %2162 = vrot.lane.b32.xlu0 %v2159, 122
        %v2163 = vpop.permute.xlu0 %2162
        %v2166 = vadd.f32 %v2145, %v2161
        %v2167 = vadd.f32 %v2146, %v2163
        %s2168 = sld [smem:[#allocation3 + $0x53]]
        %v2169 = vstv %s2168
        %v2170 = vmul.f32 %v1280, %v2169
        %v2171 = vmul.f32 %v1281, %v2169
        %v2172 = vmul.f32 %v1282, %v2169
        %v2176 = vrot.slane %v2170, 4
        %v2177 = vrot.slane %v2171, 4
        %v2178 = vsel %vm393, %v2176, %v2177
        %v2179 = vrot.slane %v2172, 4
        %v2180 = vsel %vm393, %v2177, %v2179
        %2181 = vrot.lane.b32.xlu0 %v2178, 122
        %v2182 = vpop.permute.xlu0 %2181
        %2183 = vrot.lane.b32.xlu0 %v2180, 122
        %v2184 = vpop.permute.xlu0 %2183
        %v2187 = vadd.f32 %v2166, %v2182
        %v2188 = vadd.f32 %v2167, %v2184
        %s2189 = sld [smem:[#allocation3 + $0x5a]]
        %v2190 = vstv %s2189
        %v2191 = vmul.f32 %v1280, %v2190
        %v2192 = vmul.f32 %v1281, %v2190
        %v2193 = vmul.f32 %v1282, %v2190
        %v2197 = vrot.slane %v2191, 5
        %v2198 = vrot.slane %v2192, 5
        %v2199 = vsel %vm411, %v2197, %v2198
        %v2200 = vrot.slane %v2193, 5
        %v2201 = vsel %vm411, %v2198, %v2200
        %2202 = vrot.lane.b32.xlu0 %v2199, 122
        %v2203 = vpop.permute.xlu0 %2202
        %2204 = vrot.lane.b32.xlu0 %v2201, 122
        %v2205 = vpop.permute.xlu0 %2204
        %v2208 = vadd.f32 %v2187, %v2203
        %v2209 = vadd.f32 %v2188, %v2205
        %s2210 = sld [smem:[#allocation3 + $0x61]]
        %v2211 = vstv %s2210
        %v2212 = vmul.f32 %v1280, %v2211
        %v2213 = vmul.f32 %v1281, %v2211
        %v2214 = vmul.f32 %v1282, %v2211
        %v2218 = vrot.slane %v2212, 6
        %v2219 = vrot.slane %v2213, 6
        %v2220 = vsel %vm429, %v2218, %v2219
        %v2221 = vrot.slane %v2214, 6
        %v2222 = vsel %vm429, %v2219, %v2221
        %2223 = vrot.lane.b32.xlu0 %v2220, 122
        %v2224 = vpop.permute.xlu0 %2223
        %2225 = vrot.lane.b32.xlu0 %v2222, 122
        %v2226 = vpop.permute.xlu0 %2225
        %v2229 = vadd.f32 %v2208, %v2224
        %v2230 = vadd.f32 %v2209, %v2226
        %s2231 = scalar_lea.vmem [#allocation2], 48
        %v2232 = vld [vmem:[%s2231] sm:$0xff]
        %v2233 = vld [vmem:[%s2231 + $0x8] sm:$0xff]
        %v2234 = vld [vmem:[%s2231 + $0x10] sm:$0x3f]
        %s2235 = sld [smem:[#allocation3 + $0x62]]
        %v2236 = vstv %s2235
        %v2237 = vmul.f32 %v2232, %v2236
        %v2238 = vmul.f32 %v2233, %v2236
        %v2239 = vadd.f32 %v2229, %v2237
        %v2240 = vadd.f32 %v2230, %v2238
        %s2241 = sld [smem:[#allocation3 + $0x69]]
        %v2242 = vstv %s2241
        %v2243 = vmul.f32 %v2232, %v2242
        %v2244 = vmul.f32 %v2233, %v2242
        %v2245 = vmul.f32 %v2234, %v2242
        %v2249 = vrot.slane %v2243, 1
        %v2250 = vrot.slane %v2244, 1
        %v2251 = vsel %vm339, %v2249, %v2250
        %v2252 = vrot.slane %v2245, 1
        %v2253 = vsel %vm339, %v2250, %v2252
        %v2256 = vadd.f32 %v2239, %v2251
        %v2257 = vadd.f32 %v2240, %v2253
        %s2258 = sld [smem:[#allocation3 + $0x70]]
        %v2259 = vstv %s2258
        %v2260 = vmul.f32 %v2232, %v2259
        %v2261 = vmul.f32 %v2233, %v2259
        %v2262 = vmul.f32 %v2234, %v2259
        %v2266 = vrot.slane %v2260, 2
        %v2267 = vrot.slane %v2261, 2
        %v2268 = vsel %vm357, %v2266, %v2267
        %v2269 = vrot.slane %v2262, 2
        %v2270 = vsel %vm357, %v2267, %v2269
        %v2273 = vadd.f32 %v2256, %v2268
        %v2274 = vadd.f32 %v2257, %v2270
        %s2275 = sld [smem:[#allocation3 + $0x77]]
        %v2276 = vstv %s2275
        %v2277 = vmul.f32 %v2232, %v2276
        %v2278 = vmul.f32 %v2233, %v2276
        %v2279 = vmul.f32 %v2234, %v2276
        %v2283 = vrot.slane %v2277, 3
        %v2284 = vrot.slane %v2278, 3
        %v2285 = vsel %vm375, %v2283, %v2284
        %v2286 = vrot.slane %v2279, 3
        %v2287 = vsel %vm375, %v2284, %v2286
        %v2290 = vadd.f32 %v2273, %v2285
        %v2291 = vadd.f32 %v2274, %v2287
        %s2292 = sld [smem:[#allocation3 + $0x7e]]
        %v2293 = vstv %s2292
        %v2294 = vmul.f32 %v2232, %v2293
        %v2295 = vmul.f32 %v2233, %v2293
        %v2296 = vmul.f32 %v2234, %v2293
        %v2300 = vrot.slane %v2294, 4
        %v2301 = vrot.slane %v2295, 4
        %v2302 = vsel %vm393, %v2300, %v2301
        %v2303 = vrot.slane %v2296, 4
        %v2304 = vsel %vm393, %v2301, %v2303
        %v2307 = vadd.f32 %v2290, %v2302
        %v2308 = vadd.f32 %v2291, %v2304
        %s2309 = sld [smem:[#allocation3 + $0x85]]
        %v2310 = vstv %s2309
        %v2311 = vmul.f32 %v2232, %v2310
        %v2312 = vmul.f32 %v2233, %v2310
        %v2313 = vmul.f32 %v2234, %v2310
        %v2317 = vrot.slane %v2311, 5
        %v2318 = vrot.slane %v2312, 5
        %v2319 = vsel %vm411, %v2317, %v2318
        %v2320 = vrot.slane %v2313, 5
        %v2321 = vsel %vm411, %v2318, %v2320
        %v2324 = vadd.f32 %v2307, %v2319
        %v2325 = vadd.f32 %v2308, %v2321
        %s2326 = sld [smem:[#allocation3 + $0x8c]]
        %v2327 = vstv %s2326
        %v2328 = vmul.f32 %v2232, %v2327
        %v2329 = vmul.f32 %v2233, %v2327
        %v2330 = vmul.f32 %v2234, %v2327
        %v2334 = vrot.slane %v2328, 6
        %v2335 = vrot.slane %v2329, 6
        %v2336 = vsel %vm429, %v2334, %v2335
        %v2337 = vrot.slane %v2330, 6
        %v2338 = vsel %vm429, %v2335, %v2337
        %v2341 = vadd.f32 %v2324, %v2336
        %v2342 = vadd.f32 %v2325, %v2338
        %s2343 = sld [smem:[#allocation3 + $0x63]]
        %v2344 = vstv %s2343
        %v2345 = vmul.f32 %v2232, %v2344
        %v2346 = vmul.f32 %v2233, %v2344
        %2349 = vrot.lane.b32.xlu0 %v2345, 127
        %v2350 = vpop.permute.xlu0 %2349
        %2351 = vrot.lane.b32.xlu0 %v2346, 127
        %v2352 = vpop.permute.xlu0 %2351
        %v2355 = vadd.f32 %v2341, %v2350
        %v2356 = vadd.f32 %v2342, %v2352
        %s2357 = sld [smem:[#allocation3 + $0x6a]]
        %v2358 = vstv %s2357
        %v2359 = vmul.f32 %v2232, %v2358
        %v2360 = vmul.f32 %v2233, %v2358
        %v2361 = vmul.f32 %v2234, %v2358
        %v2365 = vrot.slane %v2359, 1
        %v2366 = vrot.slane %v2360, 1
        %v2367 = vsel %vm339, %v2365, %v2366
        %v2368 = vrot.slane %v2361, 1
        %v2369 = vsel %vm339, %v2366, %v2368
        %2370 = vrot.lane.b32.xlu0 %v2367, 127
        %v2371 = vpop.permute.xlu0 %2370
        %2372 = vrot.lane.b32.xlu0 %v2369, 127
        %v2373 = vpop.permute.xlu0 %2372
        %v2376 = vadd.f32 %v2355, %v2371
        %v2377 = vadd.f32 %v2356, %v2373
        %s2378 = sld [smem:[#allocation3 + $0x71]]
        %v2379 = vstv %s2378
        %v2380 = vmul.f32 %v2232, %v2379
        %v2381 = vmul.f32 %v2233, %v2379
        %v2382 = vmul.f32 %v2234, %v2379
        %v2386 = vrot.slane %v2380, 2
        %v2387 = vrot.slane %v2381, 2
        %v2388 = vsel %vm357, %v2386, %v2387
        %v2389 = vrot.slane %v2382, 2
        %v2390 = vsel %vm357, %v2387, %v2389
        %2391 = vrot.lane.b32.xlu0 %v2388, 127
        %v2392 = vpop.permute.xlu0 %2391
        %2393 = vrot.lane.b32.xlu0 %v2390, 127
        %v2394 = vpop.permute.xlu0 %2393
        %v2397 = vadd.f32 %v2376, %v2392
        %v2398 = vadd.f32 %v2377, %v2394
        %s2399 = sld [smem:[#allocation3 + $0x78]]
        %v2400 = vstv %s2399
        %v2401 = vmul.f32 %v2232, %v2400
        %v2402 = vmul.f32 %v2233, %v2400
        %v2403 = vmul.f32 %v2234, %v2400
        %v2407 = vrot.slane %v2401, 3
        %v2408 = vrot.slane %v2402, 3
        %v2409 = vsel %vm375, %v2407, %v2408
        %v2410 = vrot.slane %v2403, 3
        %v2411 = vsel %vm375, %v2408, %v2410
        %2412 = vrot.lane.b32.xlu0 %v2409, 127
        %v2413 = vpop.permute.xlu0 %2412
        %2414 = vrot.lane.b32.xlu0 %v2411, 127
        %v2415 = vpop.permute.xlu0 %2414
        %v2418 = vadd.f32 %v2397, %v2413
        %v2419 = vadd.f32 %v2398, %v2415
        %s2420 = sld [smem:[#allocation3 + $0x7f]]
        %v2421 = vstv %s2420
        %v2422 = vmul.f32 %v2232, %v2421
        %v2423 = vmul.f32 %v2233, %v2421
        %v2424 = vmul.f32 %v2234, %v2421
        %v2428 = vrot.slane %v2422, 4
        %v2429 = vrot.slane %v2423, 4
        %v2430 = vsel %vm393, %v2428, %v2429
        %v2431 = vrot.slane %v2424, 4
        %v2432 = vsel %vm393, %v2429, %v2431
        %2433 = vrot.lane.b32.xlu0 %v2430, 127
        %v2434 = vpop.permute.xlu0 %2433
        %2435 = vrot.lane.b32.xlu0 %v2432, 127
        %v2436 = vpop.permute.xlu0 %2435
        %v2439 = vadd.f32 %v2418, %v2434
        %v2440 = vadd.f32 %v2419, %v2436
        %s2441 = sld [smem:[#allocation3 + $0x86]]
        %v2442 = vstv %s2441
        %v2443 = vmul.f32 %v2232, %v2442
        %v2444 = vmul.f32 %v2233, %v2442
        %v2445 = vmul.f32 %v2234, %v2442
        %v2449 = vrot.slane %v2443, 5
        %v2450 = vrot.slane %v2444, 5
        %v2451 = vsel %vm411, %v2449, %v2450
        %v2452 = vrot.slane %v2445, 5
        %v2453 = vsel %vm411, %v2450, %v2452
        %2454 = vrot.lane.b32.xlu0 %v2451, 127
        %v2455 = vpop.permute.xlu0 %2454
        %2456 = vrot.lane.b32.xlu0 %v2453, 127
        %v2457 = vpop.permute.xlu0 %2456
        %v2460 = vadd.f32 %v2439, %v2455
        %v2461 = vadd.f32 %v2440, %v2457
        %s2462 = sld [smem:[#allocation3 + $0x8d]]
        %v2463 = vstv %s2462
        %v2464 = vmul.f32 %v2232, %v2463
        %v2465 = vmul.f32 %v2233, %v2463
        %v2466 = vmul.f32 %v2234, %v2463
        %v2470 = vrot.slane %v2464, 6
        %v2471 = vrot.slane %v2465, 6
        %v2472 = vsel %vm429, %v2470, %v2471
        %v2473 = vrot.slane %v2466, 6
        %v2474 = vsel %vm429, %v2471, %v2473
        %2475 = vrot.lane.b32.xlu0 %v2472, 127
        %v2476 = vpop.permute.xlu0 %2475
        %2477 = vrot.lane.b32.xlu0 %v2474, 127
        %v2478 = vpop.permute.xlu0 %2477
        %v2481 = vadd.f32 %v2460, %v2476
        %v2482 = vadd.f32 %v2461, %v2478
        %s2483 = sld [smem:[#allocation3 + $0x64]]
        %v2484 = vstv %s2483
        %v2485 = vmul.f32 %v2232, %v2484
        %v2486 = vmul.f32 %v2233, %v2484
        %2489 = vrot.lane.b32.xlu0 %v2485, 126
        %v2490 = vpop.permute.xlu0 %2489
        %2491 = vrot.lane.b32.xlu0 %v2486, 126
        %v2492 = vpop.permute.xlu0 %2491
        %v2495 = vadd.f32 %v2481, %v2490
        %v2496 = vadd.f32 %v2482, %v2492
        %s2497 = sld [smem:[#allocation3 + $0x6b]]
        %v2498 = vstv %s2497
        %v2499 = vmul.f32 %v2232, %v2498
        %v2500 = vmul.f32 %v2233, %v2498
        %v2501 = vmul.f32 %v2234, %v2498
        %v2505 = vrot.slane %v2499, 1
        %v2506 = vrot.slane %v2500, 1
        %v2507 = vsel %vm339, %v2505, %v2506
        %v2508 = vrot.slane %v2501, 1
        %v2509 = vsel %vm339, %v2506, %v2508
        %2510 = vrot.lane.b32.xlu0 %v2507, 126
        %v2511 = vpop.permute.xlu0 %2510
        %2512 = vrot.lane.b32.xlu0 %v2509, 126
        %v2513 = vpop.permute.xlu0 %2512
        %v2516 = vadd.f32 %v2495, %v2511
        %v2517 = vadd.f32 %v2496, %v2513
        %s2518 = sld [smem:[#allocation3 + $0x72]]
        %v2519 = vstv %s2518
        %v2520 = vmul.f32 %v2232, %v2519
        %v2521 = vmul.f32 %v2233, %v2519
        %v2522 = vmul.f32 %v2234, %v2519
        %v2526 = vrot.slane %v2520, 2
        %v2527 = vrot.slane %v2521, 2
        %v2528 = vsel %vm357, %v2526, %v2527
        %v2529 = vrot.slane %v2522, 2
        %v2530 = vsel %vm357, %v2527, %v2529
        %2531 = vrot.lane.b32.xlu0 %v2528, 126
        %v2532 = vpop.permute.xlu0 %2531
        %2533 = vrot.lane.b32.xlu0 %v2530, 126
        %v2534 = vpop.permute.xlu0 %2533
        %v2537 = vadd.f32 %v2516, %v2532
        %v2538 = vadd.f32 %v2517, %v2534
        %s2539 = sld [smem:[#allocation3 + $0x79]]
        %v2540 = vstv %s2539
        %v2541 = vmul.f32 %v2232, %v2540
        %v2542 = vmul.f32 %v2233, %v2540
        %v2543 = vmul.f32 %v2234, %v2540
        %v2547 = vrot.slane %v2541, 3
        %v2548 = vrot.slane %v2542, 3
        %v2549 = vsel %vm375, %v2547, %v2548
        %v2550 = vrot.slane %v2543, 3
        %v2551 = vsel %vm375, %v2548, %v2550
        %2552 = vrot.lane.b32.xlu0 %v2549, 126
        %v2553 = vpop.permute.xlu0 %2552
        %2554 = vrot.lane.b32.xlu0 %v2551, 126
        %v2555 = vpop.permute.xlu0 %2554
        %v2558 = vadd.f32 %v2537, %v2553
        %v2559 = vadd.f32 %v2538, %v2555
        %s2560 = sld [smem:[#allocation3 + $0x80]]
        %v2561 = vstv %s2560
        %v2562 = vmul.f32 %v2232, %v2561
        %v2563 = vmul.f32 %v2233, %v2561
        %v2564 = vmul.f32 %v2234, %v2561
        %v2568 = vrot.slane %v2562, 4
        %v2569 = vrot.slane %v2563, 4
        %v2570 = vsel %vm393, %v2568, %v2569
        %v2571 = vrot.slane %v2564, 4
        %v2572 = vsel %vm393, %v2569, %v2571
        %2573 = vrot.lane.b32.xlu0 %v2570, 126
        %v2574 = vpop.permute.xlu0 %2573
        %2575 = vrot.lane.b32.xlu0 %v2572, 126
        %v2576 = vpop.permute.xlu0 %2575
        %v2579 = vadd.f32 %v2558, %v2574
        %v2580 = vadd.f32 %v2559, %v2576
        %s2581 = sld [smem:[#allocation3 + $0x87]]
        %v2582 = vstv %s2581
        %v2583 = vmul.f32 %v2232, %v2582
        %v2584 = vmul.f32 %v2233, %v2582
        %v2585 = vmul.f32 %v2234, %v2582
        %v2589 = vrot.slane %v2583, 5
        %v2590 = vrot.slane %v2584, 5
        %v2591 = vsel %vm411, %v2589, %v2590
        %v2592 = vrot.slane %v2585, 5
        %v2593 = vsel %vm411, %v2590, %v2592
        %2594 = vrot.lane.b32.xlu0 %v2591, 126
        %v2595 = vpop.permute.xlu0 %2594
        %2596 = vrot.lane.b32.xlu0 %v2593, 126
        %v2597 = vpop.permute.xlu0 %2596
        %v2600 = vadd.f32 %v2579, %v2595
        %v2601 = vadd.f32 %v2580, %v2597
        %s2602 = sld [smem:[#allocation3 + $0x8e]]
        %v2603 = vstv %s2602
        %v2604 = vmul.f32 %v2232, %v2603
        %v2605 = vmul.f32 %v2233, %v2603
        %v2606 = vmul.f32 %v2234, %v2603
        %v2610 = vrot.slane %v2604, 6
        %v2611 = vrot.slane %v2605, 6
        %v2612 = vsel %vm429, %v2610, %v2611
        %v2613 = vrot.slane %v2606, 6
        %v2614 = vsel %vm429, %v2611, %v2613
        %2615 = vrot.lane.b32.xlu0 %v2612, 126
        %v2616 = vpop.permute.xlu0 %2615
        %2617 = vrot.lane.b32.xlu0 %v2614, 126
        %v2618 = vpop.permute.xlu0 %2617
        %v2621 = vadd.f32 %v2600, %v2616
        %v2622 = vadd.f32 %v2601, %v2618
        %s2623 = sld [smem:[#allocation3 + $0x65]]
        %v2624 = vstv %s2623
        %v2625 = vmul.f32 %v2232, %v2624
        %v2626 = vmul.f32 %v2233, %v2624
        %2629 = vrot.lane.b32.xlu0 %v2625, 125
        %v2630 = vpop.permute.xlu0 %2629
        %2631 = vrot.lane.b32.xlu0 %v2626, 125
        %v2632 = vpop.permute.xlu0 %2631
        %v2635 = vadd.f32 %v2621, %v2630
        %v2636 = vadd.f32 %v2622, %v2632
        %s2637 = sld [smem:[#allocation3 + $0x6c]]
        %v2638 = vstv %s2637
        %v2639 = vmul.f32 %v2232, %v2638
        %v2640 = vmul.f32 %v2233, %v2638
        %v2641 = vmul.f32 %v2234, %v2638
        %v2645 = vrot.slane %v2639, 1
        %v2646 = vrot.slane %v2640, 1
        %v2647 = vsel %vm339, %v2645, %v2646
        %v2648 = vrot.slane %v2641, 1
        %v2649 = vsel %vm339, %v2646, %v2648
        %2650 = vrot.lane.b32.xlu0 %v2647, 125
        %v2651 = vpop.permute.xlu0 %2650
        %2652 = vrot.lane.b32.xlu0 %v2649, 125
        %v2653 = vpop.permute.xlu0 %2652
        %v2656 = vadd.f32 %v2635, %v2651
        %v2657 = vadd.f32 %v2636, %v2653
        %s2658 = sld [smem:[#allocation3 + $0x73]]
        %v2659 = vstv %s2658
        %v2660 = vmul.f32 %v2232, %v2659
        %v2661 = vmul.f32 %v2233, %v2659
        %v2662 = vmul.f32 %v2234, %v2659
        %v2666 = vrot.slane %v2660, 2
        %v2667 = vrot.slane %v2661, 2
        %v2668 = vsel %vm357, %v2666, %v2667
        %v2669 = vrot.slane %v2662, 2
        %v2670 = vsel %vm357, %v2667, %v2669
        %2671 = vrot.lane.b32.xlu0 %v2668, 125
        %v2672 = vpop.permute.xlu0 %2671
        %2673 = vrot.lane.b32.xlu0 %v2670, 125
        %v2674 = vpop.permute.xlu0 %2673
        %v2677 = vadd.f32 %v2656, %v2672
        %v2678 = vadd.f32 %v2657, %v2674
        %s2679 = sld [smem:[#allocation3 + $0x7a]]
        %v2680 = vstv %s2679
        %v2681 = vmul.f32 %v2232, %v2680
        %v2682 = vmul.f32 %v2233, %v2680
        %v2683 = vmul.f32 %v2234, %v2680
        %v2687 = vrot.slane %v2681, 3
        %v2688 = vrot.slane %v2682, 3
        %v2689 = vsel %vm375, %v2687, %v2688
        %v2690 = vrot.slane %v2683, 3
        %v2691 = vsel %vm375, %v2688, %v2690
        %2692 = vrot.lane.b32.xlu0 %v2689, 125
        %v2693 = vpop.permute.xlu0 %2692
        %2694 = vrot.lane.b32.xlu0 %v2691, 125
        %v2695 = vpop.permute.xlu0 %2694
        %v2698 = vadd.f32 %v2677, %v2693
        %v2699 = vadd.f32 %v2678, %v2695
        %s2700 = sld [smem:[#allocation3 + $0x81]]
        %v2701 = vstv %s2700
        %v2702 = vmul.f32 %v2232, %v2701
        %v2703 = vmul.f32 %v2233, %v2701
        %v2704 = vmul.f32 %v2234, %v2701
        %v2708 = vrot.slane %v2702, 4
        %v2709 = vrot.slane %v2703, 4
        %v2710 = vsel %vm393, %v2708, %v2709
        %v2711 = vrot.slane %v2704, 4
        %v2712 = vsel %vm393, %v2709, %v2711
        %2713 = vrot.lane.b32.xlu0 %v2710, 125
        %v2714 = vpop.permute.xlu0 %2713
        %2715 = vrot.lane.b32.xlu0 %v2712, 125
        %v2716 = vpop.permute.xlu0 %2715
        %v2719 = vadd.f32 %v2698, %v2714
        %v2720 = vadd.f32 %v2699, %v2716
        %s2721 = sld [smem:[#allocation3 + $0x88]]
        %v2722 = vstv %s2721
        %v2723 = vmul.f32 %v2232, %v2722
        %v2724 = vmul.f32 %v2233, %v2722
        %v2725 = vmul.f32 %v2234, %v2722
        %v2729 = vrot.slane %v2723, 5
        %v2730 = vrot.slane %v2724, 5
        %v2731 = vsel %vm411, %v2729, %v2730
        %v2732 = vrot.slane %v2725, 5
        %v2733 = vsel %vm411, %v2730, %v2732
        %2734 = vrot.lane.b32.xlu0 %v2731, 125
        %v2735 = vpop.permute.xlu0 %2734
        %2736 = vrot.lane.b32.xlu0 %v2733, 125
        %v2737 = vpop.permute.xlu0 %2736
        %v2740 = vadd.f32 %v2719, %v2735
        %v2741 = vadd.f32 %v2720, %v2737
        %s2742 = sld [smem:[#allocation3 + $0x8f]]
        %v2743 = vstv %s2742
        %v2744 = vmul.f32 %v2232, %v2743
        %v2745 = vmul.f32 %v2233, %v2743
        %v2746 = vmul.f32 %v2234, %v2743
        %v2750 = vrot.slane %v2744, 6
        %v2751 = vrot.slane %v2745, 6
        %v2752 = vsel %vm429, %v2750, %v2751
        %v2753 = vrot.slane %v2746, 6
        %v2754 = vsel %vm429, %v2751, %v2753
        %2755 = vrot.lane.b32.xlu0 %v2752, 125
        %v2756 = vpop.permute.xlu0 %2755
        %2757 = vrot.lane.b32.xlu0 %v2754, 125
        %v2758 = vpop.permute.xlu0 %2757
        %v2761 = vadd.f32 %v2740, %v2756
        %v2762 = vadd.f32 %v2741, %v2758
        %s2763 = sld [smem:[#allocation3 + $0x66]]
        %v2764 = vstv %s2763
        %v2765 = vmul.f32 %v2232, %v2764
        %v2766 = vmul.f32 %v2233, %v2764
        %2769 = vrot.lane.b32.xlu0 %v2765, 124
        %v2770 = vpop.permute.xlu0 %2769
        %2771 = vrot.lane.b32.xlu0 %v2766, 124
        %v2772 = vpop.permute.xlu0 %2771
        %v2775 = vadd.f32 %v2761, %v2770
        %v2776 = vadd.f32 %v2762, %v2772
        %s2777 = sld [smem:[#allocation3 + $0x6d]]
        %v2778 = vstv %s2777
        %v2779 = vmul.f32 %v2232, %v2778
        %v2780 = vmul.f32 %v2233, %v2778
        %v2781 = vmul.f32 %v2234, %v2778
        %v2785 = vrot.slane %v2779, 1
        %v2786 = vrot.slane %v2780, 1
        %v2787 = vsel %vm339, %v2785, %v2786
        %v2788 = vrot.slane %v2781, 1
        %v2789 = vsel %vm339, %v2786, %v2788
        %2790 = vrot.lane.b32.xlu0 %v2787, 124
        %v2791 = vpop.permute.xlu0 %2790
        %2792 = vrot.lane.b32.xlu0 %v2789, 124
        %v2793 = vpop.permute.xlu0 %2792
        %v2796 = vadd.f32 %v2775, %v2791
        %v2797 = vadd.f32 %v2776, %v2793
        %s2798 = sld [smem:[#allocation3 + $0x74]]
        %v2799 = vstv %s2798
        %v2800 = vmul.f32 %v2232, %v2799
        %v2801 = vmul.f32 %v2233, %v2799
        %v2802 = vmul.f32 %v2234, %v2799
        %v2806 = vrot.slane %v2800, 2
        %v2807 = vrot.slane %v2801, 2
        %v2808 = vsel %vm357, %v2806, %v2807
        %v2809 = vrot.slane %v2802, 2
        %v2810 = vsel %vm357, %v2807, %v2809
        %2811 = vrot.lane.b32.xlu0 %v2808, 124
        %v2812 = vpop.permute.xlu0 %2811
        %2813 = vrot.lane.b32.xlu0 %v2810, 124
        %v2814 = vpop.permute.xlu0 %2813
        %v2817 = vadd.f32 %v2796, %v2812
        %v2818 = vadd.f32 %v2797, %v2814
        %s2819 = sld [smem:[#allocation3 + $0x7b]]
        %v2820 = vstv %s2819
        %v2821 = vmul.f32 %v2232, %v2820
        %v2822 = vmul.f32 %v2233, %v2820
        %v2823 = vmul.f32 %v2234, %v2820
        %v2827 = vrot.slane %v2821, 3
        %v2828 = vrot.slane %v2822, 3
        %v2829 = vsel %vm375, %v2827, %v2828
        %v2830 = vrot.slane %v2823, 3
        %v2831 = vsel %vm375, %v2828, %v2830
        %2832 = vrot.lane.b32.xlu0 %v2829, 124
        %v2833 = vpop.permute.xlu0 %2832
        %2834 = vrot.lane.b32.xlu0 %v2831, 124
        %v2835 = vpop.permute.xlu0 %2834
        %v2838 = vadd.f32 %v2817, %v2833
        %v2839 = vadd.f32 %v2818, %v2835
        %s2840 = sld [smem:[#allocation3 + $0x82]]
        %v2841 = vstv %s2840
        %v2842 = vmul.f32 %v2232, %v2841
        %v2843 = vmul.f32 %v2233, %v2841
        %v2844 = vmul.f32 %v2234, %v2841
        %v2848 = vrot.slane %v2842, 4
        %v2849 = vrot.slane %v2843, 4
        %v2850 = vsel %vm393, %v2848, %v2849
        %v2851 = vrot.slane %v2844, 4
        %v2852 = vsel %vm393, %v2849, %v2851
        %2853 = vrot.lane.b32.xlu0 %v2850, 124
        %v2854 = vpop.permute.xlu0 %2853
        %2855 = vrot.lane.b32.xlu0 %v2852, 124
        %v2856 = vpop.permute.xlu0 %2855
        %v2859 = vadd.f32 %v2838, %v2854
        %v2860 = vadd.f32 %v2839, %v2856
        %s2861 = sld [smem:[#allocation3 + $0x89]]
        %v2862 = vstv %s2861
        %v2863 = vmul.f32 %v2232, %v2862
        %v2864 = vmul.f32 %v2233, %v2862
        %v2865 = vmul.f32 %v2234, %v2862
        %v2869 = vrot.slane %v2863, 5
        %v2870 = vrot.slane %v2864, 5
        %v2871 = vsel %vm411, %v2869, %v2870
        %v2872 = vrot.slane %v2865, 5
        %v2873 = vsel %vm411, %v2870, %v2872
        %2874 = vrot.lane.b32.xlu0 %v2871, 124
        %v2875 = vpop.permute.xlu0 %2874
        %2876 = vrot.lane.b32.xlu0 %v2873, 124
        %v2877 = vpop.permute.xlu0 %2876
        %v2880 = vadd.f32 %v2859, %v2875
        %v2881 = vadd.f32 %v2860, %v2877
        %s2882 = sld [smem:[#allocation3 + $0x90]]
        %v2883 = vstv %s2882
        %v2884 = vmul.f32 %v2232, %v2883
        %v2885 = vmul.f32 %v2233, %v2883
        %v2886 = vmul.f32 %v2234, %v2883
        %v2890 = vrot.slane %v2884, 6
        %v2891 = vrot.slane %v2885, 6
        %v2892 = vsel %vm429, %v2890, %v2891
        %v2893 = vrot.slane %v2886, 6
        %v2894 = vsel %vm429, %v2891, %v2893
        %2895 = vrot.lane.b32.xlu0 %v2892, 124
        %v2896 = vpop.permute.xlu0 %2895
        %2897 = vrot.lane.b32.xlu0 %v2894, 124
        %v2898 = vpop.permute.xlu0 %2897
        %v2901 = vadd.f32 %v2880, %v2896
        %v2902 = vadd.f32 %v2881, %v2898
        %s2903 = sld [smem:[#allocation3 + $0x67]]
        %v2904 = vstv %s2903
        %v2905 = vmul.f32 %v2232, %v2904
        %v2906 = vmul.f32 %v2233, %v2904
        %2909 = vrot.lane.b32.xlu0 %v2905, 123
        %v2910 = vpop.permute.xlu0 %2909
        %2911 = vrot.lane.b32.xlu0 %v2906, 123
        %v2912 = vpop.permute.xlu0 %2911
        %v2915 = vadd.f32 %v2901, %v2910
        %v2916 = vadd.f32 %v2902, %v2912
        %s2917 = sld [smem:[#allocation3 + $0x6e]]
        %v2918 = vstv %s2917
        %v2919 = vmul.f32 %v2232, %v2918
        %v2920 = vmul.f32 %v2233, %v2918
        %v2921 = vmul.f32 %v2234, %v2918
        %v2925 = vrot.slane %v2919, 1
        %v2926 = vrot.slane %v2920, 1
        %v2927 = vsel %vm339, %v2925, %v2926
        %v2928 = vrot.slane %v2921, 1
        %v2929 = vsel %vm339, %v2926, %v2928
        %2930 = vrot.lane.b32.xlu0 %v2927, 123
        %v2931 = vpop.permute.xlu0 %2930
        %2932 = vrot.lane.b32.xlu0 %v2929, 123
        %v2933 = vpop.permute.xlu0 %2932
        %v2936 = vadd.f32 %v2915, %v2931
        %v2937 = vadd.f32 %v2916, %v2933
        %s2938 = sld [smem:[#allocation3 + $0x75]]
        %v2939 = vstv %s2938
        %v2940 = vmul.f32 %v2232, %v2939
        %v2941 = vmul.f32 %v2233, %v2939
        %v2942 = vmul.f32 %v2234, %v2939
        %v2946 = vrot.slane %v2940, 2
        %v2947 = vrot.slane %v2941, 2
        %v2948 = vsel %vm357, %v2946, %v2947
        %v2949 = vrot.slane %v2942, 2
        %v2950 = vsel %vm357, %v2947, %v2949
        %2951 = vrot.lane.b32.xlu0 %v2948, 123
        %v2952 = vpop.permute.xlu0 %2951
        %2953 = vrot.lane.b32.xlu0 %v2950, 123
        %v2954 = vpop.permute.xlu0 %2953
        %v2957 = vadd.f32 %v2936, %v2952
        %v2958 = vadd.f32 %v2937, %v2954
        %s2959 = sld [smem:[#allocation3 + $0x7c]]
        %v2960 = vstv %s2959
        %v2961 = vmul.f32 %v2232, %v2960
        %v2962 = vmul.f32 %v2233, %v2960
        %v2963 = vmul.f32 %v2234, %v2960
        %v2967 = vrot.slane %v2961, 3
        %v2968 = vrot.slane %v2962, 3
        %v2969 = vsel %vm375, %v2967, %v2968
        %v2970 = vrot.slane %v2963, 3
        %v2971 = vsel %vm375, %v2968, %v2970
        %2972 = vrot.lane.b32.xlu0 %v2969, 123
        %v2973 = vpop.permute.xlu0 %2972
        %2974 = vrot.lane.b32.xlu0 %v2971, 123
        %v2975 = vpop.permute.xlu0 %2974
        %v2978 = vadd.f32 %v2957, %v2973
        %v2979 = vadd.f32 %v2958, %v2975
        %s2980 = sld [smem:[#allocation3 + $0x83]]
        %v2981 = vstv %s2980
        %v2982 = vmul.f32 %v2232, %v2981
        %v2983 = vmul.f32 %v2233, %v2981
        %v2984 = vmul.f32 %v2234, %v2981
        %v2988 = vrot.slane %v2982, 4
        %v2989 = vrot.slane %v2983, 4
        %v2990 = vsel %vm393, %v2988, %v2989
        %v2991 = vrot.slane %v2984, 4
        %v2992 = vsel %vm393, %v2989, %v2991
        %2993 = vrot.lane.b32.xlu0 %v2990, 123
        %v2994 = vpop.permute.xlu0 %2993
        %2995 = vrot.lane.b32.xlu0 %v2992, 123
        %v2996 = vpop.permute.xlu0 %2995
        %v2999 = vadd.f32 %v2978, %v2994
        %v3000 = vadd.f32 %v2979, %v2996
        %s3001 = sld [smem:[#allocation3 + $0x8a]]
        %v3002 = vstv %s3001
        %v3003 = vmul.f32 %v2232, %v3002
        %v3004 = vmul.f32 %v2233, %v3002
        %v3005 = vmul.f32 %v2234, %v3002
        %v3009 = vrot.slane %v3003, 5
        %v3010 = vrot.slane %v3004, 5
        %v3011 = vsel %vm411, %v3009, %v3010
        %v3012 = vrot.slane %v3005, 5
        %v3013 = vsel %vm411, %v3010, %v3012
        %3014 = vrot.lane.b32.xlu0 %v3011, 123
        %v3015 = vpop.permute.xlu0 %3014
        %3016 = vrot.lane.b32.xlu0 %v3013, 123
        %v3017 = vpop.permute.xlu0 %3016
        %v3020 = vadd.f32 %v2999, %v3015
        %v3021 = vadd.f32 %v3000, %v3017
        %s3022 = sld [smem:[#allocation3 + $0x91]]
        %v3023 = vstv %s3022
        %v3024 = vmul.f32 %v2232, %v3023
        %v3025 = vmul.f32 %v2233, %v3023
        %v3026 = vmul.f32 %v2234, %v3023
        %v3030 = vrot.slane %v3024, 6
        %v3031 = vrot.slane %v3025, 6
        %v3032 = vsel %vm429, %v3030, %v3031
        %v3033 = vrot.slane %v3026, 6
        %v3034 = vsel %vm429, %v3031, %v3033
        %3035 = vrot.lane.b32.xlu0 %v3032, 123
        %v3036 = vpop.permute.xlu0 %3035
        %3037 = vrot.lane.b32.xlu0 %v3034, 123
        %v3038 = vpop.permute.xlu0 %3037
        %v3041 = vadd.f32 %v3020, %v3036
        %v3042 = vadd.f32 %v3021, %v3038
        %s3043 = sld [smem:[#allocation3 + $0x68]]
        %v3044 = vstv %s3043
        %v3045 = vmul.f32 %v2232, %v3044
        %v3046 = vmul.f32 %v2233, %v3044
        %3049 = vrot.lane.b32.xlu0 %v3045, 122
        %v3050 = vpop.permute.xlu0 %3049
        %3051 = vrot.lane.b32.xlu0 %v3046, 122
        %v3052 = vpop.permute.xlu0 %3051
        %v3055 = vadd.f32 %v3041, %v3050
        %v3056 = vadd.f32 %v3042, %v3052
        %s3057 = sld [smem:[#allocation3 + $0x6f]]
        %v3058 = vstv %s3057
        %v3059 = vmul.f32 %v2232, %v3058
        %v3060 = vmul.f32 %v2233, %v3058
        %v3061 = vmul.f32 %v2234, %v3058
        %v3065 = vrot.slane %v3059, 1
        %v3066 = vrot.slane %v3060, 1
        %v3067 = vsel %vm339, %v3065, %v3066
        %v3068 = vrot.slane %v3061, 1
        %v3069 = vsel %vm339, %v3066, %v3068
        %3070 = vrot.lane.b32.xlu0 %v3067, 122
        %v3071 = vpop.permute.xlu0 %3070
        %3072 = vrot.lane.b32.xlu0 %v3069, 122
        %v3073 = vpop.permute.xlu0 %3072
        %v3076 = vadd.f32 %v3055, %v3071
        %v3077 = vadd.f32 %v3056, %v3073
        %s3078 = sld [smem:[#allocation3 + $0x76]]
        %v3079 = vstv %s3078
        %v3080 = vmul.f32 %v2232, %v3079
        %v3081 = vmul.f32 %v2233, %v3079
        %v3082 = vmul.f32 %v2234, %v3079
        %v3086 = vrot.slane %v3080, 2
        %v3087 = vrot.slane %v3081, 2
        %v3088 = vsel %vm357, %v3086, %v3087
        %v3089 = vrot.slane %v3082, 2
        %v3090 = vsel %vm357, %v3087, %v3089
        %3091 = vrot.lane.b32.xlu0 %v3088, 122
        %v3092 = vpop.permute.xlu0 %3091
        %3093 = vrot.lane.b32.xlu0 %v3090, 122
        %v3094 = vpop.permute.xlu0 %3093
        %v3097 = vadd.f32 %v3076, %v3092
        %v3098 = vadd.f32 %v3077, %v3094
        %s3099 = sld [smem:[#allocation3 + $0x7d]]
        %v3100 = vstv %s3099
        %v3101 = vmul.f32 %v2232, %v3100
        %v3102 = vmul.f32 %v2233, %v3100
        %v3103 = vmul.f32 %v2234, %v3100
        %v3107 = vrot.slane %v3101, 3
        %v3108 = vrot.slane %v3102, 3
        %v3109 = vsel %vm375, %v3107, %v3108
        %v3110 = vrot.slane %v3103, 3
        %v3111 = vsel %vm375, %v3108, %v3110
        %3112 = vrot.lane.b32.xlu0 %v3109, 122
        %v3113 = vpop.permute.xlu0 %3112
        %3114 = vrot.lane.b32.xlu0 %v3111, 122
        %v3115 = vpop.permute.xlu0 %3114
        %v3118 = vadd.f32 %v3097, %v3113
        %v3119 = vadd.f32 %v3098, %v3115
        %s3120 = sld [smem:[#allocation3 + $0x84]]
        %v3121 = vstv %s3120
        %v3122 = vmul.f32 %v2232, %v3121
        %v3123 = vmul.f32 %v2233, %v3121
        %v3124 = vmul.f32 %v2234, %v3121
        %v3128 = vrot.slane %v3122, 4
        %v3129 = vrot.slane %v3123, 4
        %v3130 = vsel %vm393, %v3128, %v3129
        %v3131 = vrot.slane %v3124, 4
        %v3132 = vsel %vm393, %v3129, %v3131
        %3133 = vrot.lane.b32.xlu0 %v3130, 122
        %v3134 = vpop.permute.xlu0 %3133
        %3135 = vrot.lane.b32.xlu0 %v3132, 122
        %v3136 = vpop.permute.xlu0 %3135
        %v3139 = vadd.f32 %v3118, %v3134
        %v3140 = vadd.f32 %v3119, %v3136
        %s3141 = sld [smem:[#allocation3 + $0x8b]]
        %v3142 = vstv %s3141
        %v3143 = vmul.f32 %v2232, %v3142
        %v3144 = vmul.f32 %v2233, %v3142
        %v3145 = vmul.f32 %v2234, %v3142
        %v3149 = vrot.slane %v3143, 5
        %v3150 = vrot.slane %v3144, 5
        %v3151 = vsel %vm411, %v3149, %v3150
        %v3152 = vrot.slane %v3145, 5
        %v3153 = vsel %vm411, %v3150, %v3152
        %3154 = vrot.lane.b32.xlu0 %v3151, 122
        %v3155 = vpop.permute.xlu0 %3154
        %3156 = vrot.lane.b32.xlu0 %v3153, 122
        %v3157 = vpop.permute.xlu0 %3156
        %v3160 = vadd.f32 %v3139, %v3155
        %v3161 = vadd.f32 %v3140, %v3157
        %s3162 = sld [smem:[#allocation3 + $0x92]]
        %v3163 = vstv %s3162
        %v3164 = vmul.f32 %v2232, %v3163
        %v3165 = vmul.f32 %v2233, %v3163
        %v3166 = vmul.f32 %v2234, %v3163
        %v3170 = vrot.slane %v3164, 6
        %v3171 = vrot.slane %v3165, 6
        %v3172 = vsel %vm429, %v3170, %v3171
        %v3173 = vrot.slane %v3166, 6
        %v3174 = vsel %vm429, %v3171, %v3173
        %3175 = vrot.lane.b32.xlu0 %v3172, 122
        %v3176 = vpop.permute.xlu0 %3175
        %3177 = vrot.lane.b32.xlu0 %v3174, 122
        %v3178 = vpop.permute.xlu0 %3177
        %v3181 = vadd.f32 %v3160, %v3176
        %v3182 = vadd.f32 %v3161, %v3178
        %s3183 = sld [smem:[#allocation7]]
        %v3184 = vstv %s3183
        %v3185 = vmul.f32 %v3181, %v3184
        %v3186 = vmul.f32 %v3182, %v3184
        %s3187 = sld [smem:[#allocation7 + $0x1]]
        %v3188 = vstv %s3187
        %v3189 = vadd.f32 %v3185, %v3188
        %v3190 = vadd.f32 %v3186, %v3188
        %v3191 = vxor.u32 %v3189, 2147483648
        %v3192 = vxor.u32 %v3190, 2147483648
        %v3193 = vmul.f32 %v3191, 1.442695
        %v3194 = vpow.pop %v3193
        %v3195 = vmul.f32 %v3192, 1.442695
        %v3196 = vpow.pop %v3195
        %v3197 = vadd.f32 %v3194, 1.0
        %v3198 = vadd.f32 %v3196, 1.0
        %v3199 = vrcp.pop %v3197
        %v3200 = vmul.f32 %v3197, %v3199
        %v3201 = vsub.f32 1.0, %v3200
        %v3202 = vmul.f32 %v3199, %v3201
        %v3203 = vadd.f32 %v3199, %v3202
        %vm3204 = vweird.f32 %v3197
        %vm3205 = vweird.f32 %v3199
        %vm3206 = vmor %vm3204, %vm3205
        %v3207 = vsel %vm3206, %v3199, %v3203
        %v3208 = vand.u32 2147483647, %v3197
        %vm3209 = vcmp.eq.f32.partialorder %v3208, 8.507059e+37
        %v3210 = vand.u32 %v3197, 2147483648
        %v3211 = vor.u32 1.1754944e-38, %v3210
        %v3212 = vsel %vm3209, %v3211, %v3207
        %v3213 = vmul.f32 1.0, %v3212
        %v3214 = vrcp.pop %v3198
        %v3215 = vmul.f32 %v3198, %v3214
        %v3216 = vsub.f32 1.0, %v3215
        %v3217 = vmul.f32 %v3214, %v3216
        %v3218 = vadd.f32 %v3214, %v3217
        %vm3219 = vweird.f32 %v3198
        %vm3220 = vweird.f32 %v3214
        %vm3221 = vmor %vm3219, %vm3220
        %v3222 = vsel %vm3221, %v3214, %v3218
        %v3223 = vand.u32 2147483647, %v3198
        %vm3224 = vcmp.eq.f32.partialorder %v3223, 8.507059e+37
        %v3225 = vand.u32 %v3198, 2147483648
        %v3226 = vor.u32 1.1754944e-38, %v3225
        %v3227 = vsel %vm3224, %v3226, %v3222
        %v3228 = vmul.f32 1.0, %v3227
        %vm3229 = vcmask 130048
        %3230 = vst.msk [vmem:[%s255] sm:$0xff] %vm3229, %v3213
        %3231 = vst.msk [vmem:[%s255 + $0x8] sm:$0xff] %vm3229, %v3228
        %v3232 = vadd.f32 %v3213, 1.0
        %v3233 = vadd.f32 %v3228, 1.0
        %v3234 = vmul.f32 %v285, %v3232
        %v3235 = vmul.f32 %v286, %v3233
        %v3236 = vmul.f32 %v287, %v3232
        %v3237 = vmul.f32 %v288, %v3233
        %v3238 = vmul.f32 %v289, %v3232
        %v3239 = vmul.f32 %v290, %v3233
        %3240 = vst.msk [vmem:[%s248] sm:$0xff] %vm3229, %v3234
        %3241 = vst.msk [vmem:[%s248 + $0x8] sm:$0xff] %vm3229, %v3235
        %3242 = vst.msk [vmem:[%s248 + $0x10] sm:$0xff] %vm3229, %v3236
        %3243 = vst.msk [vmem:[%s248 + $0x18] sm:$0xff] %vm3229, %v3237
        %3244 = vst.msk [vmem:[%s248 + $0x20] sm:$0xff] %vm3229, %v3238
        %3245 = vst.msk [vmem:[%s248 + $0x28] sm:$0xff] %vm3229, %v3239
        %s3246 = sand.u32 %s103, 1
        %s3247 = scalar_lea.sflag [#allocation5], %s3246
        %s3248 = sand.u32 %s103, 1
        %s3249 = smul.addr %s3248, 48
        %s3250 = scalar_lea.vmem [#allocation10], %s3249
        %s3251 = sand.u32 %s129, 1
        %s3252 = scalar_lea.sflag [#allocation12], %s3251
        %s3253 = sand.u32 %s129, 1
        %s3254 = smul.addr %s3253, 16
        %s3255 = scalar_lea.vmem [#allocation11], %s3254
        // Predicated region
        $region45: #{spatial_gate.1} parent=31 // pred_check
          %p3256 = pneg %p113
        $region46: #{spatial_gate.1} parent=31 // pred_check_branch
          %3258 = sbr.rel (%p3256) target = $region48
        $region47: #{spatial_gate.1} parent=31 // pred_region
          %3260 = vsyncadd %s3247, 0
          %s3261 = smul.addr %s27, 6
          %s3262 = smul.addr %s3261, 8
          %s3263 = scalar_lea.hbm %s3, %s3262
          %s3264 = sshll.u32 %s3250, 4
          %s3265 = int_to_ptr.vmem [resolvable:$true] %s3264
          %s3266 = sshll.u32 %s3263, 4
          %s3267 = int_to_ptr.hbm [resolvable:$true] %s3266
          %3272 = dma.vmem_to_hbm [thread:$0]  %s3265, 768, %s3267, %s3247, 128, 128, 8
        $region48: #{spatial_gate.1} parent=31 // pred_fallthru
          _
        // Predicated region
        $region49: #{spatial_gate.1} parent=31 // pred_check
          %p3273 = pneg %p139
        $region50: #{spatial_gate.1} parent=31 // pred_check_branch
          %3275 = sbr.rel (%p3273) target = $region52
        $region51: #{spatial_gate.1} parent=31 // pred_region
          %3277 = vsyncadd %s3252, 0
          %s3278 = smul.addr %s27, 2
          %s3279 = smul.addr %s3278, 8
          %s3280 = scalar_lea.hbm %s4, %s3279
          %s3281 = sshll.u32 %s3255, 4
          %s3282 = int_to_ptr.vmem [resolvable:$true] %s3281
          %s3283 = sshll.u32 %s3280, 4
          %s3284 = int_to_ptr.hbm [resolvable:$true] %s3283
          %3289 = dma.vmem_to_hbm [thread:$0]  %s3282, 256, %s3284, %s3252, 128, 128, 8
        $region52: #{spatial_gate.1} parent=31 // pred_fallthru
          _
      $region32: #{spatial_gate.1} parent=5 // pred_fallthru
        _
      %p3290 = scmp.le.s32.totalorder 2, %s22
      // Predicated region
      $region53: #{spatial_gate.1} parent=5 // pred_check
        %p3291 = pneg %p3290
      $region54: #{spatial_gate.1} parent=5 // pred_check_branch
        %3293 = sbr.rel (%p3291) target = $region56
      $region55: #{spatial_gate.1} parent=5 // pred_region
        %s3294 = ssub.s32 %s22, 2
        // Predicated region
        $region57: #{spatial_gate.1} parent=55 // pred_check
          %p3295 = pneg %p119
        $region58: #{spatial_gate.1} parent=55 // pred_check_branch
          %3297 = sbr.rel (%p3295) target = $region60
        $region59: #{spatial_gate.1} parent=55 // pred_region
          %s3298 = sand.u32 %s104, 1
          %s3299 = scalar_lea.sflag [#allocation5], %s3298
          %s3300 = sand.u32 %s104, 1
          %s3301 = smul.addr %s3300, 48
          %s3302 = scalar_lea.vmem [#allocation10], %s3301
          %3304 = dma.done %s3299, 768
        $region60: #{spatial_gate.1} parent=55 // pred_fallthru
          _
        // Predicated region
        $region61: #{spatial_gate.1} parent=55 // pred_check
          %p3305 = pneg %p145
        $region62: #{spatial_gate.1} parent=55 // pred_check_branch
          %3307 = sbr.rel (%p3305) target = $region64
        $region63: #{spatial_gate.1} parent=55 // pred_region
          %s3308 = sand.u32 %s130, 1
          %s3309 = scalar_lea.sflag [#allocation12], %s3308
          %s3310 = sand.u32 %s130, 1
          %s3311 = smul.addr %s3310, 16
          %s3312 = scalar_lea.vmem [#allocation11], %s3311
          %3314 = dma.done %s3309, 256
        $region64: #{spatial_gate.1} parent=55 // pred_fallthru
          _
      $region56: #{spatial_gate.1} parent=5 // pred_fallthru
        _
    $region6: #{spatial_gate.1} parent=1 // loop_footer
      %s26 = sadd.s32 1, %s22
    $region7: #{spatial_gate.1} parent=1 // loop_footer_branch
      %21 = sbr.rel target = $region3
    $region8: #{spatial_gate.1} parent=1 // loop_exit
      _
    %3315 = vsyncpa [#allocation4], 1
    %s3316 = scalar_lea.sflag [#allocation4], 1
    %3317 = vsyncpa %s3316, 1
    %3318 = vsyncpa [#allocation5], 1
    %s3319 = scalar_lea.sflag [#allocation5], 1
    %3320 = vsyncpa %s3319, 1
    %3321 = vsyncpa [#allocation12], 1
    %s3322 = scalar_lea.sflag [#allocation12], 1
    %3323 = vsyncpa %s3322, 1
    %3324 = vsyncpa [#allocation6], 1
    %s3325 = scalar_lea.sflag [#allocation6], 1
    %3326 = vsyncpa %s3325, 1
    %3327 = vsyncpa [#allocation8], 1

</llo_original>
